<compile_context>
chip_gen: v7x
topology: tpu7x:2x2x1
jax: 0.10.0
libtpu: 0.0.40
codegen_flags: <defaults>
</compile_context>

<pallas_src>
import functools

import jax
import jax.numpy as jnp
from jax import lax
from jax.experimental import pallas as pl
from jax.experimental.pallas import tpu as pltpu


def _round_up(x, m):
    return (x + m - 1) // m * m


def _rnn_kernel(*refs, num_layers, chunk, last_steps, unroll_factor,
                full_unroll_ok):
    """One grid step == one chunk of timesteps of the stacked RNN.

    refs layout (L = num_layers):
      xp_ref   : (chunk, Bp, Hp) bf16  precomputed x @ W_ih0 + b0, time-major
      whh0_ref : (Hp, Hp)        bf16  layer-0 hidden weights (transposed)
      [wcat_ref: (L-1, 2Hp, Hp)  bf16  fused [W_ih; W_hh] for layers >= 1]
      [brest_ref:(L-1, 1, Hp)    f32   biases for layers >= 1]
      fcw_ref  : (Hp, Op)        bf16  final Linear weight (transposed)
      fcb_ref  : (1, Op)         f32   final Linear bias
      out_ref  : (Bp, Op)        f32   fc(last-timestep top-layer hidden)
      h_ref    : (L, Bp, Hp)     f32   hidden state carried across chunks
    """
    L = num_layers
    if L > 1:
        (xp_ref, whh0_ref, wcat_ref, brest_ref,
         fcw_ref, fcb_ref, out_ref, h_ref) = refs
    else:
        xp_ref, whh0_ref, fcw_ref, fcb_ref, out_ref, h_ref = refs
        wcat_ref = brest_ref = None

    f32, bf16 = jnp.float32, jnp.bfloat16
    c = pl.program_id(0)
    n_chunks = pl.num_programs(0)
    Bp, Hp = h_ref.shape[1], h_ref.shape[2]

    @pl.when(c == 0)
    def _():
        h_ref[...] = jnp.zeros_like(h_ref)

    # Load carried hidden state once per chunk; keep it in vregs in the loop.
    hs0 = tuple(h_ref[l] for l in range(L))

    # Hoist the per-layer bias broadcasts out of the (unrolled) time loop.
    biases = tuple(jnp.broadcast_to(brest_ref[l - 1], (Bp, Hp)).astype(f32)
                   for l in range(1, L))

    def make_step(nsteps):
        # Wavefront over (t, layer) diagonals: at diagonal d, layer l works on
        # timestep d - l and reads only previous-diagonal state, so the L
        # matmuls of one diagonal are data-independent. Layer l is active for
        # l <= d < l + nsteps (fill/drain handled by predicated updates).
        def step(d, hs):
            new_hs = []
            xi = jnp.minimum(d, nsteps - 1) if L > 1 else d
            xt = xp_ref[xi]                                       # (Bp, Hp) bf16
            h0 = jnp.tanh(xt.astype(f32)
                          + jnp.dot(hs[0].astype(bf16), whh0_ref[...],
                                    preferred_element_type=f32))
            if L > 1:
                h0 = jnp.where(d < nsteps, h0, hs[0])
            new_hs.append(h0)
            for l in range(1, L):
                cat = jnp.concatenate([hs[l - 1], hs[l]], axis=-1).astype(bf16)
                hl = jnp.tanh(jnp.dot(cat, wcat_ref[l - 1],
                                      preferred_element_type=f32)
                              + biases[l - 1])
                active = jnp.logical_and(d >= l, d < l + nsteps)
                new_hs.append(jnp.where(active, hl, hs[l]))
            return tuple(new_hs)
        return step

    def run_chunk(nsteps):
        total = nsteps + L - 1
        unroll = True if (total <= 32 and full_unroll_ok) else unroll_factor
        return lax.fori_loop(0, total, make_step(nsteps), hs0, unroll=unroll)

    def emit_out(hs):
        out = jnp.dot(hs[L - 1].astype(bf16), fcw_ref[...],
                      preferred_element_type=f32) + fcb_ref[...]
        out_ref[...] = out.astype(out_ref.dtype)

    if last_steps == chunk:
        # T is a multiple of chunk: every chunk runs the same trip count.
        hs = run_chunk(chunk)
        for l in range(L):
            h_ref[l] = hs[l]

        @pl.when(c == n_chunks - 1)
        def _():
            emit_out(hs)
    else:
        @pl.when(c != n_chunks - 1)
        def _():
            hs = run_chunk(chunk)
            for l in range(L):
                h_ref[l] = hs[l]

        @pl.when(c == n_chunks - 1)
        def _():
            # Only the real remaining timesteps: no masking, no wasted steps.
            emit_out(run_chunk(last_steps))


def rnn_forward(x, params, *, hidden_size, num_layers, output_size,
                time_chunk=128):
    """x: (B, T, I) float32 -> (B, output_size) float32."""
    B, T, I = x.shape
    H, O, L = hidden_size, output_size, num_layers
    f32, bf16 = jnp.float32, jnp.bfloat16

    # Lane/sublane-dense padding. bf16 activations -> 16-sublane batch tile.
    # Prefer 256-aligned Hp at realistic sizes (v6e/v7x native MXU pass).
    Hp = _round_up(H, 128) if H <= 128 else _round_up(H, 256)
    Op = _round_up(O, 128)
    Bp = _round_up(B, 16)

    # ---- generation-aware VMEM budget & chunk sizing -----------------------
    try:
        vmem_cap = int(pltpu.get_tpu_info().vmem_capacity_bytes)
    except Exception:  # fall back to the most conservative real value (v7x)
        vmem_cap = 64 << 20
    vmem_budget = min(vmem_cap * 3 // 4, vmem_cap - (8 << 20))

    def footprint(ck):
        xp_b = 2 * ck * Bp * Hp * 2                       # dbl-buffered bf16 slab
        w_b = (Hp * Hp + max(L - 1, 0) * 2 * Hp * Hp + Hp * Op) * 2   # bf16
        b_b = (max(L - 1, 0) * Hp + Op) * 4
        io_b = 2 * Bp * Op * 4
        scr = L * Bp * Hp * 4
        # Weights budgeted as double-buffered in case Buffered(1) is rejected.
        return xp_b + 2 * (w_b + b_b) + io_b + scr + (4 << 20)

    chunk = max(1, min(T, time_chunk))
    while chunk > 16 and footprint(chunk) > vmem_budget:
        chunk = max(16, chunk // 2)

    n_chunks = (T + chunk - 1) // chunk
    T_pad = n_chunks * chunk
    last_steps = T - (n_chunks - 1) * chunk

    need = footprint(chunk)
    vmem_limit = int(max(min(vmem_budget, max(need, 32 << 20)), need))

    # vreg pressure of the carried hidden state (f32); throttle unrolling if
    # it starts crowding the 64-entry vector register file.
    state_vregs = (L * Bp * Hp * 4) // 4096
    full_unroll_ok = state_vregs <= 24
    unroll_factor = 8 if full_unroll_ok else 2

    wih0 = params["wih0"].astype(f32)      # (I, H)
    whh = params["whh"].astype(f32)        # (L, H, H)
    b = params["b"].astype(f32)            # (L, H)
    fcw = params["fcw"].astype(f32)        # (H, O)
    fcb = params["fcb"].astype(f32)        # (1, O)

    def pad2(a, rows, cols):
        return jnp.pad(a, ((0, rows - a.shape[0]), (0, cols - a.shape[1])))

    # ---- layer-0 projection for all timesteps: one big parallel matmul -----
    xp = jnp.einsum("bti,ih->tbh", x.astype(f32), wih0) + b[0]    # (T, B, H)
    xp = jnp.pad(xp, ((0, T_pad - T), (0, Bp - B), (0, Hp - H)))
    xp = xp.astype(bf16)                                          # (T_pad,Bp,Hp)

    whh0_p = pad2(whh[0], Hp, Hp).astype(bf16)                    # (Hp, Hp)
    fcw_p = pad2(fcw, Hp, Op).astype(bf16)                        # (Hp, Op)
    fcb_p = jnp.pad(fcb, ((0, 0), (0, Op - O)))                   # (1, Op) f32

    if L > 1:
        wih_rest = params["wih_rest"].astype(f32)                 # (L-1, H, H)
        # Fused [W_ih; W_hh] per upper layer -> one MXU matmul per layer-step.
        wcat = jnp.stack(
            [jnp.concatenate([pad2(wih_rest[l], Hp, Hp),
                              pad2(whh[l + 1], Hp, Hp)], axis=0)
             for l in range(L - 1)], axis=0).astype(bf16)         # (L-1,2Hp,Hp)
        brest = jnp.pad(b[1:], ((0, 0), (0, Hp - H)))[:, None, :]  # (L-1,1,Hp)
    else:
        wcat = brest = None

    kernel = functools.partial(_rnn_kernel, num_layers=L, chunk=chunk,
                               last_steps=last_steps,
                               unroll_factor=unroll_factor,
                               full_unroll_ok=full_unroll_ok)

    def build_and_run(single_buffer_weights):
        def const_spec(shape):
            zeros = (0,) * len(shape)
            if single_buffer_weights:
                # Never re-fetched across grid steps -> one VMEM buffer only.
                return pl.BlockSpec(shape, lambda c, z=zeros: z,
                                    pipeline_mode=pl.Buffered(buffer_count=1))
            return pl.BlockSpec(shape, lambda c, z=zeros: z)

        args = [xp, whh0_p]
        in_specs = [
            pl.BlockSpec((chunk, Bp, Hp), lambda c: (c, 0, 0)),   # x slab
            const_spec((Hp, Hp)),                                 # whh layer 0
        ]
        if L > 1:
            args += [wcat, brest]
            in_specs += [const_spec((L - 1, 2 * Hp, Hp)),
                         const_spec((L - 1, 1, Hp))]
        args += [fcw_p, fcb_p]
        in_specs += [const_spec((Hp, Op)), const_spec((1, Op))]

        out = pl.pallas_call(
            kernel,
            out_shape=jax.ShapeDtypeStruct((Bp, Op), f32),
            grid_spec=pltpu.PrefetchScalarGridSpec(
                num_scalar_prefetch=0,
                grid=(n_chunks,),
                in_specs=in_specs,
                out_specs=pl.BlockSpec((Bp, Op), lambda c: (0, 0)),
                scratch_shapes=[pltpu.VMEM((L, Bp, Hp), f32)],
            ),
            compiler_params=pltpu.CompilerParams(
                dimension_semantics=("arbitrary",),
                vmem_limit_bytes=vmem_limit),
        )(*args)
        return jax.block_until_ready(out)

    try:
        out = build_and_run(True)
    except Exception:
        # Runtime without Buffered(1) single-buffering support -> default
        # double-buffered weight blocks.
        out = build_and_run(False)

    return out[:B, :O]


def _reference_forward(x, params, *, hidden_size, num_layers):
    """Pure-JAX f32 reference of the same stacked tanh RNN + Linear."""
    B, T, I = x.shape
    L, H = num_layers, hidden_size
    h = jnp.zeros((L, B, H), jnp.float32)
    for t in range(T):
        inp = x[:, t, :]
        new_h = []
        for l in range(L):
            w_in = params["wih0"] if l == 0 else params["wih_rest"][l - 1]
            pre = inp @ w_in + h[l] @ params["whh"][l] + params["b"][l]
            hl = jnp.tanh(pre)
            new_h.append(hl)
            inp = hl
        h = jnp.stack(new_h, axis=0)
    return inp @ params["fcw"] + params["fcb"][0]


def init_params(key, input_size, hidden_size, output_size, num_layers):
    """Deterministic synthetic params (PyTorch-style uniform(-1/sqrt(H), 1/sqrt(H)))."""
    H, I, O, L = hidden_size, input_size, output_size, num_layers
    bound = 1.0 / jnp.sqrt(jnp.float32(H))
    keys = jax.random.split(key, 8)
    u = lambda k, shape: jax.random.uniform(k, shape, jnp.float32, -bound, bound)
    params = {
        "wih0": u(keys[0], (I, H)),
        "wih_rest": u(keys[1], (max(L - 1, 1), H, H)),
        "whh": u(keys[2], (L, H, H)),
        # b = b_ih + b_hh folded into one bias per layer
        "b": u(keys[3], (L, H)) + u(keys[4], (L, H)),
        "fcw": u(keys[5], (H, O)),
        "fcb": u(keys[6], (1, O)),
    }
    if L == 1:
        # unused dummy kept for API compatibility; never passed to the kernel
        params["wih_rest"] = jnp.zeros((1, H, H), jnp.float32)
    return params


if __name__ == "__main__":
    B, T = 2, 8
    input_size, hidden_size, output_size, num_layers = 4, 32, 8, 2

    key = jax.random.PRNGKey(0)
    kx, kp = jax.random.split(key)
    x = jax.random.normal(kx, (B, T, input_size), jnp.float32)
    params = init_params(kp, input_size, hidden_size, output_size, num_layers)

    out = rnn_forward(x, params, hidden_size=hidden_size,
                      num_layers=num_layers, output_size=output_size)
    out = jax.block_until_ready(out)

    ref = _reference_forward(x, params, hidden_size=hidden_size,
                             num_layers=num_layers)
    assert out.shape == (B, output_size), out.shape
    # bf16 matmul operands (f32 accumulation) -> looser tolerance vs f32 ref.
    assert jnp.allclose(out, ref, atol=3e-2, rtol=3e-2), (out, ref)

    print("KERNEL_OK")
</pallas_src>

<mosaic_0001>
module attributes {stable_mosaic.version = 11 : i64} {
  func.func @_rnn_kernel(%arg0: i32, %arg1: memref<8x16x128xbf16, #tpu.memory_space<vmem>>, %arg2: memref<128x128xbf16, #tpu.memory_space<vmem>>, %arg3: memref<1x256x128xbf16, #tpu.memory_space<vmem>>, %arg4: memref<1x1x128xf32, #tpu.memory_space<vmem>>, %arg5: memref<128x128xbf16, #tpu.memory_space<vmem>>, %arg6: memref<1x128xf32, #tpu.memory_space<vmem>>, %arg7: memref<16x128xf32, #tpu.memory_space<vmem>>, %arg8: memref<2x16x128xf32, #tpu.memory_space<vmem>>) attributes {dimension_semantics = [#tpu.dimension_semantics<arbitrary>], iteration_bounds = array<i64: 1>, scalar_prefetch = 0 : i64, scratch_operands = 1 : i64, tpu.core_type = #tpu.core_type<tc>, window_params = [{transform_indices = @transform_0, window_bounds = array<i64: 8, 16, 128>}, {pipeline_mode = #tpu.pipeline_mode<synchronous>, transform_indices = @transform_1, window_bounds = array<i64: 128, 128>}, {pipeline_mode = #tpu.pipeline_mode<synchronous>, transform_indices = @transform_2, window_bounds = array<i64: 1, 256, 128>}, {pipeline_mode = #tpu.pipeline_mode<synchronous>, transform_indices = @transform_3, window_bounds = array<i64: 1, 1, 128>}, {pipeline_mode = #tpu.pipeline_mode<synchronous>, transform_indices = @transform_4, window_bounds = array<i64: 128, 128>}, {pipeline_mode = #tpu.pipeline_mode<synchronous>, transform_indices = @transform_5, window_bounds = array<i64: 1, 128>}, {pipeline_mode = #tpu.pipeline_mode<synchronous>, transform_indices = @transform_6, window_bounds = array<i64: 16, 128>}]} {
    %c0_i32 = arith.constant 0 : i32
    %0 = arith.cmpi eq, %arg0, %c0_i32 : i32
    %1 = arith.extui %0 : i1 to i32
    %c0_i32_0 = arith.constant 0 : i32
    %2 = arith.cmpi ne, %1, %c0_i32_0 : i32
    scf.if %2 {
      %cst_133 = arith.constant 0.000000e+00 : f32
      %227 = vector.broadcast %cst_133 : f32 to vector<2x16x128xf32>
      %c0_134 = arith.constant 0 : index
      %c0_135 = arith.constant 0 : index
      %c0_136 = arith.constant 0 : index
      %228 = vector.load %arg8[%c0_134, %c0_135, %c0_136] : memref<2x16x128xf32, #tpu.memory_space<vmem>>, vector<2x16x128xf32>
      tpu.vector_store %arg8[%c0_134, %c0_135, %c0_136], %227 {strides = array<i32>} : memref<2x16x128xf32, #tpu.memory_space<vmem>>, vector<2x16x128xf32>,
    } else {
    }
    %c0 = arith.constant 0 : index
    %c0_1 = arith.constant 0 : index
    %c0_2 = arith.constant 0 : index
    %3 = vector.load %arg8[%c0, %c0_1, %c0_2] : memref<2x16x128xf32, #tpu.memory_space<vmem>>, vector<1x16x128xf32>
    %4 = vector.shape_cast %3 : vector<1x16x128xf32> to vector<16x128xf32>
    %c1 = arith.constant 1 : index
    %c0_3 = arith.constant 0 : index
    %c0_4 = arith.constant 0 : index
    %5 = vector.load %arg8[%c1, %c0_3, %c0_4] : memref<2x16x128xf32, #tpu.memory_space<vmem>>, vector<1x16x128xf32>
    %6 = vector.shape_cast %5 : vector<1x16x128xf32> to vector<16x128xf32>
    %c0_5 = arith.constant 0 : index
    %c0_6 = arith.constant 0 : index
    %c0_7 = arith.constant 0 : index
    %7 = vector.load %arg4[%c0_5, %c0_6, %c0_7] : memref<1x1x128xf32, #tpu.memory_space<vmem>>, vector<1x1x128xf32>
    %8 = vector.shape_cast %7 : vector<1x1x128xf32> to vector<1x128xf32>
    %9 = vector.shape_cast %8 : vector<1x128xf32> to vector<1x128xf32>
    %10 = vector.broadcast %9 : vector<1x128xf32> to vector<16x128xf32>
    %c0_i32_8 = arith.constant 0 : i32
    %c7_i32 = arith.constant 7 : i32
    %11 = arith.minsi %c0_i32_8, %c7_i32 : i32
    %12 = arith.index_cast %11 : i32 to index
    %c0_9 = arith.constant 0 : index
    %c0_10 = arith.constant 0 : index
    %13 = vector.load %arg1[%12, %c0_9, %c0_10] : memref<8x16x128xbf16, #tpu.memory_space<vmem>>, vector<1x16x128xbf16>
    %14 = vector.shape_cast %13 : vector<1x16x128xbf16> to vector<16x128xbf16>
    %15 = arith.extf %14 : vector<16x128xbf16> to vector<16x128xf32>
    %16 = arith.truncf %4 : vector<16x128xf32> to vector<16x128xbf16>
    %c0_11 = arith.constant 0 : index
    %c0_12 = arith.constant 0 : index
    %17 = vector.load %arg2[%c0_11, %c0_12] : memref<128x128xbf16, #tpu.memory_space<vmem>>, vector<128x128xbf16>
    %cst = arith.constant dense<0.000000e+00> : vector<16x128xf32>
    %18 = tpu.matmul %16, %17, %cst {dimension_numbers = #tpu.dot_dimension_numbers<[1], [0], [0], [1], [0, 0, 1, 1], [], []>} : vector<16x128xbf16>, vector<128x128xbf16>, vector<16x128xf32> -> vector<16x128xf32>
    %19 = arith.addf %15, %18 : vector<16x128xf32>
    %20 = math.tanh %19 : vector<16x128xf32>
    %c8_i32 = arith.constant 8 : i32
    %21 = arith.cmpi slt, %c0_i32_8, %c8_i32 : i32
    %22 = arith.select %21, %20, %4 : vector<16x128xf32>
    %23 = tpu.concatenate %4, %6 in 1 : vector<16x128xf32>, vector<16x128xf32> -> vector<16x256xf32>
    %24 = arith.truncf %23 : vector<16x256xf32> to vector<16x256xbf16>
    %c0_13 = arith.constant 0 : index
    %c0_14 = arith.constant 0 : index
    %c0_15 = arith.constant 0 : index
    %25 = vector.load %arg3[%c0_13, %c0_14, %c0_15] : memref<1x256x128xbf16, #tpu.memory_space<vmem>>, vector<1x256x128xbf16>
    %26 = vector.shape_cast %25 : vector<1x256x128xbf16> to vector<256x128xbf16>
    %cst_16 = arith.constant dense<0.000000e+00> : vector<16x128xf32>
    %27 = tpu.matmul %24, %26, %cst_16 {dimension_numbers = #tpu.dot_dimension_numbers<[1], [0], [0], [1], [0, 0, 1, 1], [], []>} : vector<16x256xbf16>, vector<256x128xbf16>, vector<16x128xf32> -> vector<16x128xf32>
    %28 = arith.addf %27, %10 : vector<16x128xf32>
    %29 = math.tanh %28 : vector<16x128xf32>
    %c1_i32 = arith.constant 1 : i32
    %30 = arith.cmpi sge, %c0_i32_8, %c1_i32 : i32
    %c9_i32 = arith.constant 9 : i32
    %31 = arith.cmpi slt, %c0_i32_8, %c9_i32 : i32
    %32 = arith.andi %30, %31 : i1
    %33 = arith.select %32, %29, %6 : vector<16x128xf32>
    %c1_i32_17 = arith.constant 1 : i32
    %c7_i32_18 = arith.constant 7 : i32
    %34 = arith.minsi %c1_i32_17, %c7_i32_18 : i32
    %35 = arith.index_cast %34 : i32 to index
    %c0_19 = arith.constant 0 : index
    %c0_20 = arith.constant 0 : index
    %36 = vector.load %arg1[%35, %c0_19, %c0_20] : memref<8x16x128xbf16, #tpu.memory_space<vmem>>, vector<1x16x128xbf16>
    %37 = vector.shape_cast %36 : vector<1x16x128xbf16> to vector<16x128xbf16>
    %38 = arith.extf %37 : vector<16x128xbf16> to vector<16x128xf32>
    %39 = arith.truncf %22 : vector<16x128xf32> to vector<16x128xbf16>
    %c0_21 = arith.constant 0 : index
    %c0_22 = arith.constant 0 : index
    %40 = vector.load %arg2[%c0_21, %c0_22] : memref<128x128xbf16, #tpu.memory_space<vmem>>, vector<128x128xbf16>
    %cst_23 = arith.constant dense<0.000000e+00> : vector<16x128xf32>
    %41 = tpu.matmul %39, %40, %cst_23 {dimension_numbers = #tpu.dot_dimension_numbers<[1], [0], [0], [1], [0, 0, 1, 1], [], []>} : vector<16x128xbf16>, vector<128x128xbf16>, vector<16x128xf32> -> vector<16x128xf32>
    %42 = arith.addf %38, %41 : vector<16x128xf32>
    %43 = math.tanh %42 : vector<16x128xf32>
    %c8_i32_24 = arith.constant 8 : i32
    %44 = arith.cmpi slt, %c1_i32_17, %c8_i32_24 : i32
    %45 = arith.select %44, %43, %22 : vector<16x128xf32>
    %46 = tpu.concatenate %22, %33 in 1 : vector<16x128xf32>, vector<16x128xf32> -> vector<16x256xf32>
    %47 = arith.truncf %46 : vector<16x256xf32> to vector<16x256xbf16>
    %c0_25 = arith.constant 0 : index
    %c0_26 = arith.constant 0 : index
    %c0_27 = arith.constant 0 : index
    %48 = vector.load %arg3[%c0_25, %c0_26, %c0_27] : memref<1x256x128xbf16, #tpu.memory_space<vmem>>, vector<1x256x128xbf16>
    %49 = vector.shape_cast %48 : vector<1x256x128xbf16> to vector<256x128xbf16>
    %cst_28 = arith.constant dense<0.000000e+00> : vector<16x128xf32>
    %50 = tpu.matmul %47, %49, %cst_28 {dimension_numbers = #tpu.dot_dimension_numbers<[1], [0], [0], [1], [0, 0, 1, 1], [], []>} : vector<16x256xbf16>, vector<256x128xbf16>, vector<16x128xf32> -> vector<16x128xf32>
    %51 = arith.addf %50, %10 : vector<16x128xf32>
    %52 = math.tanh %51 : vector<16x128xf32>
    %c1_i32_29 = arith.constant 1 : i32
    %53 = arith.cmpi sge, %c1_i32_17, %c1_i32_29 : i32
    %c9_i32_30 = arith.constant 9 : i32
    %54 = arith.cmpi slt, %c1_i32_17, %c9_i32_30 : i32
    %55 = arith.andi %53, %54 : i1
    %56 = arith.select %55, %52, %33 : vector<16x128xf32>
    %c2_i32 = arith.constant 2 : i32
    %c7_i32_31 = arith.constant 7 : i32
    %57 = arith.minsi %c2_i32, %c7_i32_31 : i32
    %58 = arith.index_cast %57 : i32 to index
    %c0_32 = arith.constant 0 : index
    %c0_33 = arith.constant 0 : index
    %59 = vector.load %arg1[%58, %c0_32, %c0_33] : memref<8x16x128xbf16, #tpu.memory_space<vmem>>, vector<1x16x128xbf16>
    %60 = vector.shape_cast %59 : vector<1x16x128xbf16> to vector<16x128xbf16>
    %61 = arith.extf %60 : vector<16x128xbf16> to vector<16x128xf32>
    %62 = arith.truncf %45 : vector<16x128xf32> to vector<16x128xbf16>
    %c0_34 = arith.constant 0 : index
    %c0_35 = arith.constant 0 : index
    %63 = vector.load %arg2[%c0_34, %c0_35] : memref<128x128xbf16, #tpu.memory_space<vmem>>, vector<128x128xbf16>
    %cst_36 = arith.constant dense<0.000000e+00> : vector<16x128xf32>
    %64 = tpu.matmul %62, %63, %cst_36 {dimension_numbers = #tpu.dot_dimension_numbers<[1], [0], [0], [1], [0, 0, 1, 1], [], []>} : vector<16x128xbf16>, vector<128x128xbf16>, vector<16x128xf32> -> vector<16x128xf32>
    %65 = arith.addf %61, %64 : vector<16x128xf32>
    %66 = math.tanh %65 : vector<16x128xf32>
    %c8_i32_37 = arith.constant 8 : i32
    %67 = arith.cmpi slt, %c2_i32, %c8_i32_37 : i32
    %68 = arith.select %67, %66, %45 : vector<16x128xf32>
    %69 = tpu.concatenate %45, %56 in 1 : vector<16x128xf32>, vector<16x128xf32> -> vector<16x256xf32>
    %70 = arith.truncf %69 : vector<16x256xf32> to vector<16x256xbf16>
    %c0_38 = arith.constant 0 : index
    %c0_39 = arith.constant 0 : index
    %c0_40 = arith.constant 0 : index
    %71 = vector.load %arg3[%c0_38, %c0_39, %c0_40] : memref<1x256x128xbf16, #tpu.memory_space<vmem>>, vector<1x256x128xbf16>
    %72 = vector.shape_cast %71 : vector<1x256x128xbf16> to vector<256x128xbf16>
    %cst_41 = arith.constant dense<0.000000e+00> : vector<16x128xf32>
    %73 = tpu.matmul %70, %72, %cst_41 {dimension_numbers = #tpu.dot_dimension_numbers<[1], [0], [0], [1], [0, 0, 1, 1], [], []>} : vector<16x256xbf16>, vector<256x128xbf16>, vector<16x128xf32> -> vector<16x128xf32>
    %74 = arith.addf %73, %10 : vector<16x128xf32>
    %75 = math.tanh %74 : vector<16x128xf32>
    %c1_i32_42 = arith.constant 1 : i32
    %76 = arith.cmpi sge, %c2_i32, %c1_i32_42 : i32
    %c9_i32_43 = arith.constant 9 : i32
    %77 = arith.cmpi slt, %c2_i32, %c9_i32_43 : i32
    %78 = arith.andi %76, %77 : i1
    %79 = arith.select %78, %75, %56 : vector<16x128xf32>
    %c3_i32 = arith.constant 3 : i32
    %c7_i32_44 = arith.constant 7 : i32
    %80 = arith.minsi %c3_i32, %c7_i32_44 : i32
    %81 = arith.index_cast %80 : i32 to index
    %c0_45 = arith.constant 0 : index
    %c0_46 = arith.constant 0 : index
    %82 = vector.load %arg1[%81, %c0_45, %c0_46] : memref<8x16x128xbf16, #tpu.memory_space<vmem>>, vector<1x16x128xbf16>
    %83 = vector.shape_cast %82 : vector<1x16x128xbf16> to vector<16x128xbf16>
    %84 = arith.extf %83 : vector<16x128xbf16> to vector<16x128xf32>
    %85 = arith.truncf %68 : vector<16x128xf32> to vector<16x128xbf16>
    %c0_47 = arith.constant 0 : index
    %c0_48 = arith.constant 0 : index
    %86 = vector.load %arg2[%c0_47, %c0_48] : memref<128x128xbf16, #tpu.memory_space<vmem>>, vector<128x128xbf16>
    %cst_49 = arith.constant dense<0.000000e+00> : vector<16x128xf32>
    %87 = tpu.matmul %85, %86, %cst_49 {dimension_numbers = #tpu.dot_dimension_numbers<[1], [0], [0], [1], [0, 0, 1, 1], [], []>} : vector<16x128xbf16>, vector<128x128xbf16>, vector<16x128xf32> -> vector<16x128xf32>
    %88 = arith.addf %84, %87 : vector<16x128xf32>
    %89 = math.tanh %88 : vector<16x128xf32>
    %c8_i32_50 = arith.constant 8 : i32
    %90 = arith.cmpi slt, %c3_i32, %c8_i32_50 : i32
    %91 = arith.select %90, %89, %68 : vector<16x128xf32>
    %92 = tpu.concatenate %68, %79 in 1 : vector<16x128xf32>, vector<16x128xf32> -> vector<16x256xf32>
    %93 = arith.truncf %92 : vector<16x256xf32> to vector<16x256xbf16>
    %c0_51 = arith.constant 0 : index
    %c0_52 = arith.constant 0 : index
    %c0_53 = arith.constant 0 : index
    %94 = vector.load %arg3[%c0_51, %c0_52, %c0_53] : memref<1x256x128xbf16, #tpu.memory_space<vmem>>, vector<1x256x128xbf16>
    %95 = vector.shape_cast %94 : vector<1x256x128xbf16> to vector<256x128xbf16>
    %cst_54 = arith.constant dense<0.000000e+00> : vector<16x128xf32>
    %96 = tpu.matmul %93, %95, %cst_54 {dimension_numbers = #tpu.dot_dimension_numbers<[1], [0], [0], [1], [0, 0, 1, 1], [], []>} : vector<16x256xbf16>, vector<256x128xbf16>, vector<16x128xf32> -> vector<16x128xf32>
    %97 = arith.addf %96, %10 : vector<16x128xf32>
    %98 = math.tanh %97 : vector<16x128xf32>
    %c1_i32_55 = arith.constant 1 : i32
    %99 = arith.cmpi sge, %c3_i32, %c1_i32_55 : i32
    %c9_i32_56 = arith.constant 9 : i32
    %100 = arith.cmpi slt, %c3_i32, %c9_i32_56 : i32
    %101 = arith.andi %99, %100 : i1
    %102 = arith.select %101, %98, %79 : vector<16x128xf32>
    %c4_i32 = arith.constant 4 : i32
    %c7_i32_57 = arith.constant 7 : i32
    %103 = arith.minsi %c4_i32, %c7_i32_57 : i32
    %104 = arith.index_cast %103 : i32 to index
    %c0_58 = arith.constant 0 : index
    %c0_59 = arith.constant 0 : index
    %105 = vector.load %arg1[%104, %c0_58, %c0_59] : memref<8x16x128xbf16, #tpu.memory_space<vmem>>, vector<1x16x128xbf16>
    %106 = vector.shape_cast %105 : vector<1x16x128xbf16> to vector<16x128xbf16>
    %107 = arith.extf %106 : vector<16x128xbf16> to vector<16x128xf32>
    %108 = arith.truncf %91 : vector<16x128xf32> to vector<16x128xbf16>
    %c0_60 = arith.constant 0 : index
    %c0_61 = arith.constant 0 : index
    %109 = vector.load %arg2[%c0_60, %c0_61] : memref<128x128xbf16, #tpu.memory_space<vmem>>, vector<128x128xbf16>
    %cst_62 = arith.constant dense<0.000000e+00> : vector<16x128xf32>
    %110 = tpu.matmul %108, %109, %cst_62 {dimension_numbers = #tpu.dot_dimension_numbers<[1], [0], [0], [1], [0, 0, 1, 1], [], []>} : vector<16x128xbf16>, vector<128x128xbf16>, vector<16x128xf32> -> vector<16x128xf32>
    %111 = arith.addf %107, %110 : vector<16x128xf32>
    %112 = math.tanh %111 : vector<16x128xf32>
    %c8_i32_63 = arith.constant 8 : i32
    %113 = arith.cmpi slt, %c4_i32, %c8_i32_63 : i32
    %114 = arith.select %113, %112, %91 : vector<16x128xf32>
    %115 = tpu.concatenate %91, %102 in 1 : vector<16x128xf32>, vector<16x128xf32> -> vector<16x256xf32>
    %116 = arith.truncf %115 : vector<16x256xf32> to vector<16x256xbf16>
    %c0_64 = arith.constant 0 : index
    %c0_65 = arith.constant 0 : index
    %c0_66 = arith.constant 0 : index
    %117 = vector.load %arg3[%c0_64, %c0_65, %c0_66] : memref<1x256x128xbf16, #tpu.memory_space<vmem>>, vector<1x256x128xbf16>
    %118 = vector.shape_cast %117 : vector<1x256x128xbf16> to vector<256x128xbf16>
    %cst_67 = arith.constant dense<0.000000e+00> : vector<16x128xf32>
    %119 = tpu.matmul %116, %118, %cst_67 {dimension_numbers = #tpu.dot_dimension_numbers<[1], [0], [0], [1], [0, 0, 1, 1], [], []>} : vector<16x256xbf16>, vector<256x128xbf16>, vector<16x128xf32> -> vector<16x128xf32>
    %120 = arith.addf %119, %10 : vector<16x128xf32>
    %121 = math.tanh %120 : vector<16x128xf32>
    %c1_i32_68 = arith.constant 1 : i32
    %122 = arith.cmpi sge, %c4_i32, %c1_i32_68 : i32
    %c9_i32_69 = arith.constant 9 : i32
    %123 = arith.cmpi slt, %c4_i32, %c9_i32_69 : i32
    %124 = arith.andi %122, %123 : i1
    %125 = arith.select %124, %121, %102 : vector<16x128xf32>
    %c5_i32 = arith.constant 5 : i32
    %c7_i32_70 = arith.constant 7 : i32
    %126 = arith.minsi %c5_i32, %c7_i32_70 : i32
    %127 = arith.index_cast %126 : i32 to index
    %c0_71 = arith.constant 0 : index
    %c0_72 = arith.constant 0 : index
    %128 = vector.load %arg1[%127, %c0_71, %c0_72] : memref<8x16x128xbf16, #tpu.memory_space<vmem>>, vector<1x16x128xbf16>
    %129 = vector.shape_cast %128 : vector<1x16x128xbf16> to vector<16x128xbf16>
    %130 = arith.extf %129 : vector<16x128xbf16> to vector<16x128xf32>
    %131 = arith.truncf %114 : vector<16x128xf32> to vector<16x128xbf16>
    %c0_73 = arith.constant 0 : index
    %c0_74 = arith.constant 0 : index
    %132 = vector.load %arg2[%c0_73, %c0_74] : memref<128x128xbf16, #tpu.memory_space<vmem>>, vector<128x128xbf16>
    %cst_75 = arith.constant dense<0.000000e+00> : vector<16x128xf32>
    %133 = tpu.matmul %131, %132, %cst_75 {dimension_numbers = #tpu.dot_dimension_numbers<[1], [0], [0], [1], [0, 0, 1, 1], [], []>} : vector<16x128xbf16>, vector<128x128xbf16>, vector<16x128xf32> -> vector<16x128xf32>
    %134 = arith.addf %130, %133 : vector<16x128xf32>
    %135 = math.tanh %134 : vector<16x128xf32>
    %c8_i32_76 = arith.constant 8 : i32
    %136 = arith.cmpi slt, %c5_i32, %c8_i32_76 : i32
    %137 = arith.select %136, %135, %114 : vector<16x128xf32>
    %138 = tpu.concatenate %114, %125 in 1 : vector<16x128xf32>, vector<16x128xf32> -> vector<16x256xf32>
    %139 = arith.truncf %138 : vector<16x256xf32> to vector<16x256xbf16>
    %c0_77 = arith.constant 0 : index
    %c0_78 = arith.constant 0 : index
    %c0_79 = arith.constant 0 : index
    %140 = vector.load %arg3[%c0_77, %c0_78, %c0_79] : memref<1x256x128xbf16, #tpu.memory_space<vmem>>, vector<1x256x128xbf16>
    %141 = vector.shape_cast %140 : vector<1x256x128xbf16> to vector<256x128xbf16>
    %cst_80 = arith.constant dense<0.000000e+00> : vector<16x128xf32>
    %142 = tpu.matmul %139, %141, %cst_80 {dimension_numbers = #tpu.dot_dimension_numbers<[1], [0], [0], [1], [0, 0, 1, 1], [], []>} : vector<16x256xbf16>, vector<256x128xbf16>, vector<16x128xf32> -> vector<16x128xf32>
    %143 = arith.addf %142, %10 : vector<16x128xf32>
    %144 = math.tanh %143 : vector<16x128xf32>
    %c1_i32_81 = arith.constant 1 : i32
    %145 = arith.cmpi sge, %c5_i32, %c1_i32_81 : i32
    %c9_i32_82 = arith.constant 9 : i32
    %146 = arith.cmpi slt, %c5_i32, %c9_i32_82 : i32
    %147 = arith.andi %145, %146 : i1
    %148 = arith.select %147, %144, %125 : vector<16x128xf32>
    %c6_i32 = arith.constant 6 : i32
    %c7_i32_83 = arith.constant 7 : i32
    %149 = arith.minsi %c6_i32, %c7_i32_83 : i32
    %150 = arith.index_cast %149 : i32 to index
    %c0_84 = arith.constant 0 : index
    %c0_85 = arith.constant 0 : index
    %151 = vector.load %arg1[%150, %c0_84, %c0_85] : memref<8x16x128xbf16, #tpu.memory_space<vmem>>, vector<1x16x128xbf16>
    %152 = vector.shape_cast %151 : vector<1x16x128xbf16> to vector<16x128xbf16>
    %153 = arith.extf %152 : vector<16x128xbf16> to vector<16x128xf32>
    %154 = arith.truncf %137 : vector<16x128xf32> to vector<16x128xbf16>
    %c0_86 = arith.constant 0 : index
    %c0_87 = arith.constant 0 : index
    %155 = vector.load %arg2[%c0_86, %c0_87] : memref<128x128xbf16, #tpu.memory_space<vmem>>, vector<128x128xbf16>
    %cst_88 = arith.constant dense<0.000000e+00> : vector<16x128xf32>
    %156 = tpu.matmul %154, %155, %cst_88 {dimension_numbers = #tpu.dot_dimension_numbers<[1], [0], [0], [1], [0, 0, 1, 1], [], []>} : vector<16x128xbf16>, vector<128x128xbf16>, vector<16x128xf32> -> vector<16x128xf32>
    %157 = arith.addf %153, %156 : vector<16x128xf32>
    %158 = math.tanh %157 : vector<16x128xf32>
    %c8_i32_89 = arith.constant 8 : i32
    %159 = arith.cmpi slt, %c6_i32, %c8_i32_89 : i32
    %160 = arith.select %159, %158, %137 : vector<16x128xf32>
    %161 = tpu.concatenate %137, %148 in 1 : vector<16x128xf32>, vector<16x128xf32> -> vector<16x256xf32>
    %162 = arith.truncf %161 : vector<16x256xf32> to vector<16x256xbf16>
    %c0_90 = arith.constant 0 : index
    %c0_91 = arith.constant 0 : index
    %c0_92 = arith.constant 0 : index
    %163 = vector.load %arg3[%c0_90, %c0_91, %c0_92] : memref<1x256x128xbf16, #tpu.memory_space<vmem>>, vector<1x256x128xbf16>
    %164 = vector.shape_cast %163 : vector<1x256x128xbf16> to vector<256x128xbf16>
    %cst_93 = arith.constant dense<0.000000e+00> : vector<16x128xf32>
    %165 = tpu.matmul %162, %164, %cst_93 {dimension_numbers = #tpu.dot_dimension_numbers<[1], [0], [0], [1], [0, 0, 1, 1], [], []>} : vector<16x256xbf16>, vector<256x128xbf16>, vector<16x128xf32> -> vector<16x128xf32>
    %166 = arith.addf %165, %10 : vector<16x128xf32>
    %167 = math.tanh %166 : vector<16x128xf32>
    %c1_i32_94 = arith.constant 1 : i32
    %168 = arith.cmpi sge, %c6_i32, %c1_i32_94 : i32
    %c9_i32_95 = arith.constant 9 : i32
    %169 = arith.cmpi slt, %c6_i32, %c9_i32_95 : i32
    %170 = arith.andi %168, %169 : i1
    %171 = arith.select %170, %167, %148 : vector<16x128xf32>
    %c7_i32_96 = arith.constant 7 : i32
    %c7_i32_97 = arith.constant 7 : i32
    %172 = arith.minsi %c7_i32_96, %c7_i32_97 : i32
    %173 = arith.index_cast %172 : i32 to index
    %c0_98 = arith.constant 0 : index
    %c0_99 = arith.constant 0 : index
    %174 = vector.load %arg1[%173, %c0_98, %c0_99] : memref<8x16x128xbf16, #tpu.memory_space<vmem>>, vector<1x16x128xbf16>
    %175 = vector.shape_cast %174 : vector<1x16x128xbf16> to vector<16x128xbf16>
    %176 = arith.extf %175 : vector<16x128xbf16> to vector<16x128xf32>
    %177 = arith.truncf %160 : vector<16x128xf32> to vector<16x128xbf16>
    %c0_100 = arith.constant 0 : index
    %c0_101 = arith.constant 0 : index
    %178 = vector.load %arg2[%c0_100, %c0_101] : memref<128x128xbf16, #tpu.memory_space<vmem>>, vector<128x128xbf16>
    %cst_102 = arith.constant dense<0.000000e+00> : vector<16x128xf32>
    %179 = tpu.matmul %177, %178, %cst_102 {dimension_numbers = #tpu.dot_dimension_numbers<[1], [0], [0], [1], [0, 0, 1, 1], [], []>} : vector<16x128xbf16>, vector<128x128xbf16>, vector<16x128xf32> -> vector<16x128xf32>
    %180 = arith.addf %176, %179 : vector<16x128xf32>
    %181 = math.tanh %180 : vector<16x128xf32>
    %c8_i32_103 = arith.constant 8 : i32
    %182 = arith.cmpi slt, %c7_i32_96, %c8_i32_103 : i32
    %183 = arith.select %182, %181, %160 : vector<16x128xf32>
    %184 = tpu.concatenate %160, %171 in 1 : vector<16x128xf32>, vector<16x128xf32> -> vector<16x256xf32>
    %185 = arith.truncf %184 : vector<16x256xf32> to vector<16x256xbf16>
    %c0_104 = arith.constant 0 : index
    %c0_105 = arith.constant 0 : index
    %c0_106 = arith.constant 0 : index
    %186 = vector.load %arg3[%c0_104, %c0_105, %c0_106] : memref<1x256x128xbf16, #tpu.memory_space<vmem>>, vector<1x256x128xbf16>
    %187 = vector.shape_cast %186 : vector<1x256x128xbf16> to vector<256x128xbf16>
    %cst_107 = arith.constant dense<0.000000e+00> : vector<16x128xf32>
    %188 = tpu.matmul %185, %187, %cst_107 {dimension_numbers = #tpu.dot_dimension_numbers<[1], [0], [0], [1], [0, 0, 1, 1], [], []>} : vector<16x256xbf16>, vector<256x128xbf16>, vector<16x128xf32> -> vector<16x128xf32>
    %189 = arith.addf %188, %10 : vector<16x128xf32>
    %190 = math.tanh %189 : vector<16x128xf32>
    %c1_i32_108 = arith.constant 1 : i32
    %191 = arith.cmpi sge, %c7_i32_96, %c1_i32_108 : i32
    %c9_i32_109 = arith.constant 9 : i32
    %192 = arith.cmpi slt, %c7_i32_96, %c9_i32_109 : i32
    %193 = arith.andi %191, %192 : i1
    %194 = arith.select %193, %190, %171 : vector<16x128xf32>
    %c8_i32_110 = arith.constant 8 : i32
    %c7_i32_111 = arith.constant 7 : i32
    %195 = arith.minsi %c8_i32_110, %c7_i32_111 : i32
    %196 = arith.index_cast %195 : i32 to index
    %c0_112 = arith.constant 0 : index
    %c0_113 = arith.constant 0 : index
    %197 = vector.load %arg1[%196, %c0_112, %c0_113] : memref<8x16x128xbf16, #tpu.memory_space<vmem>>, vector<1x16x128xbf16>
    %198 = vector.shape_cast %197 : vector<1x16x128xbf16> to vector<16x128xbf16>
    %199 = arith.extf %198 : vector<16x128xbf16> to vector<16x128xf32>
    %200 = arith.truncf %183 : vector<16x128xf32> to vector<16x128xbf16>
    %c0_114 = arith.constant 0 : index
    %c0_115 = arith.constant 0 : index
    %201 = vector.load %arg2[%c0_114, %c0_115] : memref<128x128xbf16, #tpu.memory_space<vmem>>, vector<128x128xbf16>
    %cst_116 = arith.constant dense<0.000000e+00> : vector<16x128xf32>
    %202 = tpu.matmul %200, %201, %cst_116 {dimension_numbers = #tpu.dot_dimension_numbers<[1], [0], [0], [1], [0, 0, 1, 1], [], []>} : vector<16x128xbf16>, vector<128x128xbf16>, vector<16x128xf32> -> vector<16x128xf32>
    %203 = arith.addf %199, %202 : vector<16x128xf32>
    %204 = math.tanh %203 : vector<16x128xf32>
    %c8_i32_117 = arith.constant 8 : i32
    %205 = arith.cmpi slt, %c8_i32_110, %c8_i32_117 : i32
    %206 = arith.select %205, %204, %183 : vector<16x128xf32>
    %207 = tpu.concatenate %183, %194 in 1 : vector<16x128xf32>, vector<16x128xf32> -> vector<16x256xf32>
    %208 = arith.truncf %207 : vector<16x256xf32> to vector<16x256xbf16>
    %c0_118 = arith.constant 0 : index
    %c0_119 = arith.constant 0 : index
    %c0_120 = arith.constant 0 : index
    %209 = vector.load %arg3[%c0_118, %c0_119, %c0_120] : memref<1x256x128xbf16, #tpu.memory_space<vmem>>, vector<1x256x128xbf16>
    %210 = vector.shape_cast %209 : vector<1x256x128xbf16> to vector<256x128xbf16>
    %cst_121 = arith.constant dense<0.000000e+00> : vector<16x128xf32>
    %211 = tpu.matmul %208, %210, %cst_121 {dimension_numbers = #tpu.dot_dimension_numbers<[1], [0], [0], [1], [0, 0, 1, 1], [], []>} : vector<16x256xbf16>, vector<256x128xbf16>, vector<16x128xf32> -> vector<16x128xf32>
    %212 = arith.addf %211, %10 : vector<16x128xf32>
    %213 = math.tanh %212 : vector<16x128xf32>
    %c1_i32_122 = arith.constant 1 : i32
    %214 = arith.cmpi sge, %c8_i32_110, %c1_i32_122 : i32
    %c9_i32_123 = arith.constant 9 : i32
    %215 = arith.cmpi slt, %c8_i32_110, %c9_i32_123 : i32
    %216 = arith.andi %214, %215 : i1
    %217 = arith.select %216, %213, %194 : vector<16x128xf32>
    %c9_i32_124 = arith.constant 9 : i32
    %c0_125 = arith.constant 0 : index
    %c0_126 = arith.constant 0 : index
    %c0_127 = arith.constant 0 : index
    %218 = vector.load %arg8[%c0_125, %c0_126, %c0_127] : memref<2x16x128xf32, #tpu.memory_space<vmem>>, vector<1x16x128xf32>
    %219 = vector.shape_cast %218 : vector<1x16x128xf32> to vector<16x128xf32>
    %220 = vector.shape_cast %206 : vector<16x128xf32> to vector<1x16x128xf32>
    tpu.vector_store %arg8[%c0_125, %c0_126, %c0_127], %220 {strides = array<i32>} : memref<2x16x128xf32, #tpu.memory_space<vmem>>, vector<1x16x128xf32>,
    %c1_128 = arith.constant 1 : index
    %c0_129 = arith.constant 0 : index
    %c0_130 = arith.constant 0 : index
    %221 = vector.load %arg8[%c1_128, %c0_129, %c0_130] : memref<2x16x128xf32, #tpu.memory_space<vmem>>, vector<1x16x128xf32>
    %222 = vector.shape_cast %221 : vector<1x16x128xf32> to vector<16x128xf32>
    %223 = vector.shape_cast %217 : vector<16x128xf32> to vector<1x16x128xf32>
    tpu.vector_store %arg8[%c1_128, %c0_129, %c0_130], %223 {strides = array<i32>} : memref<2x16x128xf32, #tpu.memory_space<vmem>>, vector<1x16x128xf32>,
    %c0_i32_131 = arith.constant 0 : i32
    %224 = arith.cmpi eq, %arg0, %c0_i32_131 : i32
    %225 = arith.extui %224 : i1 to i32
    %c0_i32_132 = arith.constant 0 : i32
    %226 = arith.cmpi ne, %225, %c0_i32_132 : i32
    scf.if %226 {
      %227 = arith.truncf %217 : vector<16x128xf32> to vector<16x128xbf16>
      %c0_133 = arith.constant 0 : index
      %c0_134 = arith.constant 0 : index
      %228 = vector.load %arg5[%c0_133, %c0_134] : memref<128x128xbf16, #tpu.memory_space<vmem>>, vector<128x128xbf16>
      %cst_135 = arith.constant dense<0.000000e+00> : vector<16x128xf32>
      %229 = tpu.matmul %227, %228, %cst_135 {dimension_numbers = #tpu.dot_dimension_numbers<[1], [0], [0], [1], [0, 0, 1, 1], [], []>} : vector<16x128xbf16>, vector<128x128xbf16>, vector<16x128xf32> -> vector<16x128xf32>
      %c0_136 = arith.constant 0 : index
      %c0_137 = arith.constant 0 : index
      %230 = vector.load %arg6[%c0_136, %c0_137] : memref<1x128xf32, #tpu.memory_space<vmem>>, vector<1x128xf32>
      %231 = vector.broadcast %230 : vector<1x128xf32> to vector<16x128xf32>
      %232 = arith.addf %229, %231 : vector<16x128xf32>
      %c0_138 = arith.constant 0 : index
      %c0_139 = arith.constant 0 : index
      %233 = vector.load %arg7[%c0_138, %c0_139] : memref<16x128xf32, #tpu.memory_space<vmem>>, vector<16x128xf32>
      tpu.vector_store %arg7[%c0_138, %c0_139], %232 {strides = array<i32>} : memref<16x128xf32, #tpu.memory_space<vmem>>, vector<16x128xf32>,
    } else {
    }
    return
  }
  func.func @transform_0(%arg0: i32) -> (i32, i32, i32) {
    %c0_i32 = arith.constant 0 : i32
    %c0_i32_0 = arith.constant 0 : i32
    %c0_i32_1 = arith.constant 0 : i32
    return %arg0, %c0_i32, %c0_i32_0 : i32, i32, i32
  }
  func.func @transform_1(%arg0: i32) -> (i32, i32) {
    %c0_i32 = arith.constant 0 : i32
    %c0_i32_0 = arith.constant 0 : i32
    %c0_i32_1 = arith.constant 0 : i32
    return %c0_i32, %c0_i32_0 : i32, i32
  }
  func.func @transform_2(%arg0: i32) -> (i32, i32, i32) {
    %c0_i32 = arith.constant 0 : i32
    %c0_i32_0 = arith.constant 0 : i32
    %c0_i32_1 = arith.constant 0 : i32
    %c0_i32_2 = arith.constant 0 : i32
    return %c0_i32, %c0_i32_0, %c0_i32_1 : i32, i32, i32
  }
  func.func @transform_3(%arg0: i32) -> (i32, i32, i32) {
    %c0_i32 = arith.constant 0 : i32
    %c0_i32_0 = arith.constant 0 : i32
    %c0_i32_1 = arith.constant 0 : i32
    %c0_i32_2 = arith.constant 0 : i32
    return %c0_i32, %c0_i32_0, %c0_i32_1 : i32, i32, i32
  }
  func.func @transform_4(%arg0: i32) -> (i32, i32) {
    %c0_i32 = arith.constant 0 : i32
    %c0_i32_0 = arith.constant 0 : i32
    %c0_i32_1 = arith.constant 0 : i32
    return %c0_i32, %c0_i32_0 : i32, i32
  }
  func.func @transform_5(%arg0: i32) -> (i32, i32) {
    %c0_i32 = arith.constant 0 : i32
    %c0_i32_0 = arith.constant 0 : i32
    %c0_i32_1 = arith.constant 0 : i32
    return %c0_i32, %c0_i32_0 : i32, i32
  }
  func.func @transform_6(%arg0: i32) -> (i32, i32) {
    %c0_i32 = arith.constant 0 : i32
    %c0_i32_0 = arith.constant 0 : i32
    %c0_i32_1 = arith.constant 0 : i32
    return %c0_i32, %c0_i32_0 : i32, i32
  }
}

module attributes {stable_mosaic.version = 11 : i64} {
  func.func @_rnn_kernel(%arg0: i32, %arg1: memref<8x16x128xbf16, #tpu.memory_space<vmem>>, %arg2: memref<128x128xbf16, #tpu.memory_space<vmem>>, %arg3: memref<1x256x128xbf16, #tpu.memory_space<vmem>>, %arg4: memref<1x1x128xf32, #tpu.memory_space<vmem>>, %arg5: memref<128x128xbf16, #tpu.memory_space<vmem>>, %arg6: memref<1x128xf32, #tpu.memory_space<vmem>>, %arg7: memref<16x128xf32, #tpu.memory_space<vmem>>, %arg8: memref<2x16x128xf32, #tpu.memory_space<vmem>>) attributes {dimension_semantics = [#tpu.dimension_semantics<arbitrary>], iteration_bounds = array<i64: 1>, scalar_prefetch = 0 : i64, scratch_operands = 1 : i64, tpu.core_type = #tpu.core_type<tc>, window_params = [{transform_indices = @transform_0, window_bounds = array<i64: 8, 16, 128>}, {pipeline_mode = #tpu.pipeline_mode<synchronous>, transform_indices = @transform_1, window_bounds = array<i64: 128, 128>}, {pipeline_mode = #tpu.pipeline_mode<synchronous>, transform_indices = @transform_2, window_bounds = array<i64: 1, 256, 128>}, {pipeline_mode = #tpu.pipeline_mode<synchronous>, transform_indices = @transform_3, window_bounds = array<i64: 1, 1, 128>}, {pipeline_mode = #tpu.pipeline_mode<synchronous>, transform_indices = @transform_4, window_bounds = array<i64: 128, 128>}, {pipeline_mode = #tpu.pipeline_mode<synchronous>, transform_indices = @transform_5, window_bounds = array<i64: 1, 128>}, {pipeline_mode = #tpu.pipeline_mode<synchronous>, transform_indices = @transform_6, window_bounds = array<i64: 16, 128>}]} {
    %c0_i32 = arith.constant 0 : i32
    %0 = arith.cmpi eq, %arg0, %c0_i32 : i32
    %1 = arith.extui %0 : i1 to i32
    %c0_i32_0 = arith.constant 0 : i32
    %2 = arith.cmpi ne, %1, %c0_i32_0 : i32
    scf.if %2 {
      %cst_133 = arith.constant 0.000000e+00 : f32
      %227 = vector.broadcast %cst_133 : f32 to vector<2x16x128xf32>
      %c0_134 = arith.constant 0 : index
      %c0_135 = arith.constant 0 : index
      %c0_136 = arith.constant 0 : index
      %228 = vector.load %arg8[%c0_134, %c0_135, %c0_136] : memref<2x16x128xf32, #tpu.memory_space<vmem>>, vector<2x16x128xf32>
      tpu.vector_store %arg8[%c0_134, %c0_135, %c0_136], %227 {strides = array<i32>} : memref<2x16x128xf32, #tpu.memory_space<vmem>>, vector<2x16x128xf32>,
    } else {
    }
    %c0 = arith.constant 0 : index
    %c0_1 = arith.constant 0 : index
    %c0_2 = arith.constant 0 : index
    %3 = vector.load %arg8[%c0, %c0_1, %c0_2] : memref<2x16x128xf32, #tpu.memory_space<vmem>>, vector<1x16x128xf32>
    %4 = vector.shape_cast %3 : vector<1x16x128xf32> to vector<16x128xf32>
    %c1 = arith.constant 1 : index
    %c0_3 = arith.constant 0 : index
    %c0_4 = arith.constant 0 : index
    %5 = vector.load %arg8[%c1, %c0_3, %c0_4] : memref<2x16x128xf32, #tpu.memory_space<vmem>>, vector<1x16x128xf32>
    %6 = vector.shape_cast %5 : vector<1x16x128xf32> to vector<16x128xf32>
    %c0_5 = arith.constant 0 : index
    %c0_6 = arith.constant 0 : index
    %c0_7 = arith.constant 0 : index
    %7 = vector.load %arg4[%c0_5, %c0_6, %c0_7] : memref<1x1x128xf32, #tpu.memory_space<vmem>>, vector<1x1x128xf32>
    %8 = vector.shape_cast %7 : vector<1x1x128xf32> to vector<1x128xf32>
    %9 = vector.shape_cast %8 : vector<1x128xf32> to vector<1x128xf32>
    %10 = vector.broadcast %9 : vector<1x128xf32> to vector<16x128xf32>
    %c0_i32_8 = arith.constant 0 : i32
    %c7_i32 = arith.constant 7 : i32
    %11 = arith.minsi %c0_i32_8, %c7_i32 : i32
    %12 = arith.index_cast %11 : i32 to index
    %c0_9 = arith.constant 0 : index
    %c0_10 = arith.constant 0 : index
    %13 = vector.load %arg1[%12, %c0_9, %c0_10] : memref<8x16x128xbf16, #tpu.memory_space<vmem>>, vector<1x16x128xbf16>
    %14 = vector.shape_cast %13 : vector<1x16x128xbf16> to vector<16x128xbf16>
    %15 = arith.extf %14 : vector<16x128xbf16> to vector<16x128xf32>
    %16 = arith.truncf %4 : vector<16x128xf32> to vector<16x128xbf16>
    %c0_11 = arith.constant 0 : index
    %c0_12 = arith.constant 0 : index
    %17 = vector.load %arg2[%c0_11, %c0_12] : memref<128x128xbf16, #tpu.memory_space<vmem>>, vector<128x128xbf16>
    %cst = arith.constant dense<0.000000e+00> : vector<16x128xf32>
    %18 = tpu.matmul %16, %17, %cst {dimension_numbers = #tpu.dot_dimension_numbers<[1], [0], [0], [1], [0, 0, 1, 1], [], []>} : vector<16x128xbf16>, vector<128x128xbf16>, vector<16x128xf32> -> vector<16x128xf32>
    %19 = arith.addf %15, %18 : vector<16x128xf32>
    %20 = math.tanh %19 : vector<16x128xf32>
    %c8_i32 = arith.constant 8 : i32
    %21 = arith.cmpi slt, %c0_i32_8, %c8_i32 : i32
    %22 = arith.select %21, %20, %4 : vector<16x128xf32>
    %23 = tpu.concatenate %4, %6 in 1 : vector<16x128xf32>, vector<16x128xf32> -> vector<16x256xf32>
    %24 = arith.truncf %23 : vector<16x256xf32> to vector<16x256xbf16>
    %c0_13 = arith.constant 0 : index
    %c0_14 = arith.constant 0 : index
    %c0_15 = arith.constant 0 : index
    %25 = vector.load %arg3[%c0_13, %c0_14, %c0_15] : memref<1x256x128xbf16, #tpu.memory_space<vmem>>, vector<1x256x128xbf16>
    %26 = vector.shape_cast %25 : vector<1x256x128xbf16> to vector<256x128xbf16>
    %cst_16 = arith.constant dense<0.000000e+00> : vector<16x128xf32>
    %27 = tpu.matmul %24, %26, %cst_16 {dimension_numbers = #tpu.dot_dimension_numbers<[1], [0], [0], [1], [0, 0, 1, 1], [], []>} : vector<16x256xbf16>, vector<256x128xbf16>, vector<16x128xf32> -> vector<16x128xf32>
    %28 = arith.addf %27, %10 : vector<16x128xf32>
    %29 = math.tanh %28 : vector<16x128xf32>
    %c1_i32 = arith.constant 1 : i32
    %30 = arith.cmpi sge, %c0_i32_8, %c1_i32 : i32
    %c9_i32 = arith.constant 9 : i32
    %31 = arith.cmpi slt, %c0_i32_8, %c9_i32 : i32
    %32 = arith.andi %30, %31 : i1
    %33 = arith.select %32, %29, %6 : vector<16x128xf32>
    %c1_i32_17 = arith.constant 1 : i32
    %c7_i32_18 = arith.constant 7 : i32
    %34 = arith.minsi %c1_i32_17, %c7_i32_18 : i32
    %35 = arith.index_cast %34 : i32 to index
    %c0_19 = arith.constant 0 : index
    %c0_20 = arith.constant 0 : index
    %36 = vector.load %arg1[%35, %c0_19, %c0_20] : memref<8x16x128xbf16, #tpu.memory_space<vmem>>, vector<1x16x128xbf16>
    %37 = vector.shape_cast %36 : vector<1x16x128xbf16> to vector<16x128xbf16>
    %38 = arith.extf %37 : vector<16x128xbf16> to vector<16x128xf32>
    %39 = arith.truncf %22 : vector<16x128xf32> to vector<16x128xbf16>
    %c0_21 = arith.constant 0 : index
    %c0_22 = arith.constant 0 : index
    %40 = vector.load %arg2[%c0_21, %c0_22] : memref<128x128xbf16, #tpu.memory_space<vmem>>, vector<128x128xbf16>
    %cst_23 = arith.constant dense<0.000000e+00> : vector<16x128xf32>
    %41 = tpu.matmul %39, %40, %cst_23 {dimension_numbers = #tpu.dot_dimension_numbers<[1], [0], [0], [1], [0, 0, 1, 1], [], []>} : vector<16x128xbf16>, vector<128x128xbf16>, vector<16x128xf32> -> vector<16x128xf32>
    %42 = arith.addf %38, %41 : vector<16x128xf32>
    %43 = math.tanh %42 : vector<16x128xf32>
    %c8_i32_24 = arith.constant 8 : i32
    %44 = arith.cmpi slt, %c1_i32_17, %c8_i32_24 : i32
    %45 = arith.select %44, %43, %22 : vector<16x128xf32>
    %46 = tpu.concatenate %22, %33 in 1 : vector<16x128xf32>, vector<16x128xf32> -> vector<16x256xf32>
    %47 = arith.truncf %46 : vector<16x256xf32> to vector<16x256xbf16>
    %c0_25 = arith.constant 0 : index
    %c0_26 = arith.constant 0 : index
    %c0_27 = arith.constant 0 : index
    %48 = vector.load %arg3[%c0_25, %c0_26, %c0_27] : memref<1x256x128xbf16, #tpu.memory_space<vmem>>, vector<1x256x128xbf16>
    %49 = vector.shape_cast %48 : vector<1x256x128xbf16> to vector<256x128xbf16>
    %cst_28 = arith.constant dense<0.000000e+00> : vector<16x128xf32>
    %50 = tpu.matmul %47, %49, %cst_28 {dimension_numbers = #tpu.dot_dimension_numbers<[1], [0], [0], [1], [0, 0, 1, 1], [], []>} : vector<16x256xbf16>, vector<256x128xbf16>, vector<16x128xf32> -> vector<16x128xf32>
    %51 = arith.addf %50, %10 : vector<16x128xf32>
    %52 = math.tanh %51 : vector<16x128xf32>
    %c1_i32_29 = arith.constant 1 : i32
    %53 = arith.cmpi sge, %c1_i32_17, %c1_i32_29 : i32
    %c9_i32_30 = arith.constant 9 : i32
    %54 = arith.cmpi slt, %c1_i32_17, %c9_i32_30 : i32
    %55 = arith.andi %53, %54 : i1
    %56 = arith.select %55, %52, %33 : vector<16x128xf32>
    %c2_i32 = arith.constant 2 : i32
    %c7_i32_31 = arith.constant 7 : i32
    %57 = arith.minsi %c2_i32, %c7_i32_31 : i32
    %58 = arith.index_cast %57 : i32 to index
    %c0_32 = arith.constant 0 : index
    %c0_33 = arith.constant 0 : index
    %59 = vector.load %arg1[%58, %c0_32, %c0_33] : memref<8x16x128xbf16, #tpu.memory_space<vmem>>, vector<1x16x128xbf16>
    %60 = vector.shape_cast %59 : vector<1x16x128xbf16> to vector<16x128xbf16>
    %61 = arith.extf %60 : vector<16x128xbf16> to vector<16x128xf32>
    %62 = arith.truncf %45 : vector<16x128xf32> to vector<16x128xbf16>
    %c0_34 = arith.constant 0 : index
    %c0_35 = arith.constant 0 : index
    %63 = vector.load %arg2[%c0_34, %c0_35] : memref<128x128xbf16, #tpu.memory_space<vmem>>, vector<128x128xbf16>
    %cst_36 = arith.constant dense<0.000000e+00> : vector<16x128xf32>
    %64 = tpu.matmul %62, %63, %cst_36 {dimension_numbers = #tpu.dot_dimension_numbers<[1], [0], [0], [1], [0, 0, 1, 1], [], []>} : vector<16x128xbf16>, vector<128x128xbf16>, vector<16x128xf32> -> vector<16x128xf32>
    %65 = arith.addf %61, %64 : vector<16x128xf32>
    %66 = math.tanh %65 : vector<16x128xf32>
    %c8_i32_37 = arith.constant 8 : i32
    %67 = arith.cmpi slt, %c2_i32, %c8_i32_37 : i32
    %68 = arith.select %67, %66, %45 : vector<16x128xf32>
    %69 = tpu.concatenate %45, %56 in 1 : vector<16x128xf32>, vector<16x128xf32> -> vector<16x256xf32>
    %70 = arith.truncf %69 : vector<16x256xf32> to vector<16x256xbf16>
    %c0_38 = arith.constant 0 : index
    %c0_39 = arith.constant 0 : index
    %c0_40 = arith.constant 0 : index
    %71 = vector.load %arg3[%c0_38, %c0_39, %c0_40] : memref<1x256x128xbf16, #tpu.memory_space<vmem>>, vector<1x256x128xbf16>
    %72 = vector.shape_cast %71 : vector<1x256x128xbf16> to vector<256x128xbf16>
    %cst_41 = arith.constant dense<0.000000e+00> : vector<16x128xf32>
    %73 = tpu.matmul %70, %72, %cst_41 {dimension_numbers = #tpu.dot_dimension_numbers<[1], [0], [0], [1], [0, 0, 1, 1], [], []>} : vector<16x256xbf16>, vector<256x128xbf16>, vector<16x128xf32> -> vector<16x128xf32>
    %74 = arith.addf %73, %10 : vector<16x128xf32>
    %75 = math.tanh %74 : vector<16x128xf32>
    %c1_i32_42 = arith.constant 1 : i32
    %76 = arith.cmpi sge, %c2_i32, %c1_i32_42 : i32
    %c9_i32_43 = arith.constant 9 : i32
    %77 = arith.cmpi slt, %c2_i32, %c9_i32_43 : i32
    %78 = arith.andi %76, %77 : i1
    %79 = arith.select %78, %75, %56 : vector<16x128xf32>
    %c3_i32 = arith.constant 3 : i32
    %c7_i32_44 = arith.constant 7 : i32
    %80 = arith.minsi %c3_i32, %c7_i32_44 : i32
    %81 = arith.index_cast %80 : i32 to index
    %c0_45 = arith.constant 0 : index
    %c0_46 = arith.constant 0 : index
    %82 = vector.load %arg1[%81, %c0_45, %c0_46] : memref<8x16x128xbf16, #tpu.memory_space<vmem>>, vector<1x16x128xbf16>
    %83 = vector.shape_cast %82 : vector<1x16x128xbf16> to vector<16x128xbf16>
    %84 = arith.extf %83 : vector<16x128xbf16> to vector<16x128xf32>
    %85 = arith.truncf %68 : vector<16x128xf32> to vector<16x128xbf16>
    %c0_47 = arith.constant 0 : index
    %c0_48 = arith.constant 0 : index
    %86 = vector.load %arg2[%c0_47, %c0_48] : memref<128x128xbf16, #tpu.memory_space<vmem>>, vector<128x128xbf16>
    %cst_49 = arith.constant dense<0.000000e+00> : vector<16x128xf32>
    %87 = tpu.matmul %85, %86, %cst_49 {dimension_numbers = #tpu.dot_dimension_numbers<[1], [0], [0], [1], [0, 0, 1, 1], [], []>} : vector<16x128xbf16>, vector<128x128xbf16>, vector<16x128xf32> -> vector<16x128xf32>
    %88 = arith.addf %84, %87 : vector<16x128xf32>
    %89 = math.tanh %88 : vector<16x128xf32>
    %c8_i32_50 = arith.constant 8 : i32
    %90 = arith.cmpi slt, %c3_i32, %c8_i32_50 : i32
    %91 = arith.select %90, %89, %68 : vector<16x128xf32>
    %92 = tpu.concatenate %68, %79 in 1 : vector<16x128xf32>, vector<16x128xf32> -> vector<16x256xf32>
    %93 = arith.truncf %92 : vector<16x256xf32> to vector<16x256xbf16>
    %c0_51 = arith.constant 0 : index
    %c0_52 = arith.constant 0 : index
    %c0_53 = arith.constant 0 : index
    %94 = vector.load %arg3[%c0_51, %c0_52, %c0_53] : memref<1x256x128xbf16, #tpu.memory_space<vmem>>, vector<1x256x128xbf16>
    %95 = vector.shape_cast %94 : vector<1x256x128xbf16> to vector<256x128xbf16>
    %cst_54 = arith.constant dense<0.000000e+00> : vector<16x128xf32>
    %96 = tpu.matmul %93, %95, %cst_54 {dimension_numbers = #tpu.dot_dimension_numbers<[1], [0], [0], [1], [0, 0, 1, 1], [], []>} : vector<16x256xbf16>, vector<256x128xbf16>, vector<16x128xf32> -> vector<16x128xf32>
    %97 = arith.addf %96, %10 : vector<16x128xf32>
    %98 = math.tanh %97 : vector<16x128xf32>
    %c1_i32_55 = arith.constant 1 : i32
    %99 = arith.cmpi sge, %c3_i32, %c1_i32_55 : i32
    %c9_i32_56 = arith.constant 9 : i32
    %100 = arith.cmpi slt, %c3_i32, %c9_i32_56 : i32
    %101 = arith.andi %99, %100 : i1
    %102 = arith.select %101, %98, %79 : vector<16x128xf32>
    %c4_i32 = arith.constant 4 : i32
    %c7_i32_57 = arith.constant 7 : i32
    %103 = arith.minsi %c4_i32, %c7_i32_57 : i32
    %104 = arith.index_cast %103 : i32 to index
    %c0_58 = arith.constant 0 : index
    %c0_59 = arith.constant 0 : index
    %105 = vector.load %arg1[%104, %c0_58, %c0_59] : memref<8x16x128xbf16, #tpu.memory_space<vmem>>, vector<1x16x128xbf16>
    %106 = vector.shape_cast %105 : vector<1x16x128xbf16> to vector<16x128xbf16>
    %107 = arith.extf %106 : vector<16x128xbf16> to vector<16x128xf32>
    %108 = arith.truncf %91 : vector<16x128xf32> to vector<16x128xbf16>
    %c0_60 = arith.constant 0 : index
    %c0_61 = arith.constant 0 : index
    %109 = vector.load %arg2[%c0_60, %c0_61] : memref<128x128xbf16, #tpu.memory_space<vmem>>, vector<128x128xbf16>
    %cst_62 = arith.constant dense<0.000000e+00> : vector<16x128xf32>
    %110 = tpu.matmul %108, %109, %cst_62 {dimension_numbers = #tpu.dot_dimension_numbers<[1], [0], [0], [1], [0, 0, 1, 1], [], []>} : vector<16x128xbf16>, vector<128x128xbf16>, vector<16x128xf32> -> vector<16x128xf32>
    %111 = arith.addf %107, %110 : vector<16x128xf32>
    %112 = math.tanh %111 : vector<16x128xf32>
    %c8_i32_63 = arith.constant 8 : i32
    %113 = arith.cmpi slt, %c4_i32, %c8_i32_63 : i32
    %114 = arith.select %113, %112, %91 : vector<16x128xf32>
    %115 = tpu.concatenate %91, %102 in 1 : vector<16x128xf32>, vector<16x128xf32> -> vector<16x256xf32>
    %116 = arith.truncf %115 : vector<16x256xf32> to vector<16x256xbf16>
    %c0_64 = arith.constant 0 : index
    %c0_65 = arith.constant 0 : index
    %c0_66 = arith.constant 0 : index
    %117 = vector.load %arg3[%c0_64, %c0_65, %c0_66] : memref<1x256x128xbf16, #tpu.memory_space<vmem>>, vector<1x256x128xbf16>
    %118 = vector.shape_cast %117 : vector<1x256x128xbf16> to vector<256x128xbf16>
    %cst_67 = arith.constant dense<0.000000e+00> : vector<16x128xf32>
    %119 = tpu.matmul %116, %118, %cst_67 {dimension_numbers = #tpu.dot_dimension_numbers<[1], [0], [0], [1], [0, 0, 1, 1], [], []>} : vector<16x256xbf16>, vector<256x128xbf16>, vector<16x128xf32> -> vector<16x128xf32>
    %120 = arith.addf %119, %10 : vector<16x128xf32>
    %121 = math.tanh %120 : vector<16x128xf32>
    %c1_i32_68 = arith.constant 1 : i32
    %122 = arith.cmpi sge, %c4_i32, %c1_i32_68 : i32
    %c9_i32_69 = arith.constant 9 : i32
    %123 = arith.cmpi slt, %c4_i32, %c9_i32_69 : i32
    %124 = arith.andi %122, %123 : i1
    %125 = arith.select %124, %121, %102 : vector<16x128xf32>
    %c5_i32 = arith.constant 5 : i32
    %c7_i32_70 = arith.constant 7 : i32
    %126 = arith.minsi %c5_i32, %c7_i32_70 : i32
    %127 = arith.index_cast %126 : i32 to index
    %c0_71 = arith.constant 0 : index
    %c0_72 = arith.constant 0 : index
    %128 = vector.load %arg1[%127, %c0_71, %c0_72] : memref<8x16x128xbf16, #tpu.memory_space<vmem>>, vector<1x16x128xbf16>
    %129 = vector.shape_cast %128 : vector<1x16x128xbf16> to vector<16x128xbf16>
    %130 = arith.extf %129 : vector<16x128xbf16> to vector<16x128xf32>
    %131 = arith.truncf %114 : vector<16x128xf32> to vector<16x128xbf16>
    %c0_73 = arith.constant 0 : index
    %c0_74 = arith.constant 0 : index
    %132 = vector.load %arg2[%c0_73, %c0_74] : memref<128x128xbf16, #tpu.memory_space<vmem>>, vector<128x128xbf16>
    %cst_75 = arith.constant dense<0.000000e+00> : vector<16x128xf32>
    %133 = tpu.matmul %131, %132, %cst_75 {dimension_numbers = #tpu.dot_dimension_numbers<[1], [0], [0], [1], [0, 0, 1, 1], [], []>} : vector<16x128xbf16>, vector<128x128xbf16>, vector<16x128xf32> -> vector<16x128xf32>
    %134 = arith.addf %130, %133 : vector<16x128xf32>
    %135 = math.tanh %134 : vector<16x128xf32>
    %c8_i32_76 = arith.constant 8 : i32
    %136 = arith.cmpi slt, %c5_i32, %c8_i32_76 : i32
    %137 = arith.select %136, %135, %114 : vector<16x128xf32>
    %138 = tpu.concatenate %114, %125 in 1 : vector<16x128xf32>, vector<16x128xf32> -> vector<16x256xf32>
    %139 = arith.truncf %138 : vector<16x256xf32> to vector<16x256xbf16>
    %c0_77 = arith.constant 0 : index
    %c0_78 = arith.constant 0 : index
    %c0_79 = arith.constant 0 : index
    %140 = vector.load %arg3[%c0_77, %c0_78, %c0_79] : memref<1x256x128xbf16, #tpu.memory_space<vmem>>, vector<1x256x128xbf16>
    %141 = vector.shape_cast %140 : vector<1x256x128xbf16> to vector<256x128xbf16>
    %cst_80 = arith.constant dense<0.000000e+00> : vector<16x128xf32>
    %142 = tpu.matmul %139, %141, %cst_80 {dimension_numbers = #tpu.dot_dimension_numbers<[1], [0], [0], [1], [0, 0, 1, 1], [], []>} : vector<16x256xbf16>, vector<256x128xbf16>, vector<16x128xf32> -> vector<16x128xf32>
    %143 = arith.addf %142, %10 : vector<16x128xf32>
    %144 = math.tanh %143 : vector<16x128xf32>
    %c1_i32_81 = arith.constant 1 : i32
    %145 = arith.cmpi sge, %c5_i32, %c1_i32_81 : i32
    %c9_i32_82 = arith.constant 9 : i32
    %146 = arith.cmpi slt, %c5_i32, %c9_i32_82 : i32
    %147 = arith.andi %145, %146 : i1
    %148 = arith.select %147, %144, %125 : vector<16x128xf32>
    %c6_i32 = arith.constant 6 : i32
    %c7_i32_83 = arith.constant 7 : i32
    %149 = arith.minsi %c6_i32, %c7_i32_83 : i32
    %150 = arith.index_cast %149 : i32 to index
    %c0_84 = arith.constant 0 : index
    %c0_85 = arith.constant 0 : index
    %151 = vector.load %arg1[%150, %c0_84, %c0_85] : memref<8x16x128xbf16, #tpu.memory_space<vmem>>, vector<1x16x128xbf16>
    %152 = vector.shape_cast %151 : vector<1x16x128xbf16> to vector<16x128xbf16>
    %153 = arith.extf %152 : vector<16x128xbf16> to vector<16x128xf32>
    %154 = arith.truncf %137 : vector<16x128xf32> to vector<16x128xbf16>
    %c0_86 = arith.constant 0 : index
    %c0_87 = arith.constant 0 : index
    %155 = vector.load %arg2[%c0_86, %c0_87] : memref<128x128xbf16, #tpu.memory_space<vmem>>, vector<128x128xbf16>
    %cst_88 = arith.constant dense<0.000000e+00> : vector<16x128xf32>
    %156 = tpu.matmul %154, %155, %cst_88 {dimension_numbers = #tpu.dot_dimension_numbers<[1], [0], [0], [1], [0, 0, 1, 1], [], []>} : vector<16x128xbf16>, vector<128x128xbf16>, vector<16x128xf32> -> vector<16x128xf32>
    %157 = arith.addf %153, %156 : vector<16x128xf32>
    %158 = math.tanh %157 : vector<16x128xf32>
    %c8_i32_89 = arith.constant 8 : i32
    %159 = arith.cmpi slt, %c6_i32, %c8_i32_89 : i32
    %160 = arith.select %159, %158, %137 : vector<16x128xf32>
    %161 = tpu.concatenate %137, %148 in 1 : vector<16x128xf32>, vector<16x128xf32> -> vector<16x256xf32>
    %162 = arith.truncf %161 : vector<16x256xf32> to vector<16x256xbf16>
    %c0_90 = arith.constant 0 : index
    %c0_91 = arith.constant 0 : index
    %c0_92 = arith.constant 0 : index
    %163 = vector.load %arg3[%c0_90, %c0_91, %c0_92] : memref<1x256x128xbf16, #tpu.memory_space<vmem>>, vector<1x256x128xbf16>
    %164 = vector.shape_cast %163 : vector<1x256x128xbf16> to vector<256x128xbf16>
    %cst_93 = arith.constant dense<0.000000e+00> : vector<16x128xf32>
    %165 = tpu.matmul %162, %164, %cst_93 {dimension_numbers = #tpu.dot_dimension_numbers<[1], [0], [0], [1], [0, 0, 1, 1], [], []>} : vector<16x256xbf16>, vector<256x128xbf16>, vector<16x128xf32> -> vector<16x128xf32>
    %166 = arith.addf %165, %10 : vector<16x128xf32>
    %167 = math.tanh %166 : vector<16x128xf32>
    %c1_i32_94 = arith.constant 1 : i32
    %168 = arith.cmpi sge, %c6_i32, %c1_i32_94 : i32
    %c9_i32_95 = arith.constant 9 : i32
    %169 = arith.cmpi slt, %c6_i32, %c9_i32_95 : i32
    %170 = arith.andi %168, %169 : i1
    %171 = arith.select %170, %167, %148 : vector<16x128xf32>
    %c7_i32_96 = arith.constant 7 : i32
    %c7_i32_97 = arith.constant 7 : i32
    %172 = arith.minsi %c7_i32_96, %c7_i32_97 : i32
    %173 = arith.index_cast %172 : i32 to index
    %c0_98 = arith.constant 0 : index
    %c0_99 = arith.constant 0 : index
    %174 = vector.load %arg1[%173, %c0_98, %c0_99] : memref<8x16x128xbf16, #tpu.memory_space<vmem>>, vector<1x16x128xbf16>
    %175 = vector.shape_cast %174 : vector<1x16x128xbf16> to vector<16x128xbf16>
    %176 = arith.extf %175 : vector<16x128xbf16> to vector<16x128xf32>
    %177 = arith.truncf %160 : vector<16x128xf32> to vector<16x128xbf16>
    %c0_100 = arith.constant 0 : index
    %c0_101 = arith.constant 0 : index
    %178 = vector.load %arg2[%c0_100, %c0_101] : memref<128x128xbf16, #tpu.memory_space<vmem>>, vector<128x128xbf16>
    %cst_102 = arith.constant dense<0.000000e+00> : vector<16x128xf32>
    %179 = tpu.matmul %177, %178, %cst_102 {dimension_numbers = #tpu.dot_dimension_numbers<[1], [0], [0], [1], [0, 0, 1, 1], [], []>} : vector<16x128xbf16>, vector<128x128xbf16>, vector<16x128xf32> -> vector<16x128xf32>
    %180 = arith.addf %176, %179 : vector<16x128xf32>
    %181 = math.tanh %180 : vector<16x128xf32>
    %c8_i32_103 = arith.constant 8 : i32
    %182 = arith.cmpi slt, %c7_i32_96, %c8_i32_103 : i32
    %183 = arith.select %182, %181, %160 : vector<16x128xf32>
    %184 = tpu.concatenate %160, %171 in 1 : vector<16x128xf32>, vector<16x128xf32> -> vector<16x256xf32>
    %185 = arith.truncf %184 : vector<16x256xf32> to vector<16x256xbf16>
    %c0_104 = arith.constant 0 : index
    %c0_105 = arith.constant 0 : index
    %c0_106 = arith.constant 0 : index
    %186 = vector.load %arg3[%c0_104, %c0_105, %c0_106] : memref<1x256x128xbf16, #tpu.memory_space<vmem>>, vector<1x256x128xbf16>
    %187 = vector.shape_cast %186 : vector<1x256x128xbf16> to vector<256x128xbf16>
    %cst_107 = arith.constant dense<0.000000e+00> : vector<16x128xf32>
    %188 = tpu.matmul %185, %187, %cst_107 {dimension_numbers = #tpu.dot_dimension_numbers<[1], [0], [0], [1], [0, 0, 1, 1], [], []>} : vector<16x256xbf16>, vector<256x128xbf16>, vector<16x128xf32> -> vector<16x128xf32>
    %189 = arith.addf %188, %10 : vector<16x128xf32>
    %190 = math.tanh %189 : vector<16x128xf32>
    %c1_i32_108 = arith.constant 1 : i32
    %191 = arith.cmpi sge, %c7_i32_96, %c1_i32_108 : i32
    %c9_i32_109 = arith.constant 9 : i32
    %192 = arith.cmpi slt, %c7_i32_96, %c9_i32_109 : i32
    %193 = arith.andi %191, %192 : i1
    %194 = arith.select %193, %190, %171 : vector<16x128xf32>
    %c8_i32_110 = arith.constant 8 : i32
    %c7_i32_111 = arith.constant 7 : i32
    %195 = arith.minsi %c8_i32_110, %c7_i32_111 : i32
    %196 = arith.index_cast %195 : i32 to index
    %c0_112 = arith.constant 0 : index
    %c0_113 = arith.constant 0 : index
    %197 = vector.load %arg1[%196, %c0_112, %c0_113] : memref<8x16x128xbf16, #tpu.memory_space<vmem>>, vector<1x16x128xbf16>
    %198 = vector.shape_cast %197 : vector<1x16x128xbf16> to vector<16x128xbf16>
    %199 = arith.extf %198 : vector<16x128xbf16> to vector<16x128xf32>
    %200 = arith.truncf %183 : vector<16x128xf32> to vector<16x128xbf16>
    %c0_114 = arith.constant 0 : index
    %c0_115 = arith.constant 0 : index
    %201 = vector.load %arg2[%c0_114, %c0_115] : memref<128x128xbf16, #tpu.memory_space<vmem>>, vector<128x128xbf16>
    %cst_116 = arith.constant dense<0.000000e+00> : vector<16x128xf32>
    %202 = tpu.matmul %200, %201, %cst_116 {dimension_numbers = #tpu.dot_dimension_numbers<[1], [0], [0], [1], [0, 0, 1, 1], [], []>} : vector<16x128xbf16>, vector<128x128xbf16>, vector<16x128xf32> -> vector<16x128xf32>
    %203 = arith.addf %199, %202 : vector<16x128xf32>
    %204 = math.tanh %203 : vector<16x128xf32>
    %c8_i32_117 = arith.constant 8 : i32
    %205 = arith.cmpi slt, %c8_i32_110, %c8_i32_117 : i32
    %206 = arith.select %205, %204, %183 : vector<16x128xf32>
    %207 = tpu.concatenate %183, %194 in 1 : vector<16x128xf32>, vector<16x128xf32> -> vector<16x256xf32>
    %208 = arith.truncf %207 : vector<16x256xf32> to vector<16x256xbf16>
    %c0_118 = arith.constant 0 : index
    %c0_119 = arith.constant 0 : index
    %c0_120 = arith.constant 0 : index
    %209 = vector.load %arg3[%c0_118, %c0_119, %c0_120] : memref<1x256x128xbf16, #tpu.memory_space<vmem>>, vector<1x256x128xbf16>
    %210 = vector.shape_cast %209 : vector<1x256x128xbf16> to vector<256x128xbf16>
    %cst_121 = arith.constant dense<0.000000e+00> : vector<16x128xf32>
    %211 = tpu.matmul %208, %210, %cst_121 {dimension_numbers = #tpu.dot_dimension_numbers<[1], [0], [0], [1], [0, 0, 1, 1], [], []>} : vector<16x256xbf16>, vector<256x128xbf16>, vector<16x128xf32> -> vector<16x128xf32>
    %212 = arith.addf %211, %10 : vector<16x128xf32>
    %213 = math.tanh %212 : vector<16x128xf32>
    %c1_i32_122 = arith.constant 1 : i32
    %214 = arith.cmpi sge, %c8_i32_110, %c1_i32_122 : i32
    %c9_i32_123 = arith.constant 9 : i32
    %215 = arith.cmpi slt, %c8_i32_110, %c9_i32_123 : i32
    %216 = arith.andi %214, %215 : i1
    %217 = arith.select %216, %213, %194 : vector<16x128xf32>
    %c9_i32_124 = arith.constant 9 : i32
    %c0_125 = arith.constant 0 : index
    %c0_126 = arith.constant 0 : index
    %c0_127 = arith.constant 0 : index
    %218 = vector.load %arg8[%c0_125, %c0_126, %c0_127] : memref<2x16x128xf32, #tpu.memory_space<vmem>>, vector<1x16x128xf32>
    %219 = vector.shape_cast %218 : vector<1x16x128xf32> to vector<16x128xf32>
    %220 = vector.shape_cast %206 : vector<16x128xf32> to vector<1x16x128xf32>
    tpu.vector_store %arg8[%c0_125, %c0_126, %c0_127], %220 {strides = array<i32>} : memref<2x16x128xf32, #tpu.memory_space<vmem>>, vector<1x16x128xf32>,
    %c1_128 = arith.constant 1 : index
    %c0_129 = arith.constant 0 : index
    %c0_130 = arith.constant 0 : index
    %221 = vector.load %arg8[%c1_128, %c0_129, %c0_130] : memref<2x16x128xf32, #tpu.memory_space<vmem>>, vector<1x16x128xf32>
    %222 = vector.shape_cast %221 : vector<1x16x128xf32> to vector<16x128xf32>
    %223 = vector.shape_cast %217 : vector<16x128xf32> to vector<1x16x128xf32>
    tpu.vector_store %arg8[%c1_128, %c0_129, %c0_130], %223 {strides = array<i32>} : memref<2x16x128xf32, #tpu.memory_space<vmem>>, vector<1x16x128xf32>,
    %c0_i32_131 = arith.constant 0 : i32
    %224 = arith.cmpi eq, %arg0, %c0_i32_131 : i32
    %225 = arith.extui %224 : i1 to i32
    %c0_i32_132 = arith.constant 0 : i32
    %226 = arith.cmpi ne, %225, %c0_i32_132 : i32
    scf.if %226 {
      %227 = arith.truncf %217 : vector<16x128xf32> to vector<16x128xbf16>
      %c0_133 = arith.constant 0 : index
      %c0_134 = arith.constant 0 : index
      %228 = vector.load %arg5[%c0_133, %c0_134] : memref<128x128xbf16, #tpu.memory_space<vmem>>, vector<128x128xbf16>
      %cst_135 = arith.constant dense<0.000000e+00> : vector<16x128xf32>
      %229 = tpu.matmul %227, %228, %cst_135 {dimension_numbers = #tpu.dot_dimension_numbers<[1], [0], [0], [1], [0, 0, 1, 1], [], []>} : vector<16x128xbf16>, vector<128x128xbf16>, vector<16x128xf32> -> vector<16x128xf32>
      %c0_136 = arith.constant 0 : index
      %c0_137 = arith.constant 0 : index
      %230 = vector.load %arg6[%c0_136, %c0_137] : memref<1x128xf32, #tpu.memory_space<vmem>>, vector<1x128xf32>
      %231 = vector.broadcast %230 : vector<1x128xf32> to vector<16x128xf32>
      %232 = arith.addf %229, %231 : vector<16x128xf32>
      %c0_138 = arith.constant 0 : index
      %c0_139 = arith.constant 0 : index
      %233 = vector.load %arg7[%c0_138, %c0_139] : memref<16x128xf32, #tpu.memory_space<vmem>>, vector<16x128xf32>
      tpu.vector_store %arg7[%c0_138, %c0_139], %232 {strides = array<i32>} : memref<16x128xf32, #tpu.memory_space<vmem>>, vector<16x128xf32>,
    } else {
    }
    return
  }
  func.func @transform_0(%arg0: i32) -> (i32, i32, i32) {
    %c0_i32 = arith.constant 0 : i32
    %c0_i32_0 = arith.constant 0 : i32
    %c0_i32_1 = arith.constant 0 : i32
    return %arg0, %c0_i32, %c0_i32_0 : i32, i32, i32
  }
  func.func @transform_1(%arg0: i32) -> (i32, i32) {
    %c0_i32 = arith.constant 0 : i32
    %c0_i32_0 = arith.constant 0 : i32
    %c0_i32_1 = arith.constant 0 : i32
    return %c0_i32, %c0_i32_0 : i32, i32
  }
  func.func @transform_2(%arg0: i32) -> (i32, i32, i32) {
    %c0_i32 = arith.constant 0 : i32
    %c0_i32_0 = arith.constant 0 : i32
    %c0_i32_1 = arith.constant 0 : i32
    %c0_i32_2 = arith.constant 0 : i32
    return %c0_i32, %c0_i32_0, %c0_i32_1 : i32, i32, i32
  }
  func.func @transform_3(%arg0: i32) -> (i32, i32, i32) {
    %c0_i32 = arith.constant 0 : i32
    %c0_i32_0 = arith.constant 0 : i32
    %c0_i32_1 = arith.constant 0 : i32
    %c0_i32_2 = arith.constant 0 : i32
    return %c0_i32, %c0_i32_0, %c0_i32_1 : i32, i32, i32
  }
  func.func @transform_4(%arg0: i32) -> (i32, i32) {
    %c0_i32 = arith.constant 0 : i32
    %c0_i32_0 = arith.constant 0 : i32
    %c0_i32_1 = arith.constant 0 : i32
    return %c0_i32, %c0_i32_0 : i32, i32
  }
  func.func @transform_5(%arg0: i32) -> (i32, i32) {
    %c0_i32 = arith.constant 0 : i32
    %c0_i32_0 = arith.constant 0 : i32
    %c0_i32_1 = arith.constant 0 : i32
    return %c0_i32, %c0_i32_0 : i32, i32
  }
  func.func @transform_6(%arg0: i32) -> (i32, i32) {
    %c0_i32 = arith.constant 0 : i32
    %c0_i32_0 = arith.constant 0 : i32
    %c0_i32_1 = arith.constant 0 : i32
    return %c0_i32, %c0_i32_0 : i32, i32
  }
}

</mosaic_0001>

<llo_original>
// kernel: tpu_custom_call.1
$region0: #{tpu_custom_call.1}
  #allocation0 [shape = 'u32[]', space=smem, size = 0x4, offset = 0x4, fixed_abs, tag = 'smem constant byte address 0x4 - core index']
  #allocation1 [shape = 'u32[144,128]{1,0:T(1,128)}', space=vmem, size = 0x12000, scoped, tag = 'internal scratch']
  #allocation2 [shape = 'f32[2,16,128]{2,1,0:T(8,128)}', space=vmem, size = 0x4000, scoped, tag = 'scratch operand']
  %s0 = inlined_call_operand.hbm [shape: bf16[8,16,128], index: 0, kind: input, shape index: {}]
  %s1 = inlined_call_operand.hbm [shape: bf16[128,128], index: 1, kind: input, shape index: {}]
  %s2 = inlined_call_operand.hbm [shape: bf16[1,256,128], index: 2, kind: input, shape index: {}]
  %s3 = inlined_call_operand.vmem [shape: f32[1,1,128], index: 3, kind: input, shape index: {}]
  %s4 = inlined_call_operand.hbm [shape: bf16[128,128], index: 4, kind: input, shape index: {}]
  %s5 = inlined_call_operand.vmem [shape: f32[1,128], index: 5, kind: input, shape index: {}]
  %s6 = inlined_call_operand.hbm [shape: f32[16,128], index: 6, kind: output, shape index: {}]
  %s7 = sld [smem:[#allocation0]]
  $region58: #{tpu_custom_call.1} parent=0
    _
  %s9 = ssub.s32 1, %s7
  %s10 = scalar_select 0, %s9, %s7
  $region1: #{tpu_custom_call.1} parent=0
    #allocation3 [shape = 'u8[32768]{0}', space=vmem, size = 0x8000, scoped, tag = 'input window, operand 0, single buffered']
    #allocation4 [shape = 's32[1]{0}', space=sflag, size = 0x4, scoped, tag = 'scoped memory for tpu_custom_call.1']
    #allocation5 [shape = 's32[1]{0}', space=sflag, size = 0x4, scoped, tag = 'scoped memory for tpu_custom_call.1']
    #allocation6 [shape = 'u8[32768]{0}', space=vmem, size = 0x8000, scoped, tag = 'input window, operand 1, single buffered']
    #allocation7 [shape = 's32[1]{0}', space=sflag, size = 0x4, scoped, tag = 'scoped memory for tpu_custom_call.1']
    #allocation8 [shape = 'u8[65536]{0}', space=vmem, size = 0x10000, scoped, tag = 'input window, operand 2, single buffered']
    #allocation9 [shape = 'u8[32768]{0}', space=vmem, size = 0x8000, scoped, tag = 'input window, operand 4, single buffered']
    #allocation10 [shape = 's32[1]{0}', space=sflag, size = 0x4, scoped, tag = 'scoped memory for tpu_custom_call.1']
    #allocation11 [shape = 'u8[8192]{0}', space=vmem, size = 0x2000, scoped, tag = 'output window, operand 0, single buffered']
    %11 = vsyncpa [#allocation4], 0
    %12 = vsyncpa [#allocation7], 0
    %13 = vsyncpa [#allocation10], 0
    %14 = vsyncpa [#allocation5], 0
    // Predicated region
    $region2: #{tpu_custom_call.1} parent=1 // pred_check
      _
    $region3: #{tpu_custom_call.1} parent=1 // pred_check_branch
      %16 = sbr.rel (0) target = $region5
    $region4: #{tpu_custom_call.1} parent=1 // pred_region
      %s18 = ssub.s32 1024, 1024
      %19 = vsyncadd [#allocation4], %s18
      %s20 = sshll.u32 [#allocation3], 4
      %s21 = int_to_ptr.vmem [resolvable:$true] %s20
      %26 = dma.hbm_to_vmem [thread:$0]  %s0, 1024, %s21, [#allocation4], 64, 64, 4
    $region5: #{tpu_custom_call.1} parent=1 // pred_fallthru
      _
    // Predicated region
    $region6: #{tpu_custom_call.1} parent=1 // pred_check
      _
    $region7: #{tpu_custom_call.1} parent=1 // pred_check_branch
      %28 = sbr.rel (0) target = $region9
    $region8: #{tpu_custom_call.1} parent=1 // pred_region
      %s30 = ssub.s32 1024, 1024
      %31 = vsyncadd [#allocation7], %s30
      %s32 = sshll.u32 [#allocation6], 4
      %s33 = int_to_ptr.vmem [resolvable:$true] %s32
      %38 = dma.hbm_to_vmem [thread:$0]  %s1, 1024, %s33, [#allocation7], 64, 64, 4
    $region9: #{tpu_custom_call.1} parent=1 // pred_fallthru
      _
    // Predicated region
    $region10: #{tpu_custom_call.1} parent=1 // pred_check
      _
    $region11: #{tpu_custom_call.1} parent=1 // pred_check_branch
      %40 = sbr.rel (0) target = $region13
    $region12: #{tpu_custom_call.1} parent=1 // pred_region
      %s42 = ssub.s32 2048, 2048
      %43 = vsyncadd [#allocation7], %s42
      %s44 = sshll.u32 [#allocation8], 4
      %s45 = int_to_ptr.vmem [resolvable:$true] %s44
      %50 = dma.hbm_to_vmem [thread:$0]  %s2, 2048, %s45, [#allocation7], 64, 64, 4
    $region13: #{tpu_custom_call.1} parent=1 // pred_fallthru
      _
    // Predicated region
    $region14: #{tpu_custom_call.1} parent=1 // pred_check
      _
    $region15: #{tpu_custom_call.1} parent=1 // pred_check_branch
      %52 = sbr.rel (0) target = $region17
    $region16: #{tpu_custom_call.1} parent=1 // pred_region
      _
    $region17: #{tpu_custom_call.1} parent=1 // pred_fallthru
      _
    // Predicated region
    $region18: #{tpu_custom_call.1} parent=1 // pred_check
      _
    $region19: #{tpu_custom_call.1} parent=1 // pred_check_branch
      %54 = sbr.rel (0) target = $region21
    $region20: #{tpu_custom_call.1} parent=1 // pred_region
      %s56 = ssub.s32 1024, 1024
      %57 = vsyncadd [#allocation10], %s56
      %s58 = sshll.u32 [#allocation9], 4
      %s59 = int_to_ptr.vmem [resolvable:$true] %s58
      %64 = dma.hbm_to_vmem [thread:$0]  %s4, 1024, %s59, [#allocation10], 64, 64, 4
    $region21: #{tpu_custom_call.1} parent=1 // pred_fallthru
      _
    // Predicated region
    $region22: #{tpu_custom_call.1} parent=1 // pred_check
      _
    $region23: #{tpu_custom_call.1} parent=1 // pred_check_branch
      %66 = sbr.rel (0) target = $region25
    $region24: #{tpu_custom_call.1} parent=1 // pred_region
      _
    $region25: #{tpu_custom_call.1} parent=1 // pred_fallthru
      _
    // Predicated region
    $region26: #{tpu_custom_call.1} parent=1 // pred_check
      _
    $region27: #{tpu_custom_call.1} parent=1 // pred_check_branch
      %68 = sbr.rel (0) target = $region29
    $region28: #{tpu_custom_call.1} parent=1 // pred_region
      %69 = dma.done [#allocation4], 1024
    $region29: #{tpu_custom_call.1} parent=1 // pred_fallthru
      _
    // Predicated region
    $region30: #{tpu_custom_call.1} parent=1 // pred_check
      _
    $region31: #{tpu_custom_call.1} parent=1 // pred_check_branch
      %71 = sbr.rel (0) target = $region33
    $region32: #{tpu_custom_call.1} parent=1 // pred_region
      %72 = dma.done [#allocation7], 1024
    $region33: #{tpu_custom_call.1} parent=1 // pred_fallthru
      _
    // Predicated region
    $region34: #{tpu_custom_call.1} parent=1 // pred_check
      _
    $region35: #{tpu_custom_call.1} parent=1 // pred_check_branch
      %74 = sbr.rel (0) target = $region37
    $region36: #{tpu_custom_call.1} parent=1 // pred_region
      %75 = dma.done [#allocation7], 2048
    $region37: #{tpu_custom_call.1} parent=1 // pred_fallthru
      _
    // Predicated region
    $region38: #{tpu_custom_call.1} parent=1 // pred_check
      _
    $region39: #{tpu_custom_call.1} parent=1 // pred_check_branch
      %77 = sbr.rel (0) target = $region41
    $region40: #{tpu_custom_call.1} parent=1 // pred_region
      %78 = dma.done [#allocation10], 1024
    $region41: #{tpu_custom_call.1} parent=1 // pred_fallthru
      _
    %p80 = scmp.eq.s32.totalorder 0, 0
    // Predicated region
    $region42: #{tpu_custom_call.1} parent=1 // pred_check
      %p81 = pneg %p80
    $region43: #{tpu_custom_call.1} parent=1 // pred_check_branch
      %83 = sbr.rel (%p81) target = $region45
    $region44: #{tpu_custom_call.1} parent=1 // pred_region
      %84 = vst [vmem:[#allocation2] sm:$0xff] 0.0
      %85 = vst [vmem:[#allocation2 + $0x8] sm:$0xff] 0.0
      %86 = vst [vmem:[#allocation2 + $0x10] sm:$0xff] 0.0
      %87 = vst [vmem:[#allocation2 + $0x18] sm:$0xff] 0.0
    $region45: #{tpu_custom_call.1} parent=1 // pred_fallthru
      _
    %v88 = vld [vmem:[#allocation2] sm:$0xff]
    %v89 = vld [vmem:[#allocation2 + $0x8] sm:$0xff]
    %s90 = scalar_lea.vmem [#allocation2], 16
    %v91 = vld [vmem:[%s90] sm:$0xff]
    %v92 = vld [vmem:[%s90 + $0x8] sm:$0xff]
    %v93 = vld [vmem:[%s3] sm:$0x1]
    %v95 = vlaneseq
    %v96 = vshrl.u32 %v95, 7
    %v97 = vsub.s32 0, %v96
    %v98 = vrot.slane %v93, %v97
    %v100 = vld [vmem:[#allocation3] sm:$0xf]
    %v101 = vld [vmem:[#allocation3 + $0x4] sm:$0xf]
    %v102 = vunpack.c.l.bf16 %v100
    %v103 = vunpack.c.l.bf16 %v101
    %v104 = vpack.c.bf16 %v89, %v88
    %v105 = vld [vmem:[#allocation6] sm:$0xf]
    %v106 = vld [vmem:[#allocation6 + $0x4] sm:$0xf]
    %v107 = vld [vmem:[#allocation6 + $0x8] sm:$0xf]
    %v108 = vld [vmem:[#allocation6 + $0xc] sm:$0xf]
    %v109 = vld [vmem:[#allocation6 + $0x10] sm:$0xf]
    %v110 = vld [vmem:[#allocation6 + $0x14] sm:$0xf]
    %v111 = vld [vmem:[#allocation6 + $0x18] sm:$0xf]
    %v112 = vld [vmem:[#allocation6 + $0x1c] sm:$0xf]
    %v113 = vld [vmem:[#allocation6 + $0x20] sm:$0xf]
    %v114 = vld [vmem:[#allocation6 + $0x24] sm:$0xf]
    %v115 = vld [vmem:[#allocation6 + $0x28] sm:$0xf]
    %v116 = vld [vmem:[#allocation6 + $0x2c] sm:$0xf]
    %v117 = vld [vmem:[#allocation6 + $0x30] sm:$0xf]
    %v118 = vld [vmem:[#allocation6 + $0x34] sm:$0xf]
    %v119 = vld [vmem:[#allocation6 + $0x38] sm:$0xf]
    %v120 = vld [vmem:[#allocation6 + $0x3c] sm:$0xf]
    %v137 = vunpack.c.l.b16 %v105
    %v138 = vunpack.c.l.b16 %v106
    %v139 = vunpack.c.l.b16 %v107
    %v140 = vunpack.c.l.b16 %v108
    %v141 = vunpack.c.l.b16 %v109
    %v142 = vunpack.c.l.b16 %v110
    %v143 = vunpack.c.l.b16 %v111
    %v144 = vunpack.c.l.b16 %v112
    %v145 = vunpack.c.l.b16 %v113
    %v146 = vunpack.c.l.b16 %v114
    %v147 = vunpack.c.l.b16 %v115
    %v148 = vunpack.c.l.b16 %v116
    %v149 = vunpack.c.l.b16 %v117
    %v150 = vunpack.c.l.b16 %v118
    %v151 = vunpack.c.l.b16 %v119
    %v152 = vunpack.c.l.b16 %v120
    %v153 = vpack.c.b16 %v138, %v137
    %v154 = vpack.c.b16 %v140, %v139
    %v155 = vpack.c.b16 %v142, %v141
    %v156 = vpack.c.b16 %v144, %v143
    %v157 = vpack.c.b16 %v146, %v145
    %v158 = vpack.c.b16 %v148, %v147
    %v159 = vpack.c.b16 %v150, %v149
    %v160 = vpack.c.b16 %v152, %v151
    %169 = vmatprep.subr.bf16.mxu0 0
    %170 = vmatpush1.bf16.msra.mxu0 %v153
    %171 = vmatprep.subr.bf16.mxu0 0
    %172 = vmatpush1.bf16.msra.mxu0 %v154
    %173 = vmatprep.subr.bf16.mxu0 0
    %174 = vmatpush1.bf16.msra.mxu0 %v155
    %175 = vmatprep.subr.bf16.mxu0 0
    %176 = vmatpush1.bf16.msra.mxu0 %v156
    %177 = vmatprep.subr.bf16.mxu0 0
    %178 = vmatpush1.bf16.msra.mxu0 %v157
    %179 = vmatprep.subr.bf16.mxu0 0
    %180 = vmatpush1.bf16.msra.mxu0 %v158
    %181 = vmatprep.subr.bf16.mxu0 0
    %182 = vmatpush1.bf16.msra.mxu0 %v159
    %183 = vmatprep.subr.bf16.mxu0 0
    %184 = vmatpush1.bf16.msra.mxu0 %v160
    %185 = vmatprep.subr.bf16.mxu0 0
    %186 = vmatpush1.bf16.msra.mxu0 0
    %187 = vmatprep.subr.bf16.mxu0 0
    %188 = vmatpush1.bf16.msra.mxu0 0
    %189 = vmatprep.subr.bf16.mxu0 0
    %190 = vmatpush1.bf16.msra.mxu0 0
    %191 = vmatprep.subr.bf16.mxu0 0
    %192 = vmatpush1.bf16.msra.mxu0 0
    %193 = vmatprep.subr.bf16.mxu0 0
    %194 = vmatpush1.bf16.msra.mxu0 0
    %195 = vmatprep.subr.bf16.mxu0 0
    %196 = vmatpush1.bf16.msra.mxu0 0
    %197 = vmatprep.subr.bf16.mxu0 0
    %198 = vmatpush1.bf16.msra.mxu0 0
    %199 = vmatprep.subr.bf16.mxu0 0
    %200 = vmatpush1.bf16.msra.mxu0 0
    %201 = vmatprep.mubr.bf16.mxu0 0
    %202 = vmatmul.mubr.bf16.gmra.mrb[0].mxu0 %v104
    %v203 = vpop.f32.mrb[0].mxu0
    %v204 = vadd.f32 0.0, %v203
    %v205 = vpop.f32.mrb[0].mxu0
    %v206 = vpop.f32.mrb[0].mxu0
    %v207 = vadd.f32 0.0, %v206
    %v208 = vpop.f32.mrb[0].mxu0
    %209 = vdwg.mxu0
    %v210 = vadd.f32 %v102, %v204
    %v211 = vadd.f32 %v103, %v207
    %v212 = vtanh.pop %v210
    %v213 = vtanh.pop %v211
    %s214 = scalar_lea.vmem [#allocation3], 8
    %v215 = vld [vmem:[%s214] sm:$0xf]
    %v216 = vld [vmem:[%s214 + $0x4] sm:$0xf]
    %v217 = vunpack.c.l.bf16 %v215
    %v218 = vunpack.c.l.bf16 %v216
    %v219 = vpack.c.bf16 %v213, %v212
    %220 = vmatprep.subr.bf16.mxu0 0
    %221 = vmatpush1.bf16.msra.mxu0 %v153
    %222 = vmatprep.subr.bf16.mxu0 0
    %223 = vmatpush1.bf16.msra.mxu0 %v154
    %224 = vmatprep.subr.bf16.mxu0 0
    %225 = vmatpush1.bf16.msra.mxu0 %v155
    %226 = vmatprep.subr.bf16.mxu0 0
    %227 = vmatpush1.bf16.msra.mxu0 %v156
    %228 = vmatprep.subr.bf16.mxu0 0
    %229 = vmatpush1.bf16.msra.mxu0 %v157
    %230 = vmatprep.subr.bf16.mxu0 0
    %231 = vmatpush1.bf16.msra.mxu0 %v158
    %232 = vmatprep.subr.bf16.mxu0 0
    %233 = vmatpush1.bf16.msra.mxu0 %v159
    %234 = vmatprep.subr.bf16.mxu0 0
    %235 = vmatpush1.bf16.msra.mxu0 %v160
    %236 = vmatprep.subr.bf16.mxu0 0
    %237 = vmatpush1.bf16.msra.mxu0 0
    %238 = vmatprep.subr.bf16.mxu0 0
    %239 = vmatpush1.bf16.msra.mxu0 0
    %240 = vmatprep.subr.bf16.mxu0 0
    %241 = vmatpush1.bf16.msra.mxu0 0
    %242 = vmatprep.subr.bf16.mxu0 0
    %243 = vmatpush1.bf16.msra.mxu0 0
    %244 = vmatprep.subr.bf16.mxu0 0
    %245 = vmatpush1.bf16.msra.mxu0 0
    %246 = vmatprep.subr.bf16.mxu0 0
    %247 = vmatpush1.bf16.msra.mxu0 0
    %248 = vmatprep.subr.bf16.mxu0 0
    %249 = vmatpush1.bf16.msra.mxu0 0
    %250 = vmatprep.subr.bf16.mxu0 0
    %251 = vmatpush1.bf16.msra.mxu0 0
    %252 = vmatprep.mubr.bf16.mxu0 0
    %253 = vmatmul.mubr.bf16.gmra.mrb[0].mxu0 %v219
    %v254 = vpop.f32.mrb[0].mxu0
    %v255 = vadd.f32 0.0, %v254
    %v256 = vpop.f32.mrb[0].mxu0
    %v257 = vpop.f32.mrb[0].mxu0
    %v258 = vadd.f32 0.0, %v257
    %v259 = vpop.f32.mrb[0].mxu0
    %260 = vdwg.mxu0
    %v261 = vadd.f32 %v217, %v255
    %v262 = vadd.f32 %v218, %v258
    %v263 = vtanh.pop %v261
    %v264 = vtanh.pop %v262
    %v265 = vpack.c.bf16 %v92, %v91
    %v266 = vld [vmem:[#allocation8] sm:$0xf]
    %v267 = vld [vmem:[#allocation8 + $0x4] sm:$0xf]
    %v268 = vld [vmem:[#allocation8 + $0x8] sm:$0xf]
    %v269 = vld [vmem:[#allocation8 + $0xc] sm:$0xf]
    %v270 = vld [vmem:[#allocation8 + $0x10] sm:$0xf]
    %v271 = vld [vmem:[#allocation8 + $0x14] sm:$0xf]
    %v272 = vld [vmem:[#allocation8 + $0x18] sm:$0xf]
    %v273 = vld [vmem:[#allocation8 + $0x1c] sm:$0xf]
    %v274 = vld [vmem:[#allocation8 + $0x20] sm:$0xf]
    %v275 = vld [vmem:[#allocation8 + $0x24] sm:$0xf]
    %v276 = vld [vmem:[#allocation8 + $0x28] sm:$0xf]
    %v277 = vld [vmem:[#allocation8 + $0x2c] sm:$0xf]
    %v278 = vld [vmem:[#allocation8 + $0x30] sm:$0xf]
    %v279 = vld [vmem:[#allocation8 + $0x34] sm:$0xf]
    %v280 = vld [vmem:[#allocation8 + $0x38] sm:$0xf]
    %v281 = vld [vmem:[#allocation8 + $0x3c] sm:$0xf]
    %v282 = vld [vmem:[#allocation8 + $0x40] sm:$0xf]
    %v283 = vld [vmem:[#allocation8 + $0x44] sm:$0xf]
    %v284 = vld [vmem:[#allocation8 + $0x48] sm:$0xf]
    %v285 = vld [vmem:[#allocation8 + $0x4c] sm:$0xf]
    %v286 = vld [vmem:[#allocation8 + $0x50] sm:$0xf]
    %v287 = vld [vmem:[#allocation8 + $0x54] sm:$0xf]
    %v288 = vld [vmem:[#allocation8 + $0x58] sm:$0xf]
    %v289 = vld [vmem:[#allocation8 + $0x5c] sm:$0xf]
    %v290 = vld [vmem:[#allocation8 + $0x60] sm:$0xf]
    %v291 = vld [vmem:[#allocation8 + $0x64] sm:$0xf]
    %v292 = vld [vmem:[#allocation8 + $0x68] sm:$0xf]
    %v293 = vld [vmem:[#allocation8 + $0x6c] sm:$0xf]
    %v294 = vld [vmem:[#allocation8 + $0x70] sm:$0xf]
    %v295 = vld [vmem:[#allocation8 + $0x74] sm:$0xf]
    %v296 = vld [vmem:[#allocation8 + $0x78] sm:$0xf]
    %v297 = vld [vmem:[#allocation8 + $0x7c] sm:$0xf]
    %v330 = vunpack.c.l.b16 %v266
    %v331 = vunpack.c.l.b16 %v267
    %v332 = vunpack.c.l.b16 %v268
    %v333 = vunpack.c.l.b16 %v269
    %v334 = vunpack.c.l.b16 %v270
    %v335 = vunpack.c.l.b16 %v271
    %v336 = vunpack.c.l.b16 %v272
    %v337 = vunpack.c.l.b16 %v273
    %v338 = vunpack.c.l.b16 %v274
    %v339 = vunpack.c.l.b16 %v275
    %v340 = vunpack.c.l.b16 %v276
    %v341 = vunpack.c.l.b16 %v277
    %v342 = vunpack.c.l.b16 %v278
    %v343 = vunpack.c.l.b16 %v279
    %v344 = vunpack.c.l.b16 %v280
    %v345 = vunpack.c.l.b16 %v281
    %v346 = vunpack.c.l.b16 %v282
    %v347 = vunpack.c.l.b16 %v283
    %v348 = vunpack.c.l.b16 %v284
    %v349 = vunpack.c.l.b16 %v285
    %v350 = vunpack.c.l.b16 %v286
    %v351 = vunpack.c.l.b16 %v287
    %v352 = vunpack.c.l.b16 %v288
    %v353 = vunpack.c.l.b16 %v289
    %v354 = vunpack.c.l.b16 %v290
    %v355 = vunpack.c.l.b16 %v291
    %v356 = vunpack.c.l.b16 %v292
    %v357 = vunpack.c.l.b16 %v293
    %v358 = vunpack.c.l.b16 %v294
    %v359 = vunpack.c.l.b16 %v295
    %v360 = vunpack.c.l.b16 %v296
    %v361 = vunpack.c.l.b16 %v297
    %v362 = vpack.c.b16 %v331, %v330
    %v363 = vpack.c.b16 %v333, %v332
    %v364 = vpack.c.b16 %v335, %v334
    %v365 = vpack.c.b16 %v337, %v336
    %v366 = vpack.c.b16 %v339, %v338
    %v367 = vpack.c.b16 %v341, %v340
    %v368 = vpack.c.b16 %v343, %v342
    %v369 = vpack.c.b16 %v345, %v344
    %v370 = vpack.c.b16 %v347, %v346
    %v371 = vpack.c.b16 %v349, %v348
    %v372 = vpack.c.b16 %v351, %v350
    %v373 = vpack.c.b16 %v353, %v352
    %v374 = vpack.c.b16 %v355, %v354
    %v375 = vpack.c.b16 %v357, %v356
    %v376 = vpack.c.b16 %v359, %v358
    %v377 = vpack.c.b16 %v361, %v360
    %394 = vmatprep.subr.bf16.mxu0 0
    %395 = vmatpush1.bf16.msra.mxu0 %v362
    %396 = vmatprep.subr.bf16.mxu0 0
    %397 = vmatpush1.bf16.msra.mxu0 %v363
    %398 = vmatprep.subr.bf16.mxu0 0
    %399 = vmatpush1.bf16.msra.mxu0 %v364
    %400 = vmatprep.subr.bf16.mxu0 0
    %401 = vmatpush1.bf16.msra.mxu0 %v365
    %402 = vmatprep.subr.bf16.mxu0 0
    %403 = vmatpush1.bf16.msra.mxu0 %v366
    %404 = vmatprep.subr.bf16.mxu0 0
    %405 = vmatpush1.bf16.msra.mxu0 %v367
    %406 = vmatprep.subr.bf16.mxu0 0
    %407 = vmatpush1.bf16.msra.mxu0 %v368
    %408 = vmatprep.subr.bf16.mxu0 0
    %409 = vmatpush1.bf16.msra.mxu0 %v369
    %410 = vmatprep.subr.bf16.mxu0 0
    %411 = vmatpush1.bf16.msra.mxu0 %v370
    %412 = vmatprep.subr.bf16.mxu0 0
    %413 = vmatpush1.bf16.msra.mxu0 %v371
    %414 = vmatprep.subr.bf16.mxu0 0
    %415 = vmatpush1.bf16.msra.mxu0 %v372
    %416 = vmatprep.subr.bf16.mxu0 0
    %417 = vmatpush1.bf16.msra.mxu0 %v373
    %418 = vmatprep.subr.bf16.mxu0 0
    %419 = vmatpush1.bf16.msra.mxu0 %v374
    %420 = vmatprep.subr.bf16.mxu0 0
    %421 = vmatpush1.bf16.msra.mxu0 %v375
    %422 = vmatprep.subr.bf16.mxu0 0
    %423 = vmatpush1.bf16.msra.mxu0 %v376
    %424 = vmatprep.subr.bf16.mxu0 0
    %425 = vmatpush1.bf16.msra.mxu0 %v377
    %426 = vmatprep.mubr.bf16.mxu0 %v265
    %427 = vmatmul.mubr.bf16.gmra.mrb[0].mxu0 %v219
    %v428 = vpop.f32.mrb[0].mxu0
    %v429 = vadd.f32 %v98, %v428
    %v430 = vpop.f32.mrb[0].mxu0
    %v431 = vpop.f32.mrb[0].mxu0
    %v432 = vadd.f32 %v98, %v431
    %v433 = vpop.f32.mrb[0].mxu0
    %434 = vdwg.mxu0
    %v435 = vtanh.pop %v429
    %v436 = vtanh.pop %v432
    %s437 = scalar_lea.vmem [#allocation3], 16
    %v438 = vld [vmem:[%s437] sm:$0xf]
    %v439 = vld [vmem:[%s437 + $0x4] sm:$0xf]
    %v440 = vunpack.c.l.bf16 %v438
    %v441 = vunpack.c.l.bf16 %v439
    %v442 = vpack.c.bf16 %v264, %v263
    %443 = vmatprep.subr.bf16.mxu0 0
    %444 = vmatpush1.bf16.msra.mxu0 %v153
    %445 = vmatprep.subr.bf16.mxu0 0
    %446 = vmatpush1.bf16.msra.mxu0 %v154
    %447 = vmatprep.subr.bf16.mxu0 0
    %448 = vmatpush1.bf16.msra.mxu0 %v155
    %449 = vmatprep.subr.bf16.mxu0 0
    %450 = vmatpush1.bf16.msra.mxu0 %v156
    %451 = vmatprep.subr.bf16.mxu0 0
    %452 = vmatpush1.bf16.msra.mxu0 %v157
    %453 = vmatprep.subr.bf16.mxu0 0
    %454 = vmatpush1.bf16.msra.mxu0 %v158
    %455 = vmatprep.subr.bf16.mxu0 0
    %456 = vmatpush1.bf16.msra.mxu0 %v159
    %457 = vmatprep.subr.bf16.mxu0 0
    %458 = vmatpush1.bf16.msra.mxu0 %v160
    %459 = vmatprep.subr.bf16.mxu0 0
    %460 = vmatpush1.bf16.msra.mxu0 0
    %461 = vmatprep.subr.bf16.mxu0 0
    %462 = vmatpush1.bf16.msra.mxu0 0
    %463 = vmatprep.subr.bf16.mxu0 0
    %464 = vmatpush1.bf16.msra.mxu0 0
    %465 = vmatprep.subr.bf16.mxu0 0
    %466 = vmatpush1.bf16.msra.mxu0 0
    %467 = vmatprep.subr.bf16.mxu0 0
    %468 = vmatpush1.bf16.msra.mxu0 0
    %469 = vmatprep.subr.bf16.mxu0 0
    %470 = vmatpush1.bf16.msra.mxu0 0
    %471 = vmatprep.subr.bf16.mxu0 0
    %472 = vmatpush1.bf16.msra.mxu0 0
    %473 = vmatprep.subr.bf16.mxu0 0
    %474 = vmatpush1.bf16.msra.mxu0 0
    %475 = vmatprep.mubr.bf16.mxu0 0
    %476 = vmatmul.mubr.bf16.gmra.mrb[0].mxu0 %v442
    %v477 = vpop.f32.mrb[0].mxu0
    %v478 = vadd.f32 0.0, %v477
    %v479 = vpop.f32.mrb[0].mxu0
    %v480 = vpop.f32.mrb[0].mxu0
    %v481 = vadd.f32 0.0, %v480
    %v482 = vpop.f32.mrb[0].mxu0
    %483 = vdwg.mxu0
    %v484 = vadd.f32 %v440, %v478
    %v485 = vadd.f32 %v441, %v481
    %v486 = vtanh.pop %v484
    %v487 = vtanh.pop %v485
    %v488 = vpack.c.bf16 %v436, %v435
    %489 = vmatprep.subr.bf16.mxu0 0
    %490 = vmatpush1.bf16.msra.mxu0 %v362
    %491 = vmatprep.subr.bf16.mxu0 0
    %492 = vmatpush1.bf16.msra.mxu0 %v363
    %493 = vmatprep.subr.bf16.mxu0 0
    %494 = vmatpush1.bf16.msra.mxu0 %v364
    %495 = vmatprep.subr.bf16.mxu0 0
    %496 = vmatpush1.bf16.msra.mxu0 %v365
    %497 = vmatprep.subr.bf16.mxu0 0
    %498 = vmatpush1.bf16.msra.mxu0 %v366
    %499 = vmatprep.subr.bf16.mxu0 0
    %500 = vmatpush1.bf16.msra.mxu0 %v367
    %501 = vmatprep.subr.bf16.mxu0 0
    %502 = vmatpush1.bf16.msra.mxu0 %v368
    %503 = vmatprep.subr.bf16.mxu0 0
    %504 = vmatpush1.bf16.msra.mxu0 %v369
    %505 = vmatprep.subr.bf16.mxu0 0
    %506 = vmatpush1.bf16.msra.mxu0 %v370
    %507 = vmatprep.subr.bf16.mxu0 0
    %508 = vmatpush1.bf16.msra.mxu0 %v371
    %509 = vmatprep.subr.bf16.mxu0 0
    %510 = vmatpush1.bf16.msra.mxu0 %v372
    %511 = vmatprep.subr.bf16.mxu0 0
    %512 = vmatpush1.bf16.msra.mxu0 %v373
    %513 = vmatprep.subr.bf16.mxu0 0
    %514 = vmatpush1.bf16.msra.mxu0 %v374
    %515 = vmatprep.subr.bf16.mxu0 0
    %516 = vmatpush1.bf16.msra.mxu0 %v375
    %517 = vmatprep.subr.bf16.mxu0 0
    %518 = vmatpush1.bf16.msra.mxu0 %v376
    %519 = vmatprep.subr.bf16.mxu0 0
    %520 = vmatpush1.bf16.msra.mxu0 %v377
    %521 = vmatprep.mubr.bf16.mxu0 %v488
    %522 = vmatmul.mubr.bf16.gmra.mrb[0].mxu0 %v442
    %v523 = vpop.f32.mrb[0].mxu0
    %v524 = vadd.f32 %v98, %v523
    %v525 = vpop.f32.mrb[0].mxu0
    %v526 = vpop.f32.mrb[0].mxu0
    %v527 = vadd.f32 %v98, %v526
    %v528 = vpop.f32.mrb[0].mxu0
    %529 = vdwg.mxu0
    %v530 = vtanh.pop %v524
    %v531 = vtanh.pop %v527
    %s532 = scalar_lea.vmem [#allocation3], 24
    %v533 = vld [vmem:[%s532] sm:$0xf]
    %v534 = vld [vmem:[%s532 + $0x4] sm:$0xf]
    %v535 = vunpack.c.l.bf16 %v533
    %v536 = vunpack.c.l.bf16 %v534
    %v537 = vpack.c.bf16 %v487, %v486
    %538 = vmatprep.subr.bf16.mxu0 0
    %539 = vmatpush1.bf16.msra.mxu0 %v153
    %540 = vmatprep.subr.bf16.mxu0 0
    %541 = vmatpush1.bf16.msra.mxu0 %v154
    %542 = vmatprep.subr.bf16.mxu0 0
    %543 = vmatpush1.bf16.msra.mxu0 %v155
    %544 = vmatprep.subr.bf16.mxu0 0
    %545 = vmatpush1.bf16.msra.mxu0 %v156
    %546 = vmatprep.subr.bf16.mxu0 0
    %547 = vmatpush1.bf16.msra.mxu0 %v157
    %548 = vmatprep.subr.bf16.mxu0 0
    %549 = vmatpush1.bf16.msra.mxu0 %v158
    %550 = vmatprep.subr.bf16.mxu0 0
    %551 = vmatpush1.bf16.msra.mxu0 %v159
    %552 = vmatprep.subr.bf16.mxu0 0
    %553 = vmatpush1.bf16.msra.mxu0 %v160
    %554 = vmatprep.subr.bf16.mxu0 0
    %555 = vmatpush1.bf16.msra.mxu0 0
    %556 = vmatprep.subr.bf16.mxu0 0
    %557 = vmatpush1.bf16.msra.mxu0 0
    %558 = vmatprep.subr.bf16.mxu0 0
    %559 = vmatpush1.bf16.msra.mxu0 0
    %560 = vmatprep.subr.bf16.mxu0 0
    %561 = vmatpush1.bf16.msra.mxu0 0
    %562 = vmatprep.subr.bf16.mxu0 0
    %563 = vmatpush1.bf16.msra.mxu0 0
    %564 = vmatprep.subr.bf16.mxu0 0
    %565 = vmatpush1.bf16.msra.mxu0 0
    %566 = vmatprep.subr.bf16.mxu0 0
    %567 = vmatpush1.bf16.msra.mxu0 0
    %568 = vmatprep.subr.bf16.mxu0 0
    %569 = vmatpush1.bf16.msra.mxu0 0
    %570 = vmatprep.mubr.bf16.mxu0 0
    %571 = vmatmul.mubr.bf16.gmra.mrb[0].mxu0 %v537
    %v572 = vpop.f32.mrb[0].mxu0
    %v573 = vadd.f32 0.0, %v572
    %v574 = vpop.f32.mrb[0].mxu0
    %v575 = vpop.f32.mrb[0].mxu0
    %v576 = vadd.f32 0.0, %v575
    %v577 = vpop.f32.mrb[0].mxu0
    %578 = vdwg.mxu0
    %v579 = vadd.f32 %v535, %v573
    %v580 = vadd.f32 %v536, %v576
    %v581 = vtanh.pop %v579
    %v582 = vtanh.pop %v580
    %v583 = vpack.c.bf16 %v531, %v530
    %584 = vmatprep.subr.bf16.mxu0 0
    %585 = vmatpush1.bf16.msra.mxu0 %v362
    %586 = vmatprep.subr.bf16.mxu0 0
    %587 = vmatpush1.bf16.msra.mxu0 %v363
    %588 = vmatprep.subr.bf16.mxu0 0
    %589 = vmatpush1.bf16.msra.mxu0 %v364
    %590 = vmatprep.subr.bf16.mxu0 0
    %591 = vmatpush1.bf16.msra.mxu0 %v365
    %592 = vmatprep.subr.bf16.mxu0 0
    %593 = vmatpush1.bf16.msra.mxu0 %v366
    %594 = vmatprep.subr.bf16.mxu0 0
    %595 = vmatpush1.bf16.msra.mxu0 %v367
    %596 = vmatprep.subr.bf16.mxu0 0
    %597 = vmatpush1.bf16.msra.mxu0 %v368
    %598 = vmatprep.subr.bf16.mxu0 0
    %599 = vmatpush1.bf16.msra.mxu0 %v369
    %600 = vmatprep.subr.bf16.mxu0 0
    %601 = vmatpush1.bf16.msra.mxu0 %v370
    %602 = vmatprep.subr.bf16.mxu0 0
    %603 = vmatpush1.bf16.msra.mxu0 %v371
    %604 = vmatprep.subr.bf16.mxu0 0
    %605 = vmatpush1.bf16.msra.mxu0 %v372
    %606 = vmatprep.subr.bf16.mxu0 0
    %607 = vmatpush1.bf16.msra.mxu0 %v373
    %608 = vmatprep.subr.bf16.mxu0 0
    %609 = vmatpush1.bf16.msra.mxu0 %v374
    %610 = vmatprep.subr.bf16.mxu0 0
    %611 = vmatpush1.bf16.msra.mxu0 %v375
    %612 = vmatprep.subr.bf16.mxu0 0
    %613 = vmatpush1.bf16.msra.mxu0 %v376
    %614 = vmatprep.subr.bf16.mxu0 0
    %615 = vmatpush1.bf16.msra.mxu0 %v377
    %616 = vmatprep.mubr.bf16.mxu0 %v583
    %617 = vmatmul.mubr.bf16.gmra.mrb[0].mxu0 %v537
    %v618 = vpop.f32.mrb[0].mxu0
    %v619 = vadd.f32 %v98, %v618
    %v620 = vpop.f32.mrb[0].mxu0
    %v621 = vpop.f32.mrb[0].mxu0
    %v622 = vadd.f32 %v98, %v621
    %v623 = vpop.f32.mrb[0].mxu0
    %624 = vdwg.mxu0
    %v625 = vtanh.pop %v619
    %v626 = vtanh.pop %v622
    %s627 = scalar_lea.vmem [#allocation3], 32
    %v628 = vld [vmem:[%s627] sm:$0xf]
    %v629 = vld [vmem:[%s627 + $0x4] sm:$0xf]
    %v630 = vunpack.c.l.bf16 %v628
    %v631 = vunpack.c.l.bf16 %v629
    %v632 = vpack.c.bf16 %v582, %v581
    %633 = vmatprep.subr.bf16.mxu0 0
    %634 = vmatpush1.bf16.msra.mxu0 %v153
    %635 = vmatprep.subr.bf16.mxu0 0
    %636 = vmatpush1.bf16.msra.mxu0 %v154
    %637 = vmatprep.subr.bf16.mxu0 0
    %638 = vmatpush1.bf16.msra.mxu0 %v155
    %639 = vmatprep.subr.bf16.mxu0 0
    %640 = vmatpush1.bf16.msra.mxu0 %v156
    %641 = vmatprep.subr.bf16.mxu0 0
    %642 = vmatpush1.bf16.msra.mxu0 %v157
    %643 = vmatprep.subr.bf16.mxu0 0
    %644 = vmatpush1.bf16.msra.mxu0 %v158
    %645 = vmatprep.subr.bf16.mxu0 0
    %646 = vmatpush1.bf16.msra.mxu0 %v159
    %647 = vmatprep.subr.bf16.mxu0 0
    %648 = vmatpush1.bf16.msra.mxu0 %v160
    %649 = vmatprep.subr.bf16.mxu0 0
    %650 = vmatpush1.bf16.msra.mxu0 0
    %651 = vmatprep.subr.bf16.mxu0 0
    %652 = vmatpush1.bf16.msra.mxu0 0
    %653 = vmatprep.subr.bf16.mxu0 0
    %654 = vmatpush1.bf16.msra.mxu0 0
    %655 = vmatprep.subr.bf16.mxu0 0
    %656 = vmatpush1.bf16.msra.mxu0 0
    %657 = vmatprep.subr.bf16.mxu0 0
    %658 = vmatpush1.bf16.msra.mxu0 0
    %659 = vmatprep.subr.bf16.mxu0 0
    %660 = vmatpush1.bf16.msra.mxu0 0
    %661 = vmatprep.subr.bf16.mxu0 0
    %662 = vmatpush1.bf16.msra.mxu0 0
    %663 = vmatprep.subr.bf16.mxu0 0
    %664 = vmatpush1.bf16.msra.mxu0 0
    %665 = vmatprep.mubr.bf16.mxu0 0
    %666 = vmatmul.mubr.bf16.gmra.mrb[0].mxu0 %v632
    %v667 = vpop.f32.mrb[0].mxu0
    %v668 = vadd.f32 0.0, %v667
    %v669 = vpop.f32.mrb[0].mxu0
    %v670 = vpop.f32.mrb[0].mxu0
    %v671 = vadd.f32 0.0, %v670
    %v672 = vpop.f32.mrb[0].mxu0
    %673 = vdwg.mxu0
    %v674 = vadd.f32 %v630, %v668
    %v675 = vadd.f32 %v631, %v671
    %v676 = vtanh.pop %v674
    %v677 = vtanh.pop %v675
    %v678 = vpack.c.bf16 %v626, %v625
    %679 = vmatprep.subr.bf16.mxu0 0
    %680 = vmatpush1.bf16.msra.mxu0 %v362
    %681 = vmatprep.subr.bf16.mxu0 0
    %682 = vmatpush1.bf16.msra.mxu0 %v363
    %683 = vmatprep.subr.bf16.mxu0 0
    %684 = vmatpush1.bf16.msra.mxu0 %v364
    %685 = vmatprep.subr.bf16.mxu0 0
    %686 = vmatpush1.bf16.msra.mxu0 %v365
    %687 = vmatprep.subr.bf16.mxu0 0
    %688 = vmatpush1.bf16.msra.mxu0 %v366
    %689 = vmatprep.subr.bf16.mxu0 0
    %690 = vmatpush1.bf16.msra.mxu0 %v367
    %691 = vmatprep.subr.bf16.mxu0 0
    %692 = vmatpush1.bf16.msra.mxu0 %v368
    %693 = vmatprep.subr.bf16.mxu0 0
    %694 = vmatpush1.bf16.msra.mxu0 %v369
    %695 = vmatprep.subr.bf16.mxu0 0
    %696 = vmatpush1.bf16.msra.mxu0 %v370
    %697 = vmatprep.subr.bf16.mxu0 0
    %698 = vmatpush1.bf16.msra.mxu0 %v371
    %699 = vmatprep.subr.bf16.mxu0 0
    %700 = vmatpush1.bf16.msra.mxu0 %v372
    %701 = vmatprep.subr.bf16.mxu0 0
    %702 = vmatpush1.bf16.msra.mxu0 %v373
    %703 = vmatprep.subr.bf16.mxu0 0
    %704 = vmatpush1.bf16.msra.mxu0 %v374
    %705 = vmatprep.subr.bf16.mxu0 0
    %706 = vmatpush1.bf16.msra.mxu0 %v375
    %707 = vmatprep.subr.bf16.mxu0 0
    %708 = vmatpush1.bf16.msra.mxu0 %v376
    %709 = vmatprep.subr.bf16.mxu0 0
    %710 = vmatpush1.bf16.msra.mxu0 %v377
    %711 = vmatprep.mubr.bf16.mxu0 %v678
    %712 = vmatmul.mubr.bf16.gmra.mrb[0].mxu0 %v632
    %v713 = vpop.f32.mrb[0].mxu0
    %v714 = vadd.f32 %v98, %v713
    %v715 = vpop.f32.mrb[0].mxu0
    %v716 = vpop.f32.mrb[0].mxu0
    %v717 = vadd.f32 %v98, %v716
    %v718 = vpop.f32.mrb[0].mxu0
    %719 = vdwg.mxu0
    %v720 = vtanh.pop %v714
    %v721 = vtanh.pop %v717
    %s722 = scalar_lea.vmem [#allocation3], 40
    %v723 = vld [vmem:[%s722] sm:$0xf]
    %v724 = vld [vmem:[%s722 + $0x4] sm:$0xf]
    %v725 = vunpack.c.l.bf16 %v723
    %v726 = vunpack.c.l.bf16 %v724
    %v727 = vpack.c.bf16 %v677, %v676
    %728 = vmatprep.subr.bf16.mxu0 0
    %729 = vmatpush1.bf16.msra.mxu0 %v153
    %730 = vmatprep.subr.bf16.mxu0 0
    %731 = vmatpush1.bf16.msra.mxu0 %v154
    %732 = vmatprep.subr.bf16.mxu0 0
    %733 = vmatpush1.bf16.msra.mxu0 %v155
    %734 = vmatprep.subr.bf16.mxu0 0
    %735 = vmatpush1.bf16.msra.mxu0 %v156
    %736 = vmatprep.subr.bf16.mxu0 0
    %737 = vmatpush1.bf16.msra.mxu0 %v157
    %738 = vmatprep.subr.bf16.mxu0 0
    %739 = vmatpush1.bf16.msra.mxu0 %v158
    %740 = vmatprep.subr.bf16.mxu0 0
    %741 = vmatpush1.bf16.msra.mxu0 %v159
    %742 = vmatprep.subr.bf16.mxu0 0
    %743 = vmatpush1.bf16.msra.mxu0 %v160
    %744 = vmatprep.subr.bf16.mxu0 0
    %745 = vmatpush1.bf16.msra.mxu0 0
    %746 = vmatprep.subr.bf16.mxu0 0
    %747 = vmatpush1.bf16.msra.mxu0 0
    %748 = vmatprep.subr.bf16.mxu0 0
    %749 = vmatpush1.bf16.msra.mxu0 0
    %750 = vmatprep.subr.bf16.mxu0 0
    %751 = vmatpush1.bf16.msra.mxu0 0
    %752 = vmatprep.subr.bf16.mxu0 0
    %753 = vmatpush1.bf16.msra.mxu0 0
    %754 = vmatprep.subr.bf16.mxu0 0
    %755 = vmatpush1.bf16.msra.mxu0 0
    %756 = vmatprep.subr.bf16.mxu0 0
    %757 = vmatpush1.bf16.msra.mxu0 0
    %758 = vmatprep.subr.bf16.mxu0 0
    %759 = vmatpush1.bf16.msra.mxu0 0
    %760 = vmatprep.mubr.bf16.mxu0 0
    %761 = vmatmul.mubr.bf16.gmra.mrb[0].mxu0 %v727
    %v762 = vpop.f32.mrb[0].mxu0
    %v763 = vadd.f32 0.0, %v762
    %v764 = vpop.f32.mrb[0].mxu0
    %v765 = vpop.f32.mrb[0].mxu0
    %v766 = vadd.f32 0.0, %v765
    %v767 = vpop.f32.mrb[0].mxu0
    %768 = vdwg.mxu0
    %v769 = vadd.f32 %v725, %v763
    %v770 = vadd.f32 %v726, %v766
    %v771 = vtanh.pop %v769
    %v772 = vtanh.pop %v770
    %v773 = vpack.c.bf16 %v721, %v720
    %774 = vmatprep.subr.bf16.mxu0 0
    %775 = vmatpush1.bf16.msra.mxu0 %v362
    %776 = vmatprep.subr.bf16.mxu0 0
    %777 = vmatpush1.bf16.msra.mxu0 %v363
    %778 = vmatprep.subr.bf16.mxu0 0
    %779 = vmatpush1.bf16.msra.mxu0 %v364
    %780 = vmatprep.subr.bf16.mxu0 0
    %781 = vmatpush1.bf16.msra.mxu0 %v365
    %782 = vmatprep.subr.bf16.mxu0 0
    %783 = vmatpush1.bf16.msra.mxu0 %v366
    %784 = vmatprep.subr.bf16.mxu0 0
    %785 = vmatpush1.bf16.msra.mxu0 %v367
    %786 = vmatprep.subr.bf16.mxu0 0
    %787 = vmatpush1.bf16.msra.mxu0 %v368
    %788 = vmatprep.subr.bf16.mxu0 0
    %789 = vmatpush1.bf16.msra.mxu0 %v369
    %790 = vmatprep.subr.bf16.mxu0 0
    %791 = vmatpush1.bf16.msra.mxu0 %v370
    %792 = vmatprep.subr.bf16.mxu0 0
    %793 = vmatpush1.bf16.msra.mxu0 %v371
    %794 = vmatprep.subr.bf16.mxu0 0
    %795 = vmatpush1.bf16.msra.mxu0 %v372
    %796 = vmatprep.subr.bf16.mxu0 0
    %797 = vmatpush1.bf16.msra.mxu0 %v373
    %798 = vmatprep.subr.bf16.mxu0 0
    %799 = vmatpush1.bf16.msra.mxu0 %v374
    %800 = vmatprep.subr.bf16.mxu0 0
    %801 = vmatpush1.bf16.msra.mxu0 %v375
    %802 = vmatprep.subr.bf16.mxu0 0
    %803 = vmatpush1.bf16.msra.mxu0 %v376
    %804 = vmatprep.subr.bf16.mxu0 0
    %805 = vmatpush1.bf16.msra.mxu0 %v377
    %806 = vmatprep.mubr.bf16.mxu0 %v773
    %807 = vmatmul.mubr.bf16.gmra.mrb[0].mxu0 %v727
    %v808 = vpop.f32.mrb[0].mxu0
    %v809 = vadd.f32 %v98, %v808
    %v810 = vpop.f32.mrb[0].mxu0
    %v811 = vpop.f32.mrb[0].mxu0
    %v812 = vadd.f32 %v98, %v811
    %v813 = vpop.f32.mrb[0].mxu0
    %814 = vdwg.mxu0
    %v815 = vtanh.pop %v809
    %v816 = vtanh.pop %v812
    %s817 = scalar_lea.vmem [#allocation3], 48
    %v818 = vld [vmem:[%s817] sm:$0xf]
    %v819 = vld [vmem:[%s817 + $0x4] sm:$0xf]
    %v820 = vunpack.c.l.bf16 %v818
    %v821 = vunpack.c.l.bf16 %v819
    %v822 = vpack.c.bf16 %v772, %v771
    %823 = vmatprep.subr.bf16.mxu0 0
    %824 = vmatpush1.bf16.msra.mxu0 %v153
    %825 = vmatprep.subr.bf16.mxu0 0
    %826 = vmatpush1.bf16.msra.mxu0 %v154
    %827 = vmatprep.subr.bf16.mxu0 0
    %828 = vmatpush1.bf16.msra.mxu0 %v155
    %829 = vmatprep.subr.bf16.mxu0 0
    %830 = vmatpush1.bf16.msra.mxu0 %v156
    %831 = vmatprep.subr.bf16.mxu0 0
    %832 = vmatpush1.bf16.msra.mxu0 %v157
    %833 = vmatprep.subr.bf16.mxu0 0
    %834 = vmatpush1.bf16.msra.mxu0 %v158
    %835 = vmatprep.subr.bf16.mxu0 0
    %836 = vmatpush1.bf16.msra.mxu0 %v159
    %837 = vmatprep.subr.bf16.mxu0 0
    %838 = vmatpush1.bf16.msra.mxu0 %v160
    %839 = vmatprep.subr.bf16.mxu0 0
    %840 = vmatpush1.bf16.msra.mxu0 0
    %841 = vmatprep.subr.bf16.mxu0 0
    %842 = vmatpush1.bf16.msra.mxu0 0
    %843 = vmatprep.subr.bf16.mxu0 0
    %844 = vmatpush1.bf16.msra.mxu0 0
    %845 = vmatprep.subr.bf16.mxu0 0
    %846 = vmatpush1.bf16.msra.mxu0 0
    %847 = vmatprep.subr.bf16.mxu0 0
    %848 = vmatpush1.bf16.msra.mxu0 0
    %849 = vmatprep.subr.bf16.mxu0 0
    %850 = vmatpush1.bf16.msra.mxu0 0
    %851 = vmatprep.subr.bf16.mxu0 0
    %852 = vmatpush1.bf16.msra.mxu0 0
    %853 = vmatprep.subr.bf16.mxu0 0
    %854 = vmatpush1.bf16.msra.mxu0 0
    %855 = vmatprep.mubr.bf16.mxu0 0
    %856 = vmatmul.mubr.bf16.gmra.mrb[0].mxu0 %v822
    %v857 = vpop.f32.mrb[0].mxu0
    %v858 = vadd.f32 0.0, %v857
    %v859 = vpop.f32.mrb[0].mxu0
    %v860 = vpop.f32.mrb[0].mxu0
    %v861 = vadd.f32 0.0, %v860
    %v862 = vpop.f32.mrb[0].mxu0
    %863 = vdwg.mxu0
    %v864 = vadd.f32 %v820, %v858
    %v865 = vadd.f32 %v821, %v861
    %v866 = vtanh.pop %v864
    %v867 = vtanh.pop %v865
    %v868 = vpack.c.bf16 %v816, %v815
    %869 = vmatprep.subr.bf16.mxu0 0
    %870 = vmatpush1.bf16.msra.mxu0 %v362
    %871 = vmatprep.subr.bf16.mxu0 0
    %872 = vmatpush1.bf16.msra.mxu0 %v363
    %873 = vmatprep.subr.bf16.mxu0 0
    %874 = vmatpush1.bf16.msra.mxu0 %v364
    %875 = vmatprep.subr.bf16.mxu0 0
    %876 = vmatpush1.bf16.msra.mxu0 %v365
    %877 = vmatprep.subr.bf16.mxu0 0
    %878 = vmatpush1.bf16.msra.mxu0 %v366
    %879 = vmatprep.subr.bf16.mxu0 0
    %880 = vmatpush1.bf16.msra.mxu0 %v367
    %881 = vmatprep.subr.bf16.mxu0 0
    %882 = vmatpush1.bf16.msra.mxu0 %v368
    %883 = vmatprep.subr.bf16.mxu0 0
    %884 = vmatpush1.bf16.msra.mxu0 %v369
    %885 = vmatprep.subr.bf16.mxu0 0
    %886 = vmatpush1.bf16.msra.mxu0 %v370
    %887 = vmatprep.subr.bf16.mxu0 0
    %888 = vmatpush1.bf16.msra.mxu0 %v371
    %889 = vmatprep.subr.bf16.mxu0 0
    %890 = vmatpush1.bf16.msra.mxu0 %v372
    %891 = vmatprep.subr.bf16.mxu0 0
    %892 = vmatpush1.bf16.msra.mxu0 %v373
    %893 = vmatprep.subr.bf16.mxu0 0
    %894 = vmatpush1.bf16.msra.mxu0 %v374
    %895 = vmatprep.subr.bf16.mxu0 0
    %896 = vmatpush1.bf16.msra.mxu0 %v375
    %897 = vmatprep.subr.bf16.mxu0 0
    %898 = vmatpush1.bf16.msra.mxu0 %v376
    %899 = vmatprep.subr.bf16.mxu0 0
    %900 = vmatpush1.bf16.msra.mxu0 %v377
    %901 = vmatprep.mubr.bf16.mxu0 %v868
    %902 = vmatmul.mubr.bf16.gmra.mrb[0].mxu0 %v822
    %v903 = vpop.f32.mrb[0].mxu0
    %v904 = vadd.f32 %v98, %v903
    %v905 = vpop.f32.mrb[0].mxu0
    %v906 = vpop.f32.mrb[0].mxu0
    %v907 = vadd.f32 %v98, %v906
    %v908 = vpop.f32.mrb[0].mxu0
    %909 = vdwg.mxu0
    %v910 = vtanh.pop %v904
    %v911 = vtanh.pop %v907
    %s912 = scalar_lea.vmem [#allocation3], 56
    %v913 = vld [vmem:[%s912] sm:$0xf]
    %v914 = vld [vmem:[%s912 + $0x4] sm:$0xf]
    %v915 = vunpack.c.l.bf16 %v913
    %v916 = vunpack.c.l.bf16 %v914
    %v917 = vpack.c.bf16 %v867, %v866
    %918 = vmatprep.subr.bf16.mxu0 0
    %919 = vmatpush1.bf16.msra.mxu0 %v153
    %920 = vmatprep.subr.bf16.mxu0 0
    %921 = vmatpush1.bf16.msra.mxu0 %v154
    %922 = vmatprep.subr.bf16.mxu0 0
    %923 = vmatpush1.bf16.msra.mxu0 %v155
    %924 = vmatprep.subr.bf16.mxu0 0
    %925 = vmatpush1.bf16.msra.mxu0 %v156
    %926 = vmatprep.subr.bf16.mxu0 0
    %927 = vmatpush1.bf16.msra.mxu0 %v157
    %928 = vmatprep.subr.bf16.mxu0 0
    %929 = vmatpush1.bf16.msra.mxu0 %v158
    %930 = vmatprep.subr.bf16.mxu0 0
    %931 = vmatpush1.bf16.msra.mxu0 %v159
    %932 = vmatprep.subr.bf16.mxu0 0
    %933 = vmatpush1.bf16.msra.mxu0 %v160
    %934 = vmatprep.subr.bf16.mxu0 0
    %935 = vmatpush1.bf16.msra.mxu0 0
    %936 = vmatprep.subr.bf16.mxu0 0
    %937 = vmatpush1.bf16.msra.mxu0 0
    %938 = vmatprep.subr.bf16.mxu0 0
    %939 = vmatpush1.bf16.msra.mxu0 0
    %940 = vmatprep.subr.bf16.mxu0 0
    %941 = vmatpush1.bf16.msra.mxu0 0
    %942 = vmatprep.subr.bf16.mxu0 0
    %943 = vmatpush1.bf16.msra.mxu0 0
    %944 = vmatprep.subr.bf16.mxu0 0
    %945 = vmatpush1.bf16.msra.mxu0 0
    %946 = vmatprep.subr.bf16.mxu0 0
    %947 = vmatpush1.bf16.msra.mxu0 0
    %948 = vmatprep.subr.bf16.mxu0 0
    %949 = vmatpush1.bf16.msra.mxu0 0
    %950 = vmatprep.mubr.bf16.mxu0 0
    %951 = vmatmul.mubr.bf16.gmra.mrb[0].mxu0 %v917
    %v952 = vpop.f32.mrb[0].mxu0
    %v953 = vadd.f32 0.0, %v952
    %v954 = vpop.f32.mrb[0].mxu0
    %v955 = vpop.f32.mrb[0].mxu0
    %v956 = vadd.f32 0.0, %v955
    %v957 = vpop.f32.mrb[0].mxu0
    %958 = vdwg.mxu0
    %v959 = vadd.f32 %v915, %v953
    %v960 = vadd.f32 %v916, %v956
    %v961 = vtanh.pop %v959
    %v962 = vtanh.pop %v960
    %v963 = vpack.c.bf16 %v911, %v910
    %964 = vmatprep.subr.bf16.mxu0 0
    %965 = vmatpush1.bf16.msra.mxu0 %v362
    %966 = vmatprep.subr.bf16.mxu0 0
    %967 = vmatpush1.bf16.msra.mxu0 %v363
    %968 = vmatprep.subr.bf16.mxu0 0
    %969 = vmatpush1.bf16.msra.mxu0 %v364
    %970 = vmatprep.subr.bf16.mxu0 0
    %971 = vmatpush1.bf16.msra.mxu0 %v365
    %972 = vmatprep.subr.bf16.mxu0 0
    %973 = vmatpush1.bf16.msra.mxu0 %v366
    %974 = vmatprep.subr.bf16.mxu0 0
    %975 = vmatpush1.bf16.msra.mxu0 %v367
    %976 = vmatprep.subr.bf16.mxu0 0
    %977 = vmatpush1.bf16.msra.mxu0 %v368
    %978 = vmatprep.subr.bf16.mxu0 0
    %979 = vmatpush1.bf16.msra.mxu0 %v369
    %980 = vmatprep.subr.bf16.mxu0 0
    %981 = vmatpush1.bf16.msra.mxu0 %v370
    %982 = vmatprep.subr.bf16.mxu0 0
    %983 = vmatpush1.bf16.msra.mxu0 %v371
    %984 = vmatprep.subr.bf16.mxu0 0
    %985 = vmatpush1.bf16.msra.mxu0 %v372
    %986 = vmatprep.subr.bf16.mxu0 0
    %987 = vmatpush1.bf16.msra.mxu0 %v373
    %988 = vmatprep.subr.bf16.mxu0 0
    %989 = vmatpush1.bf16.msra.mxu0 %v374
    %990 = vmatprep.subr.bf16.mxu0 0
    %991 = vmatpush1.bf16.msra.mxu0 %v375
    %992 = vmatprep.subr.bf16.mxu0 0
    %993 = vmatpush1.bf16.msra.mxu0 %v376
    %994 = vmatprep.subr.bf16.mxu0 0
    %995 = vmatpush1.bf16.msra.mxu0 %v377
    %996 = vmatprep.mubr.bf16.mxu0 %v963
    %997 = vmatmul.mubr.bf16.gmra.mrb[0].mxu0 %v917
    %v998 = vpop.f32.mrb[0].mxu0
    %v999 = vadd.f32 %v98, %v998
    %v1000 = vpop.f32.mrb[0].mxu0
    %v1001 = vpop.f32.mrb[0].mxu0
    %v1002 = vadd.f32 %v98, %v1001
    %v1003 = vpop.f32.mrb[0].mxu0
    %1004 = vdwg.mxu0
    %v1005 = vtanh.pop %v999
    %v1006 = vtanh.pop %v1002
    %v1007 = vpack.c.bf16 %v962, %v961
    %v1008 = vpack.c.bf16 %v1006, %v1005
    %1009 = vmatprep.subr.bf16.mxu0 0
    %1010 = vmatpush1.bf16.msra.mxu0 %v362
    %1011 = vmatprep.subr.bf16.mxu0 0
    %1012 = vmatpush1.bf16.msra.mxu0 %v363
    %1013 = vmatprep.subr.bf16.mxu0 0
    %1014 = vmatpush1.bf16.msra.mxu0 %v364
    %1015 = vmatprep.subr.bf16.mxu0 0
    %1016 = vmatpush1.bf16.msra.mxu0 %v365
    %1017 = vmatprep.subr.bf16.mxu0 0
    %1018 = vmatpush1.bf16.msra.mxu0 %v366
    %1019 = vmatprep.subr.bf16.mxu0 0
    %1020 = vmatpush1.bf16.msra.mxu0 %v367
    %1021 = vmatprep.subr.bf16.mxu0 0
    %1022 = vmatpush1.bf16.msra.mxu0 %v368
    %1023 = vmatprep.subr.bf16.mxu0 0
    %1024 = vmatpush1.bf16.msra.mxu0 %v369
    %1025 = vmatprep.subr.bf16.mxu0 0
    %1026 = vmatpush1.bf16.msra.mxu0 %v370
    %1027 = vmatprep.subr.bf16.mxu0 0
    %1028 = vmatpush1.bf16.msra.mxu0 %v371
    %1029 = vmatprep.subr.bf16.mxu0 0
    %1030 = vmatpush1.bf16.msra.mxu0 %v372
    %1031 = vmatprep.subr.bf16.mxu0 0
    %1032 = vmatpush1.bf16.msra.mxu0 %v373
    %1033 = vmatprep.subr.bf16.mxu0 0
    %1034 = vmatpush1.bf16.msra.mxu0 %v374
    %1035 = vmatprep.subr.bf16.mxu0 0
    %1036 = vmatpush1.bf16.msra.mxu0 %v375
    %1037 = vmatprep.subr.bf16.mxu0 0
    %1038 = vmatpush1.bf16.msra.mxu0 %v376
    %1039 = vmatprep.subr.bf16.mxu0 0
    %1040 = vmatpush1.bf16.msra.mxu0 %v377
    %1041 = vmatprep.mubr.bf16.mxu0 %v1008
    %1042 = vmatmul.mubr.bf16.gmra.mrb[0].mxu0 %v1007
    %v1043 = vpop.f32.mrb[0].mxu0
    %v1044 = vadd.f32 %v98, %v1043
    %v1045 = vpop.f32.mrb[0].mxu0
    %v1046 = vpop.f32.mrb[0].mxu0
    %v1047 = vadd.f32 %v98, %v1046
    %v1048 = vpop.f32.mrb[0].mxu0
    %1049 = vdwg.mxu0
    %v1050 = vtanh.pop %v1044
    %v1051 = vtanh.pop %v1047
    %1052 = vst [vmem:[#allocation2] sm:$0xff] %v961
    %1053 = vst [vmem:[#allocation2 + $0x8] sm:$0xff] %v962
    %1054 = vst [vmem:[%s90] sm:$0xff] %v1050
    %1055 = vst [vmem:[%s90 + $0x8] sm:$0xff] %v1051
    // Predicated region
    $region46: #{tpu_custom_call.1} parent=1 // pred_check
      %p1056 = pneg %p80
    $region47: #{tpu_custom_call.1} parent=1 // pred_check_branch
      %1058 = sbr.rel (%p1056) target = $region49
    $region48: #{tpu_custom_call.1} parent=1 // pred_region
      %v1059 = vpack.c.bf16 %v1051, %v1050
      %v1060 = vld [vmem:[#allocation9] sm:$0xf]
      %v1061 = vld [vmem:[#allocation9 + $0x4] sm:$0xf]
      %v1062 = vld [vmem:[#allocation9 + $0x8] sm:$0xf]
      %v1063 = vld [vmem:[#allocation9 + $0xc] sm:$0xf]
      %v1064 = vld [vmem:[#allocation9 + $0x10] sm:$0xf]
      %v1065 = vld [vmem:[#allocation9 + $0x14] sm:$0xf]
      %v1066 = vld [vmem:[#allocation9 + $0x18] sm:$0xf]
      %v1067 = vld [vmem:[#allocation9 + $0x1c] sm:$0xf]
      %v1068 = vld [vmem:[#allocation9 + $0x20] sm:$0xf]
      %v1069 = vld [vmem:[#allocation9 + $0x24] sm:$0xf]
      %v1070 = vld [vmem:[#allocation9 + $0x28] sm:$0xf]
      %v1071 = vld [vmem:[#allocation9 + $0x2c] sm:$0xf]
      %v1072 = vld [vmem:[#allocation9 + $0x30] sm:$0xf]
      %v1073 = vld [vmem:[#allocation9 + $0x34] sm:$0xf]
      %v1074 = vld [vmem:[#allocation9 + $0x38] sm:$0xf]
      %v1075 = vld [vmem:[#allocation9 + $0x3c] sm:$0xf]
      %v1076 = vld [vmem:[%s5] sm:$0x1]
      %v1078 = vlaneseq
      %v1079 = vshrl.u32 %v1078, 7
      %v1080 = vsub.s32 0, %v1079
      %v1081 = vrot.slane %v1076, %v1080
      %v1099 = vunpack.c.l.b16 %v1060
      %v1100 = vunpack.c.l.b16 %v1061
      %v1101 = vunpack.c.l.b16 %v1062
      %v1102 = vunpack.c.l.b16 %v1063
      %v1103 = vunpack.c.l.b16 %v1064
      %v1104 = vunpack.c.l.b16 %v1065
      %v1105 = vunpack.c.l.b16 %v1066
      %v1106 = vunpack.c.l.b16 %v1067
      %v1107 = vunpack.c.l.b16 %v1068
      %v1108 = vunpack.c.l.b16 %v1069
      %v1109 = vunpack.c.l.b16 %v1070
      %v1110 = vunpack.c.l.b16 %v1071
      %v1111 = vunpack.c.l.b16 %v1072
      %v1112 = vunpack.c.l.b16 %v1073
      %v1113 = vunpack.c.l.b16 %v1074
      %v1114 = vunpack.c.l.b16 %v1075
      %v1115 = vpack.c.b16 %v1100, %v1099
      %v1116 = vpack.c.b16 %v1102, %v1101
      %v1117 = vpack.c.b16 %v1104, %v1103
      %v1118 = vpack.c.b16 %v1106, %v1105
      %v1119 = vpack.c.b16 %v1108, %v1107
      %v1120 = vpack.c.b16 %v1110, %v1109
      %v1121 = vpack.c.b16 %v1112, %v1111
      %v1122 = vpack.c.b16 %v1114, %v1113
      %1131 = vmatprep.subr.bf16.mxu0 0
      %1132 = vmatpush1.bf16.msra.mxu0 %v1115
      %1133 = vmatprep.subr.bf16.mxu0 0
      %1134 = vmatpush1.bf16.msra.mxu0 %v1116
      %1135 = vmatprep.subr.bf16.mxu0 0
      %1136 = vmatpush1.bf16.msra.mxu0 %v1117
      %1137 = vmatprep.subr.bf16.mxu0 0
      %1138 = vmatpush1.bf16.msra.mxu0 %v1118
      %1139 = vmatprep.subr.bf16.mxu0 0
      %1140 = vmatpush1.bf16.msra.mxu0 %v1119
      %1141 = vmatprep.subr.bf16.mxu0 0
      %1142 = vmatpush1.bf16.msra.mxu0 %v1120
      %1143 = vmatprep.subr.bf16.mxu0 0
      %1144 = vmatpush1.bf16.msra.mxu0 %v1121
      %1145 = vmatprep.subr.bf16.mxu0 0
      %1146 = vmatpush1.bf16.msra.mxu0 %v1122
      %1147 = vmatprep.subr.bf16.mxu0 0
      %1148 = vmatpush1.bf16.msra.mxu0 0
      %1149 = vmatprep.subr.bf16.mxu0 0
      %1150 = vmatpush1.bf16.msra.mxu0 0
      %1151 = vmatprep.subr.bf16.mxu0 0
      %1152 = vmatpush1.bf16.msra.mxu0 0
      %1153 = vmatprep.subr.bf16.mxu0 0
      %1154 = vmatpush1.bf16.msra.mxu0 0
      %1155 = vmatprep.subr.bf16.mxu0 0
      %1156 = vmatpush1.bf16.msra.mxu0 0
      %1157 = vmatprep.subr.bf16.mxu0 0
      %1158 = vmatpush1.bf16.msra.mxu0 0
      %1159 = vmatprep.subr.bf16.mxu0 0
      %1160 = vmatpush1.bf16.msra.mxu0 0
      %1161 = vmatprep.subr.bf16.mxu0 0
      %1162 = vmatpush1.bf16.msra.mxu0 0
      %1163 = vmatprep.mubr.bf16.mxu0 0
      %1164 = vmatmul.mubr.bf16.gmra.mrb[0].mxu0 %v1059
      %v1165 = vpop.f32.mrb[0].mxu0
      %v1166 = vadd.f32 %v1081, %v1165
      %v1167 = vpop.f32.mrb[0].mxu0
      %v1168 = vpop.f32.mrb[0].mxu0
      %v1169 = vadd.f32 %v1081, %v1168
      %v1170 = vpop.f32.mrb[0].mxu0
      %1171 = vdwg.mxu0
      %1172 = vst [vmem:[#allocation11] sm:$0xff] %v1166
      %1173 = vst [vmem:[#allocation11 + $0x8] sm:$0xff] %v1169
    $region49: #{tpu_custom_call.1} parent=1 // pred_fallthru
      _
    // Predicated region
    $region50: #{tpu_custom_call.1} parent=1 // pred_check
      _
    $region51: #{tpu_custom_call.1} parent=1 // pred_check_branch
      %1175 = sbr.rel (0) target = $region53
    $region52: #{tpu_custom_call.1} parent=1 // pred_region
      %s1177 = ssub.s32 256, 256
      %1178 = vsyncadd [#allocation5], %s1177
      %s1179 = sshll.u32 [#allocation11], 4
      %s1180 = int_to_ptr.vmem [resolvable:$true] %s1179
      %1185 = dma.vmem_to_hbm [thread:$0]  %s1180, 256, %s6, [#allocation5], 128, 128, 8
    $region53: #{tpu_custom_call.1} parent=1 // pred_fallthru
      _
    // Predicated region
    $region54: #{tpu_custom_call.1} parent=1 // pred_check
      _
    $region55: #{tpu_custom_call.1} parent=1 // pred_check_branch
      %1187 = sbr.rel (0) target = $region57
    $region56: #{tpu_custom_call.1} parent=1 // pred_region
      %1188 = dma.done [#allocation5], 256
    $region57: #{tpu_custom_call.1} parent=1 // pred_fallthru
      _
    %1189 = vsyncpa [#allocation4], 1
    %1190 = vsyncpa [#allocation7], 1
    %1191 = vsyncpa [#allocation10], 1
    %1192 = vsyncpa [#allocation5], 1

// kernel: tpu_custom_call.1
$region0: #{tpu_custom_call.1}
  #allocation0 [shape = 'u32[]', space=smem, size = 0x4, offset = 0x4, fixed_abs, tag = 'smem constant byte address 0x4 - core index']
  #allocation1 [shape = 'u32[144,128]{1,0:T(1,128)}', space=vmem, size = 0x12000, scoped, tag = 'internal scratch']
  #allocation2 [shape = 'f32[2,16,128]{2,1,0:T(8,128)}', space=vmem, size = 0x4000, scoped, tag = 'scratch operand']
  %s0 = inlined_call_operand.hbm [shape: bf16[8,16,128], index: 0, kind: input, shape index: {}]
  %s1 = inlined_call_operand.hbm [shape: bf16[128,128], index: 1, kind: input, shape index: {}]
  %s2 = inlined_call_operand.hbm [shape: bf16[1,256,128], index: 2, kind: input, shape index: {}]
  %s3 = inlined_call_operand.vmem [shape: f32[1,1,128], index: 3, kind: input, shape index: {}]
  %s4 = inlined_call_operand.hbm [shape: bf16[128,128], index: 4, kind: input, shape index: {}]
  %s5 = inlined_call_operand.vmem [shape: f32[1,128], index: 5, kind: input, shape index: {}]
  %s6 = inlined_call_operand.hbm [shape: f32[16,128], index: 6, kind: output, shape index: {}]
  %s7 = sld [smem:[#allocation0]]
  $region58: #{tpu_custom_call.1} parent=0
    _
  %s9 = ssub.s32 1, %s7
  %s10 = scalar_select 0, %s9, %s7
  $region1: #{tpu_custom_call.1} parent=0
    #allocation3 [shape = 'u8[32768]{0}', space=vmem, size = 0x8000, scoped, tag = 'input window, operand 0, single buffered']
    #allocation4 [shape = 's32[1]{0}', space=sflag, size = 0x4, scoped, tag = 'scoped memory for tpu_custom_call.1']
    #allocation5 [shape = 's32[1]{0}', space=sflag, size = 0x4, scoped, tag = 'scoped memory for tpu_custom_call.1']
    #allocation6 [shape = 'u8[32768]{0}', space=vmem, size = 0x8000, scoped, tag = 'input window, operand 1, single buffered']
    #allocation7 [shape = 's32[1]{0}', space=sflag, size = 0x4, scoped, tag = 'scoped memory for tpu_custom_call.1']
    #allocation8 [shape = 'u8[65536]{0}', space=vmem, size = 0x10000, scoped, tag = 'input window, operand 2, single buffered']
    #allocation9 [shape = 'u8[32768]{0}', space=vmem, size = 0x8000, scoped, tag = 'input window, operand 4, single buffered']
    #allocation10 [shape = 's32[1]{0}', space=sflag, size = 0x4, scoped, tag = 'scoped memory for tpu_custom_call.1']
    #allocation11 [shape = 'u8[8192]{0}', space=vmem, size = 0x2000, scoped, tag = 'output window, operand 0, single buffered']
    %11 = vsyncpa [#allocation4], 0
    %12 = vsyncpa [#allocation7], 0
    %13 = vsyncpa [#allocation10], 0
    %14 = vsyncpa [#allocation5], 0
    // Predicated region
    $region2: #{tpu_custom_call.1} parent=1 // pred_check
      _
    $region3: #{tpu_custom_call.1} parent=1 // pred_check_branch
      %16 = sbr.rel (0) target = $region5
    $region4: #{tpu_custom_call.1} parent=1 // pred_region
      %s18 = ssub.s32 1024, 1024
      %19 = vsyncadd [#allocation4], %s18
      %s20 = sshll.u32 [#allocation3], 4
      %s21 = int_to_ptr.vmem [resolvable:$true] %s20
      %26 = dma.hbm_to_vmem [thread:$0]  %s0, 1024, %s21, [#allocation4], 64, 64, 4
    $region5: #{tpu_custom_call.1} parent=1 // pred_fallthru
      _
    // Predicated region
    $region6: #{tpu_custom_call.1} parent=1 // pred_check
      _
    $region7: #{tpu_custom_call.1} parent=1 // pred_check_branch
      %28 = sbr.rel (0) target = $region9
    $region8: #{tpu_custom_call.1} parent=1 // pred_region
      %s30 = ssub.s32 1024, 1024
      %31 = vsyncadd [#allocation7], %s30
      %s32 = sshll.u32 [#allocation6], 4
      %s33 = int_to_ptr.vmem [resolvable:$true] %s32
      %38 = dma.hbm_to_vmem [thread:$0]  %s1, 1024, %s33, [#allocation7], 64, 64, 4
    $region9: #{tpu_custom_call.1} parent=1 // pred_fallthru
      _
    // Predicated region
    $region10: #{tpu_custom_call.1} parent=1 // pred_check
      _
    $region11: #{tpu_custom_call.1} parent=1 // pred_check_branch
      %40 = sbr.rel (0) target = $region13
    $region12: #{tpu_custom_call.1} parent=1 // pred_region
      %s42 = ssub.s32 2048, 2048
      %43 = vsyncadd [#allocation7], %s42
      %s44 = sshll.u32 [#allocation8], 4
      %s45 = int_to_ptr.vmem [resolvable:$true] %s44
      %50 = dma.hbm_to_vmem [thread:$0]  %s2, 2048, %s45, [#allocation7], 64, 64, 4
    $region13: #{tpu_custom_call.1} parent=1 // pred_fallthru
      _
    // Predicated region
    $region14: #{tpu_custom_call.1} parent=1 // pred_check
      _
    $region15: #{tpu_custom_call.1} parent=1 // pred_check_branch
      %52 = sbr.rel (0) target = $region17
    $region16: #{tpu_custom_call.1} parent=1 // pred_region
      _
    $region17: #{tpu_custom_call.1} parent=1 // pred_fallthru
      _
    // Predicated region
    $region18: #{tpu_custom_call.1} parent=1 // pred_check
      _
    $region19: #{tpu_custom_call.1} parent=1 // pred_check_branch
      %54 = sbr.rel (0) target = $region21
    $region20: #{tpu_custom_call.1} parent=1 // pred_region
      %s56 = ssub.s32 1024, 1024
      %57 = vsyncadd [#allocation10], %s56
      %s58 = sshll.u32 [#allocation9], 4
      %s59 = int_to_ptr.vmem [resolvable:$true] %s58
      %64 = dma.hbm_to_vmem [thread:$0]  %s4, 1024, %s59, [#allocation10], 64, 64, 4
    $region21: #{tpu_custom_call.1} parent=1 // pred_fallthru
      _
    // Predicated region
    $region22: #{tpu_custom_call.1} parent=1 // pred_check
      _
    $region23: #{tpu_custom_call.1} parent=1 // pred_check_branch
      %66 = sbr.rel (0) target = $region25
    $region24: #{tpu_custom_call.1} parent=1 // pred_region
      _
    $region25: #{tpu_custom_call.1} parent=1 // pred_fallthru
      _
    // Predicated region
    $region26: #{tpu_custom_call.1} parent=1 // pred_check
      _
    $region27: #{tpu_custom_call.1} parent=1 // pred_check_branch
      %68 = sbr.rel (0) target = $region29
    $region28: #{tpu_custom_call.1} parent=1 // pred_region
      %69 = dma.done [#allocation4], 1024
    $region29: #{tpu_custom_call.1} parent=1 // pred_fallthru
      _
    // Predicated region
    $region30: #{tpu_custom_call.1} parent=1 // pred_check
      _
    $region31: #{tpu_custom_call.1} parent=1 // pred_check_branch
      %71 = sbr.rel (0) target = $region33
    $region32: #{tpu_custom_call.1} parent=1 // pred_region
      %72 = dma.done [#allocation7], 1024
    $region33: #{tpu_custom_call.1} parent=1 // pred_fallthru
      _
    // Predicated region
    $region34: #{tpu_custom_call.1} parent=1 // pred_check
      _
    $region35: #{tpu_custom_call.1} parent=1 // pred_check_branch
      %74 = sbr.rel (0) target = $region37
    $region36: #{tpu_custom_call.1} parent=1 // pred_region
      %75 = dma.done [#allocation7], 2048
    $region37: #{tpu_custom_call.1} parent=1 // pred_fallthru
      _
    // Predicated region
    $region38: #{tpu_custom_call.1} parent=1 // pred_check
      _
    $region39: #{tpu_custom_call.1} parent=1 // pred_check_branch
      %77 = sbr.rel (0) target = $region41
    $region40: #{tpu_custom_call.1} parent=1 // pred_region
      %78 = dma.done [#allocation10], 1024
    $region41: #{tpu_custom_call.1} parent=1 // pred_fallthru
      _
    %p80 = scmp.eq.s32.totalorder 0, 0
    // Predicated region
    $region42: #{tpu_custom_call.1} parent=1 // pred_check
      %p81 = pneg %p80
    $region43: #{tpu_custom_call.1} parent=1 // pred_check_branch
      %83 = sbr.rel (%p81) target = $region45
    $region44: #{tpu_custom_call.1} parent=1 // pred_region
      %84 = vst [vmem:[#allocation2] sm:$0xff] 0.0
      %85 = vst [vmem:[#allocation2 + $0x8] sm:$0xff] 0.0
      %86 = vst [vmem:[#allocation2 + $0x10] sm:$0xff] 0.0
      %87 = vst [vmem:[#allocation2 + $0x18] sm:$0xff] 0.0
    $region45: #{tpu_custom_call.1} parent=1 // pred_fallthru
      _
    %v88 = vld [vmem:[#allocation2] sm:$0xff]
    %v89 = vld [vmem:[#allocation2 + $0x8] sm:$0xff]
    %s90 = scalar_lea.vmem [#allocation2], 16
    %v91 = vld [vmem:[%s90] sm:$0xff]
    %v92 = vld [vmem:[%s90 + $0x8] sm:$0xff]
    %v93 = vld [vmem:[%s3] sm:$0x1]
    %v95 = vlaneseq
    %v96 = vshrl.u32 %v95, 7
    %v97 = vsub.s32 0, %v96
    %v98 = vrot.slane %v93, %v97
    %v100 = vld [vmem:[#allocation3] sm:$0xf]
    %v101 = vld [vmem:[#allocation3 + $0x4] sm:$0xf]
    %v102 = vunpack.c.l.bf16 %v100
    %v103 = vunpack.c.l.bf16 %v101
    %v104 = vpack.c.bf16 %v89, %v88
    %v105 = vld [vmem:[#allocation6] sm:$0xf]
    %v106 = vld [vmem:[#allocation6 + $0x4] sm:$0xf]
    %v107 = vld [vmem:[#allocation6 + $0x8] sm:$0xf]
    %v108 = vld [vmem:[#allocation6 + $0xc] sm:$0xf]
    %v109 = vld [vmem:[#allocation6 + $0x10] sm:$0xf]
    %v110 = vld [vmem:[#allocation6 + $0x14] sm:$0xf]
    %v111 = vld [vmem:[#allocation6 + $0x18] sm:$0xf]
    %v112 = vld [vmem:[#allocation6 + $0x1c] sm:$0xf]
    %v113 = vld [vmem:[#allocation6 + $0x20] sm:$0xf]
    %v114 = vld [vmem:[#allocation6 + $0x24] sm:$0xf]
    %v115 = vld [vmem:[#allocation6 + $0x28] sm:$0xf]
    %v116 = vld [vmem:[#allocation6 + $0x2c] sm:$0xf]
    %v117 = vld [vmem:[#allocation6 + $0x30] sm:$0xf]
    %v118 = vld [vmem:[#allocation6 + $0x34] sm:$0xf]
    %v119 = vld [vmem:[#allocation6 + $0x38] sm:$0xf]
    %v120 = vld [vmem:[#allocation6 + $0x3c] sm:$0xf]
    %v137 = vunpack.c.l.b16 %v105
    %v138 = vunpack.c.l.b16 %v106
    %v139 = vunpack.c.l.b16 %v107
    %v140 = vunpack.c.l.b16 %v108
    %v141 = vunpack.c.l.b16 %v109
    %v142 = vunpack.c.l.b16 %v110
    %v143 = vunpack.c.l.b16 %v111
    %v144 = vunpack.c.l.b16 %v112
    %v145 = vunpack.c.l.b16 %v113
    %v146 = vunpack.c.l.b16 %v114
    %v147 = vunpack.c.l.b16 %v115
    %v148 = vunpack.c.l.b16 %v116
    %v149 = vunpack.c.l.b16 %v117
    %v150 = vunpack.c.l.b16 %v118
    %v151 = vunpack.c.l.b16 %v119
    %v152 = vunpack.c.l.b16 %v120
    %v153 = vpack.c.b16 %v138, %v137
    %v154 = vpack.c.b16 %v140, %v139
    %v155 = vpack.c.b16 %v142, %v141
    %v156 = vpack.c.b16 %v144, %v143
    %v157 = vpack.c.b16 %v146, %v145
    %v158 = vpack.c.b16 %v148, %v147
    %v159 = vpack.c.b16 %v150, %v149
    %v160 = vpack.c.b16 %v152, %v151
    %169 = vmatprep.subr.bf16.mxu0 0
    %170 = vmatpush1.bf16.msra.mxu0 %v153
    %171 = vmatprep.subr.bf16.mxu0 0
    %172 = vmatpush1.bf16.msra.mxu0 %v154
    %173 = vmatprep.subr.bf16.mxu0 0
    %174 = vmatpush1.bf16.msra.mxu0 %v155
    %175 = vmatprep.subr.bf16.mxu0 0
    %176 = vmatpush1.bf16.msra.mxu0 %v156
    %177 = vmatprep.subr.bf16.mxu0 0
    %178 = vmatpush1.bf16.msra.mxu0 %v157
    %179 = vmatprep.subr.bf16.mxu0 0
    %180 = vmatpush1.bf16.msra.mxu0 %v158
    %181 = vmatprep.subr.bf16.mxu0 0
    %182 = vmatpush1.bf16.msra.mxu0 %v159
    %183 = vmatprep.subr.bf16.mxu0 0
    %184 = vmatpush1.bf16.msra.mxu0 %v160
    %185 = vmatprep.subr.bf16.mxu0 0
    %186 = vmatpush1.bf16.msra.mxu0 0
    %187 = vmatprep.subr.bf16.mxu0 0
    %188 = vmatpush1.bf16.msra.mxu0 0
    %189 = vmatprep.subr.bf16.mxu0 0
    %190 = vmatpush1.bf16.msra.mxu0 0
    %191 = vmatprep.subr.bf16.mxu0 0
    %192 = vmatpush1.bf16.msra.mxu0 0
    %193 = vmatprep.subr.bf16.mxu0 0
    %194 = vmatpush1.bf16.msra.mxu0 0
    %195 = vmatprep.subr.bf16.mxu0 0
    %196 = vmatpush1.bf16.msra.mxu0 0
    %197 = vmatprep.subr.bf16.mxu0 0
    %198 = vmatpush1.bf16.msra.mxu0 0
    %199 = vmatprep.subr.bf16.mxu0 0
    %200 = vmatpush1.bf16.msra.mxu0 0
    %201 = vmatprep.mubr.bf16.mxu0 0
    %202 = vmatmul.mubr.bf16.gmra.mrb[0].mxu0 %v104
    %v203 = vpop.f32.mrb[0].mxu0
    %v204 = vadd.f32 0.0, %v203
    %v205 = vpop.f32.mrb[0].mxu0
    %v206 = vpop.f32.mrb[0].mxu0
    %v207 = vadd.f32 0.0, %v206
    %v208 = vpop.f32.mrb[0].mxu0
    %209 = vdwg.mxu0
    %v210 = vadd.f32 %v102, %v204
    %v211 = vadd.f32 %v103, %v207
    %v212 = vtanh.pop %v210
    %v213 = vtanh.pop %v211
    %s214 = scalar_lea.vmem [#allocation3], 8
    %v215 = vld [vmem:[%s214] sm:$0xf]
    %v216 = vld [vmem:[%s214 + $0x4] sm:$0xf]
    %v217 = vunpack.c.l.bf16 %v215
    %v218 = vunpack.c.l.bf16 %v216
    %v219 = vpack.c.bf16 %v213, %v212
    %220 = vmatprep.subr.bf16.mxu0 0
    %221 = vmatpush1.bf16.msra.mxu0 %v153
    %222 = vmatprep.subr.bf16.mxu0 0
    %223 = vmatpush1.bf16.msra.mxu0 %v154
    %224 = vmatprep.subr.bf16.mxu0 0
    %225 = vmatpush1.bf16.msra.mxu0 %v155
    %226 = vmatprep.subr.bf16.mxu0 0
    %227 = vmatpush1.bf16.msra.mxu0 %v156
    %228 = vmatprep.subr.bf16.mxu0 0
    %229 = vmatpush1.bf16.msra.mxu0 %v157
    %230 = vmatprep.subr.bf16.mxu0 0
    %231 = vmatpush1.bf16.msra.mxu0 %v158
    %232 = vmatprep.subr.bf16.mxu0 0
    %233 = vmatpush1.bf16.msra.mxu0 %v159
    %234 = vmatprep.subr.bf16.mxu0 0
    %235 = vmatpush1.bf16.msra.mxu0 %v160
    %236 = vmatprep.subr.bf16.mxu0 0
    %237 = vmatpush1.bf16.msra.mxu0 0
    %238 = vmatprep.subr.bf16.mxu0 0
    %239 = vmatpush1.bf16.msra.mxu0 0
    %240 = vmatprep.subr.bf16.mxu0 0
    %241 = vmatpush1.bf16.msra.mxu0 0
    %242 = vmatprep.subr.bf16.mxu0 0
    %243 = vmatpush1.bf16.msra.mxu0 0
    %244 = vmatprep.subr.bf16.mxu0 0
    %245 = vmatpush1.bf16.msra.mxu0 0
    %246 = vmatprep.subr.bf16.mxu0 0
    %247 = vmatpush1.bf16.msra.mxu0 0
    %248 = vmatprep.subr.bf16.mxu0 0
    %249 = vmatpush1.bf16.msra.mxu0 0
    %250 = vmatprep.subr.bf16.mxu0 0
    %251 = vmatpush1.bf16.msra.mxu0 0
    %252 = vmatprep.mubr.bf16.mxu0 0
    %253 = vmatmul.mubr.bf16.gmra.mrb[0].mxu0 %v219
    %v254 = vpop.f32.mrb[0].mxu0
    %v255 = vadd.f32 0.0, %v254
    %v256 = vpop.f32.mrb[0].mxu0
    %v257 = vpop.f32.mrb[0].mxu0
    %v258 = vadd.f32 0.0, %v257
    %v259 = vpop.f32.mrb[0].mxu0
    %260 = vdwg.mxu0
    %v261 = vadd.f32 %v217, %v255
    %v262 = vadd.f32 %v218, %v258
    %v263 = vtanh.pop %v261
    %v264 = vtanh.pop %v262
    %v265 = vpack.c.bf16 %v92, %v91
    %v266 = vld [vmem:[#allocation8] sm:$0xf]
    %v267 = vld [vmem:[#allocation8 + $0x4] sm:$0xf]
    %v268 = vld [vmem:[#allocation8 + $0x8] sm:$0xf]
    %v269 = vld [vmem:[#allocation8 + $0xc] sm:$0xf]
    %v270 = vld [vmem:[#allocation8 + $0x10] sm:$0xf]
    %v271 = vld [vmem:[#allocation8 + $0x14] sm:$0xf]
    %v272 = vld [vmem:[#allocation8 + $0x18] sm:$0xf]
    %v273 = vld [vmem:[#allocation8 + $0x1c] sm:$0xf]
    %v274 = vld [vmem:[#allocation8 + $0x20] sm:$0xf]
    %v275 = vld [vmem:[#allocation8 + $0x24] sm:$0xf]
    %v276 = vld [vmem:[#allocation8 + $0x28] sm:$0xf]
    %v277 = vld [vmem:[#allocation8 + $0x2c] sm:$0xf]
    %v278 = vld [vmem:[#allocation8 + $0x30] sm:$0xf]
    %v279 = vld [vmem:[#allocation8 + $0x34] sm:$0xf]
    %v280 = vld [vmem:[#allocation8 + $0x38] sm:$0xf]
    %v281 = vld [vmem:[#allocation8 + $0x3c] sm:$0xf]
    %v282 = vld [vmem:[#allocation8 + $0x40] sm:$0xf]
    %v283 = vld [vmem:[#allocation8 + $0x44] sm:$0xf]
    %v284 = vld [vmem:[#allocation8 + $0x48] sm:$0xf]
    %v285 = vld [vmem:[#allocation8 + $0x4c] sm:$0xf]
    %v286 = vld [vmem:[#allocation8 + $0x50] sm:$0xf]
    %v287 = vld [vmem:[#allocation8 + $0x54] sm:$0xf]
    %v288 = vld [vmem:[#allocation8 + $0x58] sm:$0xf]
    %v289 = vld [vmem:[#allocation8 + $0x5c] sm:$0xf]
    %v290 = vld [vmem:[#allocation8 + $0x60] sm:$0xf]
    %v291 = vld [vmem:[#allocation8 + $0x64] sm:$0xf]
    %v292 = vld [vmem:[#allocation8 + $0x68] sm:$0xf]
    %v293 = vld [vmem:[#allocation8 + $0x6c] sm:$0xf]
    %v294 = vld [vmem:[#allocation8 + $0x70] sm:$0xf]
    %v295 = vld [vmem:[#allocation8 + $0x74] sm:$0xf]
    %v296 = vld [vmem:[#allocation8 + $0x78] sm:$0xf]
    %v297 = vld [vmem:[#allocation8 + $0x7c] sm:$0xf]
    %v330 = vunpack.c.l.b16 %v266
    %v331 = vunpack.c.l.b16 %v267
    %v332 = vunpack.c.l.b16 %v268
    %v333 = vunpack.c.l.b16 %v269
    %v334 = vunpack.c.l.b16 %v270
    %v335 = vunpack.c.l.b16 %v271
    %v336 = vunpack.c.l.b16 %v272
    %v337 = vunpack.c.l.b16 %v273
    %v338 = vunpack.c.l.b16 %v274
    %v339 = vunpack.c.l.b16 %v275
    %v340 = vunpack.c.l.b16 %v276
    %v341 = vunpack.c.l.b16 %v277
    %v342 = vunpack.c.l.b16 %v278
    %v343 = vunpack.c.l.b16 %v279
    %v344 = vunpack.c.l.b16 %v280
    %v345 = vunpack.c.l.b16 %v281
    %v346 = vunpack.c.l.b16 %v282
    %v347 = vunpack.c.l.b16 %v283
    %v348 = vunpack.c.l.b16 %v284
    %v349 = vunpack.c.l.b16 %v285
    %v350 = vunpack.c.l.b16 %v286
    %v351 = vunpack.c.l.b16 %v287
    %v352 = vunpack.c.l.b16 %v288
    %v353 = vunpack.c.l.b16 %v289
    %v354 = vunpack.c.l.b16 %v290
    %v355 = vunpack.c.l.b16 %v291
    %v356 = vunpack.c.l.b16 %v292
    %v357 = vunpack.c.l.b16 %v293
    %v358 = vunpack.c.l.b16 %v294
    %v359 = vunpack.c.l.b16 %v295
    %v360 = vunpack.c.l.b16 %v296
    %v361 = vunpack.c.l.b16 %v297
    %v362 = vpack.c.b16 %v331, %v330
    %v363 = vpack.c.b16 %v333, %v332
    %v364 = vpack.c.b16 %v335, %v334
    %v365 = vpack.c.b16 %v337, %v336
    %v366 = vpack.c.b16 %v339, %v338
    %v367 = vpack.c.b16 %v341, %v340
    %v368 = vpack.c.b16 %v343, %v342
    %v369 = vpack.c.b16 %v345, %v344
    %v370 = vpack.c.b16 %v347, %v346
    %v371 = vpack.c.b16 %v349, %v348
    %v372 = vpack.c.b16 %v351, %v350
    %v373 = vpack.c.b16 %v353, %v352
    %v374 = vpack.c.b16 %v355, %v354
    %v375 = vpack.c.b16 %v357, %v356
    %v376 = vpack.c.b16 %v359, %v358
    %v377 = vpack.c.b16 %v361, %v360
    %394 = vmatprep.subr.bf16.mxu0 0
    %395 = vmatpush1.bf16.msra.mxu0 %v362
    %396 = vmatprep.subr.bf16.mxu0 0
    %397 = vmatpush1.bf16.msra.mxu0 %v363
    %398 = vmatprep.subr.bf16.mxu0 0
    %399 = vmatpush1.bf16.msra.mxu0 %v364
    %400 = vmatprep.subr.bf16.mxu0 0
    %401 = vmatpush1.bf16.msra.mxu0 %v365
    %402 = vmatprep.subr.bf16.mxu0 0
    %403 = vmatpush1.bf16.msra.mxu0 %v366
    %404 = vmatprep.subr.bf16.mxu0 0
    %405 = vmatpush1.bf16.msra.mxu0 %v367
    %406 = vmatprep.subr.bf16.mxu0 0
    %407 = vmatpush1.bf16.msra.mxu0 %v368
    %408 = vmatprep.subr.bf16.mxu0 0
    %409 = vmatpush1.bf16.msra.mxu0 %v369
    %410 = vmatprep.subr.bf16.mxu0 0
    %411 = vmatpush1.bf16.msra.mxu0 %v370
    %412 = vmatprep.subr.bf16.mxu0 0
    %413 = vmatpush1.bf16.msra.mxu0 %v371
    %414 = vmatprep.subr.bf16.mxu0 0
    %415 = vmatpush1.bf16.msra.mxu0 %v372
    %416 = vmatprep.subr.bf16.mxu0 0
    %417 = vmatpush1.bf16.msra.mxu0 %v373
    %418 = vmatprep.subr.bf16.mxu0 0
    %419 = vmatpush1.bf16.msra.mxu0 %v374
    %420 = vmatprep.subr.bf16.mxu0 0
    %421 = vmatpush1.bf16.msra.mxu0 %v375
    %422 = vmatprep.subr.bf16.mxu0 0
    %423 = vmatpush1.bf16.msra.mxu0 %v376
    %424 = vmatprep.subr.bf16.mxu0 0
    %425 = vmatpush1.bf16.msra.mxu0 %v377
    %426 = vmatprep.mubr.bf16.mxu0 %v265
    %427 = vmatmul.mubr.bf16.gmra.mrb[0].mxu0 %v219
    %v428 = vpop.f32.mrb[0].mxu0
    %v429 = vadd.f32 %v98, %v428
    %v430 = vpop.f32.mrb[0].mxu0
    %v431 = vpop.f32.mrb[0].mxu0
    %v432 = vadd.f32 %v98, %v431
    %v433 = vpop.f32.mrb[0].mxu0
    %434 = vdwg.mxu0
    %v435 = vtanh.pop %v429
    %v436 = vtanh.pop %v432
    %s437 = scalar_lea.vmem [#allocation3], 16
    %v438 = vld [vmem:[%s437] sm:$0xf]
    %v439 = vld [vmem:[%s437 + $0x4] sm:$0xf]
    %v440 = vunpack.c.l.bf16 %v438
    %v441 = vunpack.c.l.bf16 %v439
    %v442 = vpack.c.bf16 %v264, %v263
    %443 = vmatprep.subr.bf16.mxu0 0
    %444 = vmatpush1.bf16.msra.mxu0 %v153
    %445 = vmatprep.subr.bf16.mxu0 0
    %446 = vmatpush1.bf16.msra.mxu0 %v154
    %447 = vmatprep.subr.bf16.mxu0 0
    %448 = vmatpush1.bf16.msra.mxu0 %v155
    %449 = vmatprep.subr.bf16.mxu0 0
    %450 = vmatpush1.bf16.msra.mxu0 %v156
    %451 = vmatprep.subr.bf16.mxu0 0
    %452 = vmatpush1.bf16.msra.mxu0 %v157
    %453 = vmatprep.subr.bf16.mxu0 0
    %454 = vmatpush1.bf16.msra.mxu0 %v158
    %455 = vmatprep.subr.bf16.mxu0 0
    %456 = vmatpush1.bf16.msra.mxu0 %v159
    %457 = vmatprep.subr.bf16.mxu0 0
    %458 = vmatpush1.bf16.msra.mxu0 %v160
    %459 = vmatprep.subr.bf16.mxu0 0
    %460 = vmatpush1.bf16.msra.mxu0 0
    %461 = vmatprep.subr.bf16.mxu0 0
    %462 = vmatpush1.bf16.msra.mxu0 0
    %463 = vmatprep.subr.bf16.mxu0 0
    %464 = vmatpush1.bf16.msra.mxu0 0
    %465 = vmatprep.subr.bf16.mxu0 0
    %466 = vmatpush1.bf16.msra.mxu0 0
    %467 = vmatprep.subr.bf16.mxu0 0
    %468 = vmatpush1.bf16.msra.mxu0 0
    %469 = vmatprep.subr.bf16.mxu0 0
    %470 = vmatpush1.bf16.msra.mxu0 0
    %471 = vmatprep.subr.bf16.mxu0 0
    %472 = vmatpush1.bf16.msra.mxu0 0
    %473 = vmatprep.subr.bf16.mxu0 0
    %474 = vmatpush1.bf16.msra.mxu0 0
    %475 = vmatprep.mubr.bf16.mxu0 0
    %476 = vmatmul.mubr.bf16.gmra.mrb[0].mxu0 %v442
    %v477 = vpop.f32.mrb[0].mxu0
    %v478 = vadd.f32 0.0, %v477
    %v479 = vpop.f32.mrb[0].mxu0
    %v480 = vpop.f32.mrb[0].mxu0
    %v481 = vadd.f32 0.0, %v480
    %v482 = vpop.f32.mrb[0].mxu0
    %483 = vdwg.mxu0
    %v484 = vadd.f32 %v440, %v478
    %v485 = vadd.f32 %v441, %v481
    %v486 = vtanh.pop %v484
    %v487 = vtanh.pop %v485
    %v488 = vpack.c.bf16 %v436, %v435
    %489 = vmatprep.subr.bf16.mxu0 0
    %490 = vmatpush1.bf16.msra.mxu0 %v362
    %491 = vmatprep.subr.bf16.mxu0 0
    %492 = vmatpush1.bf16.msra.mxu0 %v363
    %493 = vmatprep.subr.bf16.mxu0 0
    %494 = vmatpush1.bf16.msra.mxu0 %v364
    %495 = vmatprep.subr.bf16.mxu0 0
    %496 = vmatpush1.bf16.msra.mxu0 %v365
    %497 = vmatprep.subr.bf16.mxu0 0
    %498 = vmatpush1.bf16.msra.mxu0 %v366
    %499 = vmatprep.subr.bf16.mxu0 0
    %500 = vmatpush1.bf16.msra.mxu0 %v367
    %501 = vmatprep.subr.bf16.mxu0 0
    %502 = vmatpush1.bf16.msra.mxu0 %v368
    %503 = vmatprep.subr.bf16.mxu0 0
    %504 = vmatpush1.bf16.msra.mxu0 %v369
    %505 = vmatprep.subr.bf16.mxu0 0
    %506 = vmatpush1.bf16.msra.mxu0 %v370
    %507 = vmatprep.subr.bf16.mxu0 0
    %508 = vmatpush1.bf16.msra.mxu0 %v371
    %509 = vmatprep.subr.bf16.mxu0 0
    %510 = vmatpush1.bf16.msra.mxu0 %v372
    %511 = vmatprep.subr.bf16.mxu0 0
    %512 = vmatpush1.bf16.msra.mxu0 %v373
    %513 = vmatprep.subr.bf16.mxu0 0
    %514 = vmatpush1.bf16.msra.mxu0 %v374
    %515 = vmatprep.subr.bf16.mxu0 0
    %516 = vmatpush1.bf16.msra.mxu0 %v375
    %517 = vmatprep.subr.bf16.mxu0 0
    %518 = vmatpush1.bf16.msra.mxu0 %v376
    %519 = vmatprep.subr.bf16.mxu0 0
    %520 = vmatpush1.bf16.msra.mxu0 %v377
    %521 = vmatprep.mubr.bf16.mxu0 %v488
    %522 = vmatmul.mubr.bf16.gmra.mrb[0].mxu0 %v442
    %v523 = vpop.f32.mrb[0].mxu0
    %v524 = vadd.f32 %v98, %v523
    %v525 = vpop.f32.mrb[0].mxu0
    %v526 = vpop.f32.mrb[0].mxu0
    %v527 = vadd.f32 %v98, %v526
    %v528 = vpop.f32.mrb[0].mxu0
    %529 = vdwg.mxu0
    %v530 = vtanh.pop %v524
    %v531 = vtanh.pop %v527
    %s532 = scalar_lea.vmem [#allocation3], 24
    %v533 = vld [vmem:[%s532] sm:$0xf]
    %v534 = vld [vmem:[%s532 + $0x4] sm:$0xf]
    %v535 = vunpack.c.l.bf16 %v533
    %v536 = vunpack.c.l.bf16 %v534
    %v537 = vpack.c.bf16 %v487, %v486
    %538 = vmatprep.subr.bf16.mxu0 0
    %539 = vmatpush1.bf16.msra.mxu0 %v153
    %540 = vmatprep.subr.bf16.mxu0 0
    %541 = vmatpush1.bf16.msra.mxu0 %v154
    %542 = vmatprep.subr.bf16.mxu0 0
    %543 = vmatpush1.bf16.msra.mxu0 %v155
    %544 = vmatprep.subr.bf16.mxu0 0
    %545 = vmatpush1.bf16.msra.mxu0 %v156
    %546 = vmatprep.subr.bf16.mxu0 0
    %547 = vmatpush1.bf16.msra.mxu0 %v157
    %548 = vmatprep.subr.bf16.mxu0 0
    %549 = vmatpush1.bf16.msra.mxu0 %v158
    %550 = vmatprep.subr.bf16.mxu0 0
    %551 = vmatpush1.bf16.msra.mxu0 %v159
    %552 = vmatprep.subr.bf16.mxu0 0
    %553 = vmatpush1.bf16.msra.mxu0 %v160
    %554 = vmatprep.subr.bf16.mxu0 0
    %555 = vmatpush1.bf16.msra.mxu0 0
    %556 = vmatprep.subr.bf16.mxu0 0
    %557 = vmatpush1.bf16.msra.mxu0 0
    %558 = vmatprep.subr.bf16.mxu0 0
    %559 = vmatpush1.bf16.msra.mxu0 0
    %560 = vmatprep.subr.bf16.mxu0 0
    %561 = vmatpush1.bf16.msra.mxu0 0
    %562 = vmatprep.subr.bf16.mxu0 0
    %563 = vmatpush1.bf16.msra.mxu0 0
    %564 = vmatprep.subr.bf16.mxu0 0
    %565 = vmatpush1.bf16.msra.mxu0 0
    %566 = vmatprep.subr.bf16.mxu0 0
    %567 = vmatpush1.bf16.msra.mxu0 0
    %568 = vmatprep.subr.bf16.mxu0 0
    %569 = vmatpush1.bf16.msra.mxu0 0
    %570 = vmatprep.mubr.bf16.mxu0 0
    %571 = vmatmul.mubr.bf16.gmra.mrb[0].mxu0 %v537
    %v572 = vpop.f32.mrb[0].mxu0
    %v573 = vadd.f32 0.0, %v572
    %v574 = vpop.f32.mrb[0].mxu0
    %v575 = vpop.f32.mrb[0].mxu0
    %v576 = vadd.f32 0.0, %v575
    %v577 = vpop.f32.mrb[0].mxu0
    %578 = vdwg.mxu0
    %v579 = vadd.f32 %v535, %v573
    %v580 = vadd.f32 %v536, %v576
    %v581 = vtanh.pop %v579
    %v582 = vtanh.pop %v580
    %v583 = vpack.c.bf16 %v531, %v530
    %584 = vmatprep.subr.bf16.mxu0 0
    %585 = vmatpush1.bf16.msra.mxu0 %v362
    %586 = vmatprep.subr.bf16.mxu0 0
    %587 = vmatpush1.bf16.msra.mxu0 %v363
    %588 = vmatprep.subr.bf16.mxu0 0
    %589 = vmatpush1.bf16.msra.mxu0 %v364
    %590 = vmatprep.subr.bf16.mxu0 0
    %591 = vmatpush1.bf16.msra.mxu0 %v365
    %592 = vmatprep.subr.bf16.mxu0 0
    %593 = vmatpush1.bf16.msra.mxu0 %v366
    %594 = vmatprep.subr.bf16.mxu0 0
    %595 = vmatpush1.bf16.msra.mxu0 %v367
    %596 = vmatprep.subr.bf16.mxu0 0
    %597 = vmatpush1.bf16.msra.mxu0 %v368
    %598 = vmatprep.subr.bf16.mxu0 0
    %599 = vmatpush1.bf16.msra.mxu0 %v369
    %600 = vmatprep.subr.bf16.mxu0 0
    %601 = vmatpush1.bf16.msra.mxu0 %v370
    %602 = vmatprep.subr.bf16.mxu0 0
    %603 = vmatpush1.bf16.msra.mxu0 %v371
    %604 = vmatprep.subr.bf16.mxu0 0
    %605 = vmatpush1.bf16.msra.mxu0 %v372
    %606 = vmatprep.subr.bf16.mxu0 0
    %607 = vmatpush1.bf16.msra.mxu0 %v373
    %608 = vmatprep.subr.bf16.mxu0 0
    %609 = vmatpush1.bf16.msra.mxu0 %v374
    %610 = vmatprep.subr.bf16.mxu0 0
    %611 = vmatpush1.bf16.msra.mxu0 %v375
    %612 = vmatprep.subr.bf16.mxu0 0
    %613 = vmatpush1.bf16.msra.mxu0 %v376
    %614 = vmatprep.subr.bf16.mxu0 0
    %615 = vmatpush1.bf16.msra.mxu0 %v377
    %616 = vmatprep.mubr.bf16.mxu0 %v583
    %617 = vmatmul.mubr.bf16.gmra.mrb[0].mxu0 %v537
    %v618 = vpop.f32.mrb[0].mxu0
    %v619 = vadd.f32 %v98, %v618
    %v620 = vpop.f32.mrb[0].mxu0
    %v621 = vpop.f32.mrb[0].mxu0
    %v622 = vadd.f32 %v98, %v621
    %v623 = vpop.f32.mrb[0].mxu0
    %624 = vdwg.mxu0
    %v625 = vtanh.pop %v619
    %v626 = vtanh.pop %v622
    %s627 = scalar_lea.vmem [#allocation3], 32
    %v628 = vld [vmem:[%s627] sm:$0xf]
    %v629 = vld [vmem:[%s627 + $0x4] sm:$0xf]
    %v630 = vunpack.c.l.bf16 %v628
    %v631 = vunpack.c.l.bf16 %v629
    %v632 = vpack.c.bf16 %v582, %v581
    %633 = vmatprep.subr.bf16.mxu0 0
    %634 = vmatpush1.bf16.msra.mxu0 %v153
    %635 = vmatprep.subr.bf16.mxu0 0
    %636 = vmatpush1.bf16.msra.mxu0 %v154
    %637 = vmatprep.subr.bf16.mxu0 0
    %638 = vmatpush1.bf16.msra.mxu0 %v155
    %639 = vmatprep.subr.bf16.mxu0 0
    %640 = vmatpush1.bf16.msra.mxu0 %v156
    %641 = vmatprep.subr.bf16.mxu0 0
    %642 = vmatpush1.bf16.msra.mxu0 %v157
    %643 = vmatprep.subr.bf16.mxu0 0
    %644 = vmatpush1.bf16.msra.mxu0 %v158
    %645 = vmatprep.subr.bf16.mxu0 0
    %646 = vmatpush1.bf16.msra.mxu0 %v159
    %647 = vmatprep.subr.bf16.mxu0 0
    %648 = vmatpush1.bf16.msra.mxu0 %v160
    %649 = vmatprep.subr.bf16.mxu0 0
    %650 = vmatpush1.bf16.msra.mxu0 0
    %651 = vmatprep.subr.bf16.mxu0 0
    %652 = vmatpush1.bf16.msra.mxu0 0
    %653 = vmatprep.subr.bf16.mxu0 0
    %654 = vmatpush1.bf16.msra.mxu0 0
    %655 = vmatprep.subr.bf16.mxu0 0
    %656 = vmatpush1.bf16.msra.mxu0 0
    %657 = vmatprep.subr.bf16.mxu0 0
    %658 = vmatpush1.bf16.msra.mxu0 0
    %659 = vmatprep.subr.bf16.mxu0 0
    %660 = vmatpush1.bf16.msra.mxu0 0
    %661 = vmatprep.subr.bf16.mxu0 0
    %662 = vmatpush1.bf16.msra.mxu0 0
    %663 = vmatprep.subr.bf16.mxu0 0
    %664 = vmatpush1.bf16.msra.mxu0 0
    %665 = vmatprep.mubr.bf16.mxu0 0
    %666 = vmatmul.mubr.bf16.gmra.mrb[0].mxu0 %v632
    %v667 = vpop.f32.mrb[0].mxu0
    %v668 = vadd.f32 0.0, %v667
    %v669 = vpop.f32.mrb[0].mxu0
    %v670 = vpop.f32.mrb[0].mxu0
    %v671 = vadd.f32 0.0, %v670
    %v672 = vpop.f32.mrb[0].mxu0
    %673 = vdwg.mxu0
    %v674 = vadd.f32 %v630, %v668
    %v675 = vadd.f32 %v631, %v671
    %v676 = vtanh.pop %v674
    %v677 = vtanh.pop %v675
    %v678 = vpack.c.bf16 %v626, %v625
    %679 = vmatprep.subr.bf16.mxu0 0
    %680 = vmatpush1.bf16.msra.mxu0 %v362
    %681 = vmatprep.subr.bf16.mxu0 0
    %682 = vmatpush1.bf16.msra.mxu0 %v363
    %683 = vmatprep.subr.bf16.mxu0 0
    %684 = vmatpush1.bf16.msra.mxu0 %v364
    %685 = vmatprep.subr.bf16.mxu0 0
    %686 = vmatpush1.bf16.msra.mxu0 %v365
    %687 = vmatprep.subr.bf16.mxu0 0
    %688 = vmatpush1.bf16.msra.mxu0 %v366
    %689 = vmatprep.subr.bf16.mxu0 0
    %690 = vmatpush1.bf16.msra.mxu0 %v367
    %691 = vmatprep.subr.bf16.mxu0 0
    %692 = vmatpush1.bf16.msra.mxu0 %v368
    %693 = vmatprep.subr.bf16.mxu0 0
    %694 = vmatpush1.bf16.msra.mxu0 %v369
    %695 = vmatprep.subr.bf16.mxu0 0
    %696 = vmatpush1.bf16.msra.mxu0 %v370
    %697 = vmatprep.subr.bf16.mxu0 0
    %698 = vmatpush1.bf16.msra.mxu0 %v371
    %699 = vmatprep.subr.bf16.mxu0 0
    %700 = vmatpush1.bf16.msra.mxu0 %v372
    %701 = vmatprep.subr.bf16.mxu0 0
    %702 = vmatpush1.bf16.msra.mxu0 %v373
    %703 = vmatprep.subr.bf16.mxu0 0
    %704 = vmatpush1.bf16.msra.mxu0 %v374
    %705 = vmatprep.subr.bf16.mxu0 0
    %706 = vmatpush1.bf16.msra.mxu0 %v375
    %707 = vmatprep.subr.bf16.mxu0 0
    %708 = vmatpush1.bf16.msra.mxu0 %v376
    %709 = vmatprep.subr.bf16.mxu0 0
    %710 = vmatpush1.bf16.msra.mxu0 %v377
    %711 = vmatprep.mubr.bf16.mxu0 %v678
    %712 = vmatmul.mubr.bf16.gmra.mrb[0].mxu0 %v632
    %v713 = vpop.f32.mrb[0].mxu0
    %v714 = vadd.f32 %v98, %v713
    %v715 = vpop.f32.mrb[0].mxu0
    %v716 = vpop.f32.mrb[0].mxu0
    %v717 = vadd.f32 %v98, %v716
    %v718 = vpop.f32.mrb[0].mxu0
    %719 = vdwg.mxu0
    %v720 = vtanh.pop %v714
    %v721 = vtanh.pop %v717
    %s722 = scalar_lea.vmem [#allocation3], 40
    %v723 = vld [vmem:[%s722] sm:$0xf]
    %v724 = vld [vmem:[%s722 + $0x4] sm:$0xf]
    %v725 = vunpack.c.l.bf16 %v723
    %v726 = vunpack.c.l.bf16 %v724
    %v727 = vpack.c.bf16 %v677, %v676
    %728 = vmatprep.subr.bf16.mxu0 0
    %729 = vmatpush1.bf16.msra.mxu0 %v153
    %730 = vmatprep.subr.bf16.mxu0 0
    %731 = vmatpush1.bf16.msra.mxu0 %v154
    %732 = vmatprep.subr.bf16.mxu0 0
    %733 = vmatpush1.bf16.msra.mxu0 %v155
    %734 = vmatprep.subr.bf16.mxu0 0
    %735 = vmatpush1.bf16.msra.mxu0 %v156
    %736 = vmatprep.subr.bf16.mxu0 0
    %737 = vmatpush1.bf16.msra.mxu0 %v157
    %738 = vmatprep.subr.bf16.mxu0 0
    %739 = vmatpush1.bf16.msra.mxu0 %v158
    %740 = vmatprep.subr.bf16.mxu0 0
    %741 = vmatpush1.bf16.msra.mxu0 %v159
    %742 = vmatprep.subr.bf16.mxu0 0
    %743 = vmatpush1.bf16.msra.mxu0 %v160
    %744 = vmatprep.subr.bf16.mxu0 0
    %745 = vmatpush1.bf16.msra.mxu0 0
    %746 = vmatprep.subr.bf16.mxu0 0
    %747 = vmatpush1.bf16.msra.mxu0 0
    %748 = vmatprep.subr.bf16.mxu0 0
    %749 = vmatpush1.bf16.msra.mxu0 0
    %750 = vmatprep.subr.bf16.mxu0 0
    %751 = vmatpush1.bf16.msra.mxu0 0
    %752 = vmatprep.subr.bf16.mxu0 0
    %753 = vmatpush1.bf16.msra.mxu0 0
    %754 = vmatprep.subr.bf16.mxu0 0
    %755 = vmatpush1.bf16.msra.mxu0 0
    %756 = vmatprep.subr.bf16.mxu0 0
    %757 = vmatpush1.bf16.msra.mxu0 0
    %758 = vmatprep.subr.bf16.mxu0 0
    %759 = vmatpush1.bf16.msra.mxu0 0
    %760 = vmatprep.mubr.bf16.mxu0 0
    %761 = vmatmul.mubr.bf16.gmra.mrb[0].mxu0 %v727
    %v762 = vpop.f32.mrb[0].mxu0
    %v763 = vadd.f32 0.0, %v762
    %v764 = vpop.f32.mrb[0].mxu0
    %v765 = vpop.f32.mrb[0].mxu0
    %v766 = vadd.f32 0.0, %v765
    %v767 = vpop.f32.mrb[0].mxu0
    %768 = vdwg.mxu0
    %v769 = vadd.f32 %v725, %v763
    %v770 = vadd.f32 %v726, %v766
    %v771 = vtanh.pop %v769
    %v772 = vtanh.pop %v770
    %v773 = vpack.c.bf16 %v721, %v720
    %774 = vmatprep.subr.bf16.mxu0 0
    %775 = vmatpush1.bf16.msra.mxu0 %v362
    %776 = vmatprep.subr.bf16.mxu0 0
    %777 = vmatpush1.bf16.msra.mxu0 %v363
    %778 = vmatprep.subr.bf16.mxu0 0
    %779 = vmatpush1.bf16.msra.mxu0 %v364
    %780 = vmatprep.subr.bf16.mxu0 0
    %781 = vmatpush1.bf16.msra.mxu0 %v365
    %782 = vmatprep.subr.bf16.mxu0 0
    %783 = vmatpush1.bf16.msra.mxu0 %v366
    %784 = vmatprep.subr.bf16.mxu0 0
    %785 = vmatpush1.bf16.msra.mxu0 %v367
    %786 = vmatprep.subr.bf16.mxu0 0
    %787 = vmatpush1.bf16.msra.mxu0 %v368
    %788 = vmatprep.subr.bf16.mxu0 0
    %789 = vmatpush1.bf16.msra.mxu0 %v369
    %790 = vmatprep.subr.bf16.mxu0 0
    %791 = vmatpush1.bf16.msra.mxu0 %v370
    %792 = vmatprep.subr.bf16.mxu0 0
    %793 = vmatpush1.bf16.msra.mxu0 %v371
    %794 = vmatprep.subr.bf16.mxu0 0
    %795 = vmatpush1.bf16.msra.mxu0 %v372
    %796 = vmatprep.subr.bf16.mxu0 0
    %797 = vmatpush1.bf16.msra.mxu0 %v373
    %798 = vmatprep.subr.bf16.mxu0 0
    %799 = vmatpush1.bf16.msra.mxu0 %v374
    %800 = vmatprep.subr.bf16.mxu0 0
    %801 = vmatpush1.bf16.msra.mxu0 %v375
    %802 = vmatprep.subr.bf16.mxu0 0
    %803 = vmatpush1.bf16.msra.mxu0 %v376
    %804 = vmatprep.subr.bf16.mxu0 0
    %805 = vmatpush1.bf16.msra.mxu0 %v377
    %806 = vmatprep.mubr.bf16.mxu0 %v773
    %807 = vmatmul.mubr.bf16.gmra.mrb[0].mxu0 %v727
    %v808 = vpop.f32.mrb[0].mxu0
    %v809 = vadd.f32 %v98, %v808
    %v810 = vpop.f32.mrb[0].mxu0
    %v811 = vpop.f32.mrb[0].mxu0
    %v812 = vadd.f32 %v98, %v811
    %v813 = vpop.f32.mrb[0].mxu0
    %814 = vdwg.mxu0
    %v815 = vtanh.pop %v809
    %v816 = vtanh.pop %v812
    %s817 = scalar_lea.vmem [#allocation3], 48
    %v818 = vld [vmem:[%s817] sm:$0xf]
    %v819 = vld [vmem:[%s817 + $0x4] sm:$0xf]
    %v820 = vunpack.c.l.bf16 %v818
    %v821 = vunpack.c.l.bf16 %v819
    %v822 = vpack.c.bf16 %v772, %v771
    %823 = vmatprep.subr.bf16.mxu0 0
    %824 = vmatpush1.bf16.msra.mxu0 %v153
    %825 = vmatprep.subr.bf16.mxu0 0
    %826 = vmatpush1.bf16.msra.mxu0 %v154
    %827 = vmatprep.subr.bf16.mxu0 0
    %828 = vmatpush1.bf16.msra.mxu0 %v155
    %829 = vmatprep.subr.bf16.mxu0 0
    %830 = vmatpush1.bf16.msra.mxu0 %v156
    %831 = vmatprep.subr.bf16.mxu0 0
    %832 = vmatpush1.bf16.msra.mxu0 %v157
    %833 = vmatprep.subr.bf16.mxu0 0
    %834 = vmatpush1.bf16.msra.mxu0 %v158
    %835 = vmatprep.subr.bf16.mxu0 0
    %836 = vmatpush1.bf16.msra.mxu0 %v159
    %837 = vmatprep.subr.bf16.mxu0 0
    %838 = vmatpush1.bf16.msra.mxu0 %v160
    %839 = vmatprep.subr.bf16.mxu0 0
    %840 = vmatpush1.bf16.msra.mxu0 0
    %841 = vmatprep.subr.bf16.mxu0 0
    %842 = vmatpush1.bf16.msra.mxu0 0
    %843 = vmatprep.subr.bf16.mxu0 0
    %844 = vmatpush1.bf16.msra.mxu0 0
    %845 = vmatprep.subr.bf16.mxu0 0
    %846 = vmatpush1.bf16.msra.mxu0 0
    %847 = vmatprep.subr.bf16.mxu0 0
    %848 = vmatpush1.bf16.msra.mxu0 0
    %849 = vmatprep.subr.bf16.mxu0 0
    %850 = vmatpush1.bf16.msra.mxu0 0
    %851 = vmatprep.subr.bf16.mxu0 0
    %852 = vmatpush1.bf16.msra.mxu0 0
    %853 = vmatprep.subr.bf16.mxu0 0
    %854 = vmatpush1.bf16.msra.mxu0 0
    %855 = vmatprep.mubr.bf16.mxu0 0
    %856 = vmatmul.mubr.bf16.gmra.mrb[0].mxu0 %v822
    %v857 = vpop.f32.mrb[0].mxu0
    %v858 = vadd.f32 0.0, %v857
    %v859 = vpop.f32.mrb[0].mxu0
    %v860 = vpop.f32.mrb[0].mxu0
    %v861 = vadd.f32 0.0, %v860
    %v862 = vpop.f32.mrb[0].mxu0
    %863 = vdwg.mxu0
    %v864 = vadd.f32 %v820, %v858
    %v865 = vadd.f32 %v821, %v861
    %v866 = vtanh.pop %v864
    %v867 = vtanh.pop %v865
    %v868 = vpack.c.bf16 %v816, %v815
    %869 = vmatprep.subr.bf16.mxu0 0
    %870 = vmatpush1.bf16.msra.mxu0 %v362
    %871 = vmatprep.subr.bf16.mxu0 0
    %872 = vmatpush1.bf16.msra.mxu0 %v363
    %873 = vmatprep.subr.bf16.mxu0 0
    %874 = vmatpush1.bf16.msra.mxu0 %v364
    %875 = vmatprep.subr.bf16.mxu0 0
    %876 = vmatpush1.bf16.msra.mxu0 %v365
    %877 = vmatprep.subr.bf16.mxu0 0
    %878 = vmatpush1.bf16.msra.mxu0 %v366
    %879 = vmatprep.subr.bf16.mxu0 0
    %880 = vmatpush1.bf16.msra.mxu0 %v367
    %881 = vmatprep.subr.bf16.mxu0 0
    %882 = vmatpush1.bf16.msra.mxu0 %v368
    %883 = vmatprep.subr.bf16.mxu0 0
    %884 = vmatpush1.bf16.msra.mxu0 %v369
    %885 = vmatprep.subr.bf16.mxu0 0
    %886 = vmatpush1.bf16.msra.mxu0 %v370
    %887 = vmatprep.subr.bf16.mxu0 0
    %888 = vmatpush1.bf16.msra.mxu0 %v371
    %889 = vmatprep.subr.bf16.mxu0 0
    %890 = vmatpush1.bf16.msra.mxu0 %v372
    %891 = vmatprep.subr.bf16.mxu0 0
    %892 = vmatpush1.bf16.msra.mxu0 %v373
    %893 = vmatprep.subr.bf16.mxu0 0
    %894 = vmatpush1.bf16.msra.mxu0 %v374
    %895 = vmatprep.subr.bf16.mxu0 0
    %896 = vmatpush1.bf16.msra.mxu0 %v375
    %897 = vmatprep.subr.bf16.mxu0 0
    %898 = vmatpush1.bf16.msra.mxu0 %v376
    %899 = vmatprep.subr.bf16.mxu0 0
    %900 = vmatpush1.bf16.msra.mxu0 %v377
    %901 = vmatprep.mubr.bf16.mxu0 %v868
    %902 = vmatmul.mubr.bf16.gmra.mrb[0].mxu0 %v822
    %v903 = vpop.f32.mrb[0].mxu0
    %v904 = vadd.f32 %v98, %v903
    %v905 = vpop.f32.mrb[0].mxu0
    %v906 = vpop.f32.mrb[0].mxu0
    %v907 = vadd.f32 %v98, %v906
    %v908 = vpop.f32.mrb[0].mxu0
    %909 = vdwg.mxu0
    %v910 = vtanh.pop %v904
    %v911 = vtanh.pop %v907
    %s912 = scalar_lea.vmem [#allocation3], 56
    %v913 = vld [vmem:[%s912] sm:$0xf]
    %v914 = vld [vmem:[%s912 + $0x4] sm:$0xf]
    %v915 = vunpack.c.l.bf16 %v913
    %v916 = vunpack.c.l.bf16 %v914
    %v917 = vpack.c.bf16 %v867, %v866
    %918 = vmatprep.subr.bf16.mxu0 0
    %919 = vmatpush1.bf16.msra.mxu0 %v153
    %920 = vmatprep.subr.bf16.mxu0 0
    %921 = vmatpush1.bf16.msra.mxu0 %v154
    %922 = vmatprep.subr.bf16.mxu0 0
    %923 = vmatpush1.bf16.msra.mxu0 %v155
    %924 = vmatprep.subr.bf16.mxu0 0
    %925 = vmatpush1.bf16.msra.mxu0 %v156
    %926 = vmatprep.subr.bf16.mxu0 0
    %927 = vmatpush1.bf16.msra.mxu0 %v157
    %928 = vmatprep.subr.bf16.mxu0 0
    %929 = vmatpush1.bf16.msra.mxu0 %v158
    %930 = vmatprep.subr.bf16.mxu0 0
    %931 = vmatpush1.bf16.msra.mxu0 %v159
    %932 = vmatprep.subr.bf16.mxu0 0
    %933 = vmatpush1.bf16.msra.mxu0 %v160
    %934 = vmatprep.subr.bf16.mxu0 0
    %935 = vmatpush1.bf16.msra.mxu0 0
    %936 = vmatprep.subr.bf16.mxu0 0
    %937 = vmatpush1.bf16.msra.mxu0 0
    %938 = vmatprep.subr.bf16.mxu0 0
    %939 = vmatpush1.bf16.msra.mxu0 0
    %940 = vmatprep.subr.bf16.mxu0 0
    %941 = vmatpush1.bf16.msra.mxu0 0
    %942 = vmatprep.subr.bf16.mxu0 0
    %943 = vmatpush1.bf16.msra.mxu0 0
    %944 = vmatprep.subr.bf16.mxu0 0
    %945 = vmatpush1.bf16.msra.mxu0 0
    %946 = vmatprep.subr.bf16.mxu0 0
    %947 = vmatpush1.bf16.msra.mxu0 0
    %948 = vmatprep.subr.bf16.mxu0 0
    %949 = vmatpush1.bf16.msra.mxu0 0
    %950 = vmatprep.mubr.bf16.mxu0 0
    %951 = vmatmul.mubr.bf16.gmra.mrb[0].mxu0 %v917
    %v952 = vpop.f32.mrb[0].mxu0
    %v953 = vadd.f32 0.0, %v952
    %v954 = vpop.f32.mrb[0].mxu0
    %v955 = vpop.f32.mrb[0].mxu0
    %v956 = vadd.f32 0.0, %v955
    %v957 = vpop.f32.mrb[0].mxu0
    %958 = vdwg.mxu0
    %v959 = vadd.f32 %v915, %v953
    %v960 = vadd.f32 %v916, %v956
    %v961 = vtanh.pop %v959
    %v962 = vtanh.pop %v960
    %v963 = vpack.c.bf16 %v911, %v910
    %964 = vmatprep.subr.bf16.mxu0 0
    %965 = vmatpush1.bf16.msra.mxu0 %v362
    %966 = vmatprep.subr.bf16.mxu0 0
    %967 = vmatpush1.bf16.msra.mxu0 %v363
    %968 = vmatprep.subr.bf16.mxu0 0
    %969 = vmatpush1.bf16.msra.mxu0 %v364
    %970 = vmatprep.subr.bf16.mxu0 0
    %971 = vmatpush1.bf16.msra.mxu0 %v365
    %972 = vmatprep.subr.bf16.mxu0 0
    %973 = vmatpush1.bf16.msra.mxu0 %v366
    %974 = vmatprep.subr.bf16.mxu0 0
    %975 = vmatpush1.bf16.msra.mxu0 %v367
    %976 = vmatprep.subr.bf16.mxu0 0
    %977 = vmatpush1.bf16.msra.mxu0 %v368
    %978 = vmatprep.subr.bf16.mxu0 0
    %979 = vmatpush1.bf16.msra.mxu0 %v369
    %980 = vmatprep.subr.bf16.mxu0 0
    %981 = vmatpush1.bf16.msra.mxu0 %v370
    %982 = vmatprep.subr.bf16.mxu0 0
    %983 = vmatpush1.bf16.msra.mxu0 %v371
    %984 = vmatprep.subr.bf16.mxu0 0
    %985 = vmatpush1.bf16.msra.mxu0 %v372
    %986 = vmatprep.subr.bf16.mxu0 0
    %987 = vmatpush1.bf16.msra.mxu0 %v373
    %988 = vmatprep.subr.bf16.mxu0 0
    %989 = vmatpush1.bf16.msra.mxu0 %v374
    %990 = vmatprep.subr.bf16.mxu0 0
    %991 = vmatpush1.bf16.msra.mxu0 %v375
    %992 = vmatprep.subr.bf16.mxu0 0
    %993 = vmatpush1.bf16.msra.mxu0 %v376
    %994 = vmatprep.subr.bf16.mxu0 0
    %995 = vmatpush1.bf16.msra.mxu0 %v377
    %996 = vmatprep.mubr.bf16.mxu0 %v963
    %997 = vmatmul.mubr.bf16.gmra.mrb[0].mxu0 %v917
    %v998 = vpop.f32.mrb[0].mxu0
    %v999 = vadd.f32 %v98, %v998
    %v1000 = vpop.f32.mrb[0].mxu0
    %v1001 = vpop.f32.mrb[0].mxu0
    %v1002 = vadd.f32 %v98, %v1001
    %v1003 = vpop.f32.mrb[0].mxu0
    %1004 = vdwg.mxu0
    %v1005 = vtanh.pop %v999
    %v1006 = vtanh.pop %v1002
    %v1007 = vpack.c.bf16 %v962, %v961
    %v1008 = vpack.c.bf16 %v1006, %v1005
    %1009 = vmatprep.subr.bf16.mxu0 0
    %1010 = vmatpush1.bf16.msra.mxu0 %v362
    %1011 = vmatprep.subr.bf16.mxu0 0
    %1012 = vmatpush1.bf16.msra.mxu0 %v363
    %1013 = vmatprep.subr.bf16.mxu0 0
    %1014 = vmatpush1.bf16.msra.mxu0 %v364
    %1015 = vmatprep.subr.bf16.mxu0 0
    %1016 = vmatpush1.bf16.msra.mxu0 %v365
    %1017 = vmatprep.subr.bf16.mxu0 0
    %1018 = vmatpush1.bf16.msra.mxu0 %v366
    %1019 = vmatprep.subr.bf16.mxu0 0
    %1020 = vmatpush1.bf16.msra.mxu0 %v367
    %1021 = vmatprep.subr.bf16.mxu0 0
    %1022 = vmatpush1.bf16.msra.mxu0 %v368
    %1023 = vmatprep.subr.bf16.mxu0 0
    %1024 = vmatpush1.bf16.msra.mxu0 %v369
    %1025 = vmatprep.subr.bf16.mxu0 0
    %1026 = vmatpush1.bf16.msra.mxu0 %v370
    %1027 = vmatprep.subr.bf16.mxu0 0
    %1028 = vmatpush1.bf16.msra.mxu0 %v371
    %1029 = vmatprep.subr.bf16.mxu0 0
    %1030 = vmatpush1.bf16.msra.mxu0 %v372
    %1031 = vmatprep.subr.bf16.mxu0 0
    %1032 = vmatpush1.bf16.msra.mxu0 %v373
    %1033 = vmatprep.subr.bf16.mxu0 0
    %1034 = vmatpush1.bf16.msra.mxu0 %v374
    %1035 = vmatprep.subr.bf16.mxu0 0
    %1036 = vmatpush1.bf16.msra.mxu0 %v375
    %1037 = vmatprep.subr.bf16.mxu0 0
    %1038 = vmatpush1.bf16.msra.mxu0 %v376
    %1039 = vmatprep.subr.bf16.mxu0 0
    %1040 = vmatpush1.bf16.msra.mxu0 %v377
    %1041 = vmatprep.mubr.bf16.mxu0 %v1008
    %1042 = vmatmul.mubr.bf16.gmra.mrb[0].mxu0 %v1007
    %v1043 = vpop.f32.mrb[0].mxu0
    %v1044 = vadd.f32 %v98, %v1043
    %v1045 = vpop.f32.mrb[0].mxu0
    %v1046 = vpop.f32.mrb[0].mxu0
    %v1047 = vadd.f32 %v98, %v1046
    %v1048 = vpop.f32.mrb[0].mxu0
    %1049 = vdwg.mxu0
    %v1050 = vtanh.pop %v1044
    %v1051 = vtanh.pop %v1047
    %1052 = vst [vmem:[#allocation2] sm:$0xff] %v961
    %1053 = vst [vmem:[#allocation2 + $0x8] sm:$0xff] %v962
    %1054 = vst [vmem:[%s90] sm:$0xff] %v1050
    %1055 = vst [vmem:[%s90 + $0x8] sm:$0xff] %v1051
    // Predicated region
    $region46: #{tpu_custom_call.1} parent=1 // pred_check
      %p1056 = pneg %p80
    $region47: #{tpu_custom_call.1} parent=1 // pred_check_branch
      %1058 = sbr.rel (%p1056) target = $region49
    $region48: #{tpu_custom_call.1} parent=1 // pred_region
      %v1059 = vpack.c.bf16 %v1051, %v1050
      %v1060 = vld [vmem:[#allocation9] sm:$0xf]
      %v1061 = vld [vmem:[#allocation9 + $0x4] sm:$0xf]
      %v1062 = vld [vmem:[#allocation9 + $0x8] sm:$0xf]
      %v1063 = vld [vmem:[#allocation9 + $0xc] sm:$0xf]
      %v1064 = vld [vmem:[#allocation9 + $0x10] sm:$0xf]
      %v1065 = vld [vmem:[#allocation9 + $0x14] sm:$0xf]
      %v1066 = vld [vmem:[#allocation9 + $0x18] sm:$0xf]
      %v1067 = vld [vmem:[#allocation9 + $0x1c] sm:$0xf]
      %v1068 = vld [vmem:[#allocation9 + $0x20] sm:$0xf]
      %v1069 = vld [vmem:[#allocation9 + $0x24] sm:$0xf]
      %v1070 = vld [vmem:[#allocation9 + $0x28] sm:$0xf]
      %v1071 = vld [vmem:[#allocation9 + $0x2c] sm:$0xf]
      %v1072 = vld [vmem:[#allocation9 + $0x30] sm:$0xf]
      %v1073 = vld [vmem:[#allocation9 + $0x34] sm:$0xf]
      %v1074 = vld [vmem:[#allocation9 + $0x38] sm:$0xf]
      %v1075 = vld [vmem:[#allocation9 + $0x3c] sm:$0xf]
      %v1076 = vld [vmem:[%s5] sm:$0x1]
      %v1078 = vlaneseq
      %v1079 = vshrl.u32 %v1078, 7
      %v1080 = vsub.s32 0, %v1079
      %v1081 = vrot.slane %v1076, %v1080
      %v1099 = vunpack.c.l.b16 %v1060
      %v1100 = vunpack.c.l.b16 %v1061
      %v1101 = vunpack.c.l.b16 %v1062
      %v1102 = vunpack.c.l.b16 %v1063
      %v1103 = vunpack.c.l.b16 %v1064
      %v1104 = vunpack.c.l.b16 %v1065
      %v1105 = vunpack.c.l.b16 %v1066
      %v1106 = vunpack.c.l.b16 %v1067
      %v1107 = vunpack.c.l.b16 %v1068
      %v1108 = vunpack.c.l.b16 %v1069
      %v1109 = vunpack.c.l.b16 %v1070
      %v1110 = vunpack.c.l.b16 %v1071
      %v1111 = vunpack.c.l.b16 %v1072
      %v1112 = vunpack.c.l.b16 %v1073
      %v1113 = vunpack.c.l.b16 %v1074
      %v1114 = vunpack.c.l.b16 %v1075
      %v1115 = vpack.c.b16 %v1100, %v1099
      %v1116 = vpack.c.b16 %v1102, %v1101
      %v1117 = vpack.c.b16 %v1104, %v1103
      %v1118 = vpack.c.b16 %v1106, %v1105
      %v1119 = vpack.c.b16 %v1108, %v1107
      %v1120 = vpack.c.b16 %v1110, %v1109
      %v1121 = vpack.c.b16 %v1112, %v1111
      %v1122 = vpack.c.b16 %v1114, %v1113
      %1131 = vmatprep.subr.bf16.mxu0 0
      %1132 = vmatpush1.bf16.msra.mxu0 %v1115
      %1133 = vmatprep.subr.bf16.mxu0 0
      %1134 = vmatpush1.bf16.msra.mxu0 %v1116
      %1135 = vmatprep.subr.bf16.mxu0 0
      %1136 = vmatpush1.bf16.msra.mxu0 %v1117
      %1137 = vmatprep.subr.bf16.mxu0 0
      %1138 = vmatpush1.bf16.msra.mxu0 %v1118
      %1139 = vmatprep.subr.bf16.mxu0 0
      %1140 = vmatpush1.bf16.msra.mxu0 %v1119
      %1141 = vmatprep.subr.bf16.mxu0 0
      %1142 = vmatpush1.bf16.msra.mxu0 %v1120
      %1143 = vmatprep.subr.bf16.mxu0 0
      %1144 = vmatpush1.bf16.msra.mxu0 %v1121
      %1145 = vmatprep.subr.bf16.mxu0 0
      %1146 = vmatpush1.bf16.msra.mxu0 %v1122
      %1147 = vmatprep.subr.bf16.mxu0 0
      %1148 = vmatpush1.bf16.msra.mxu0 0
      %1149 = vmatprep.subr.bf16.mxu0 0
      %1150 = vmatpush1.bf16.msra.mxu0 0
      %1151 = vmatprep.subr.bf16.mxu0 0
      %1152 = vmatpush1.bf16.msra.mxu0 0
      %1153 = vmatprep.subr.bf16.mxu0 0
      %1154 = vmatpush1.bf16.msra.mxu0 0
      %1155 = vmatprep.subr.bf16.mxu0 0
      %1156 = vmatpush1.bf16.msra.mxu0 0
      %1157 = vmatprep.subr.bf16.mxu0 0
      %1158 = vmatpush1.bf16.msra.mxu0 0
      %1159 = vmatprep.subr.bf16.mxu0 0
      %1160 = vmatpush1.bf16.msra.mxu0 0
      %1161 = vmatprep.subr.bf16.mxu0 0
      %1162 = vmatpush1.bf16.msra.mxu0 0
      %1163 = vmatprep.mubr.bf16.mxu0 0
      %1164 = vmatmul.mubr.bf16.gmra.mrb[0].mxu0 %v1059
      %v1165 = vpop.f32.mrb[0].mxu0
      %v1166 = vadd.f32 %v1081, %v1165
      %v1167 = vpop.f32.mrb[0].mxu0
      %v1168 = vpop.f32.mrb[0].mxu0
      %v1169 = vadd.f32 %v1081, %v1168
      %v1170 = vpop.f32.mrb[0].mxu0
      %1171 = vdwg.mxu0
      %1172 = vst [vmem:[#allocation11] sm:$0xff] %v1166
      %1173 = vst [vmem:[#allocation11 + $0x8] sm:$0xff] %v1169
    $region49: #{tpu_custom_call.1} parent=1 // pred_fallthru
      _
    // Predicated region
    $region50: #{tpu_custom_call.1} parent=1 // pred_check
      _
    $region51: #{tpu_custom_call.1} parent=1 // pred_check_branch
      %1175 = sbr.rel (0) target = $region53
    $region52: #{tpu_custom_call.1} parent=1 // pred_region
      %s1177 = ssub.s32 256, 256
      %1178 = vsyncadd [#allocation5], %s1177
      %s1179 = sshll.u32 [#allocation11], 4
      %s1180 = int_to_ptr.vmem [resolvable:$true] %s1179
      %1185 = dma.vmem_to_hbm [thread:$0]  %s1180, 256, %s6, [#allocation5], 128, 128, 8
    $region53: #{tpu_custom_call.1} parent=1 // pred_fallthru
      _
    // Predicated region
    $region54: #{tpu_custom_call.1} parent=1 // pred_check
      _
    $region55: #{tpu_custom_call.1} parent=1 // pred_check_branch
      %1187 = sbr.rel (0) target = $region57
    $region56: #{tpu_custom_call.1} parent=1 // pred_region
      %1188 = dma.done [#allocation5], 256
    $region57: #{tpu_custom_call.1} parent=1 // pred_fallthru
      _
    %1189 = vsyncpa [#allocation4], 1
    %1190 = vsyncpa [#allocation7], 1
    %1191 = vsyncpa [#allocation10], 1
    %1192 = vsyncpa [#allocation5], 1

</llo_original>
